<compile_context>
chip_gen: v5e
topology: v5e:2x2
jax: 0.10.0
libtpu: 0.0.40
codegen_flags: <defaults>
</compile_context>

<pallas_src>
import functools
import math

import jax
import jax.numpy as jnp
from jax import lax
from jax.experimental import pallas as pl
from jax.experimental.pallas import tpu as pltpu

NUM_HEADS = 8
LN_EPS = 1e-5
_SQRT_2_OVER_PI = math.sqrt(2.0 / math.pi)


def _gelu_tanh(x):
    # tanh-approximated GELU (EUP-friendly); |err| vs exact-erf GELU is a few
    # 1e-4 — inside the relaxed tolerance, but note it is an approximation.
    return 0.5 * x * (1.0 + jnp.tanh(_SQRT_2_OVER_PI * (x + 0.044715 * x * x * x)))


def _layernorm(x, gamma, beta):
    mean = jnp.mean(x, axis=-1, keepdims=True)
    var = jnp.mean(jnp.square(x - mean), axis=-1, keepdims=True)
    return (x - mean) * lax.rsqrt(var + LN_EPS) * gamma + beta


def _make_kernel(S, C, NH):
    HD = C // NH

    def kernel(x_ref, wqkv_ref, bqkv_ref, wo_ref, bo_ref,
               g1_ref, be1_ref, g2_ref, be2_ref,
               w1_ref, b1_ref, w2_ref, b2_ref, o_ref, pv_ref):
        # ---- in-kernel layout conversion: (C, S) -> (S, C) (XLU) -----------
        x = jnp.transpose(x_ref[...])                       # (S, C) f32

        # ---- x = x + SelfAttention(LN1(x)) ---------------------------------
        h1 = _layernorm(x, g1_ref[...], be1_ref[...])
        # Fused QKV projection: K = C, N = 3C, scale pre-folded into Q.
        qkv = jnp.dot(h1.astype(jnp.bfloat16), wqkv_ref[...],
                      preferred_element_type=jnp.float32) + bqkv_ref[...]
        qkv_b = qkv.astype(jnp.bfloat16)                     # cast once, reuse

        # Per-head attention: only one (S, S) score buffer live at a time.
        for h in range(NH):
            qh = qkv_b[:, h * HD:(h + 1) * HD]               # (S, HD)
            kh = qkv_b[:, C + h * HD:C + (h + 1) * HD]       # (S, HD)
            vh = qkv_b[:, 2 * C + h * HD:2 * C + (h + 1) * HD]
            s = lax.dot_general(qh, kh, (((1,), (1,)), ((), ())),
                                preferred_element_type=jnp.float32)  # (S, S)
            s = s - jnp.max(s, axis=-1, keepdims=True)
            p = jnp.exp(s)
            p = p * pl.reciprocal(jnp.sum(p, axis=-1, keepdims=True),
                                  approx=True)
            pv_ref[:, h * HD:(h + 1) * HD] = jnp.dot(
                p.astype(jnp.bfloat16), vh, preferred_element_type=jnp.float32)

        # Fused output projection: one (S, C) @ (C, C) matmul (K = C).
        attn = jnp.dot(pv_ref[...].astype(jnp.bfloat16), wo_ref[...],
                       preferred_element_type=jnp.float32) + bo_ref[...]
        x = x + attn
        # TODO(synk): cross-attention branch (text_embedding is not None) is not
        # exercised by the default forward and is not implemented here.

        # ---- x = x + MLP(LN2(x)) -------------------------------------------
        h2 = _layernorm(x, g2_ref[...], be2_ref[...])
        m = jnp.dot(h2.astype(jnp.bfloat16), w1_ref[...],
                    preferred_element_type=jnp.float32) + b1_ref[...]
        m = _gelu_tanh(m)
        y = jnp.dot(m.astype(jnp.bfloat16), w2_ref[...],
                    preferred_element_type=jnp.float32) + b2_ref[...]

        # Write back in (C, S) layout (lane dim = S).
        o_ref[...] = jnp.transpose(x + y)

    return kernel


@functools.partial(jax.jit, static_argnames=("num_heads",))
def transformer_block(x_nchw, params, num_heads=NUM_HEADS):
    B, C, H, W = x_nchw.shape
    S = H * W
    NH = num_heads
    assert C % NH == 0
    HD = C // NH
    scale = 1.0 / math.sqrt(HD)
    f32, bf16 = jnp.float32, jnp.bfloat16

    # (B, C, H, W) -> (B, C, S): pure reshape, no data movement.  The
    # (C, S) <-> (S, C) transposes are done inside the kernel.
    x3 = x_nchw.reshape(B, C, S).astype(f32)

    # Fused QKV weight (C, 3C), applied as h @ W; attention scale folded into Q.
    w_in = params["in_proj_weight"].astype(f32)                    # (3C, C)
    b_in = params["in_proj_bias"].astype(f32)                      # (3C,)
    qscale = jnp.concatenate([jnp.full((C,), scale, f32),
                              jnp.ones((2 * C,), f32)])
    wqkv = jnp.transpose(w_in * qscale[:, None]).astype(bf16)      # (C, 3C)
    bqkv = (b_in * qscale).reshape(1, 3 * C)

    wo = jnp.transpose(params["out_proj_weight"].astype(f32)).astype(bf16)  # (C, C)
    bo = params["out_proj_bias"].astype(f32).reshape(1, C)
    g1 = params["norm1_weight"].astype(f32).reshape(1, C)
    be1 = params["norm1_bias"].astype(f32).reshape(1, C)
    g2 = params["norm2_weight"].astype(f32).reshape(1, C)
    be2 = params["norm2_bias"].astype(f32).reshape(1, C)
    w1 = jnp.transpose(params["mlp_w1"].astype(f32)).astype(bf16)  # (C, 4C)
    b1 = params["mlp_b1"].astype(f32).reshape(1, 4 * C)
    w2 = jnp.transpose(params["mlp_w2"].astype(f32)).astype(bf16)  # (4C, C)
    b2 = params["mlp_b2"].astype(f32).reshape(1, C)

    operands = (x3, wqkv, bqkv, wo, bo, g1, be1, g2, be2, w1, b1, w2, b2)

    def const_spec(a):
        nd = a.ndim
        return pl.BlockSpec(a.shape, lambda b, _nd=nd: (0,) * _nd)

    in_specs = [pl.BlockSpec((None, C, S), lambda b: (b, 0, 0))]
    in_specs += [const_spec(a) for a in operands[1:]]

    # Per-step working-set estimate -> explicit scoped-VMEM limit (raises
    # v5e's 16 MiB default; stays within v7x's 64 MiB physical VMEM).
    work = (4 * C * S * 4                              # in/out blocks, dbl-buffered
            + 2 * (3 * C * C + C * C + 8 * C * C)      # bf16 weights
            + 4 * S * (3 * C + 6 * C)                  # qkv / mlp f32 intermediates
            + 4 * 3 * S * S)                           # score-buffer headroom
    vmem_limit = int(min(64 << 20, max(32 << 20, 4 * work)))

    out = pl.pallas_call(
        _make_kernel(S, C, NH),
        out_shape=jax.ShapeDtypeStruct((B, C, S), f32),
        grid=(B,),
        in_specs=in_specs,
        out_specs=pl.BlockSpec((None, C, S), lambda b: (b, 0, 0)),
        scratch_shapes=[pltpu.VMEM((S, C), jnp.float32)],
        compiler_params=pltpu.CompilerParams(
            dimension_semantics=("parallel",),
            vmem_limit_bytes=vmem_limit),
    )(*operands)

    return out.reshape(B, C, H, W)


def reference(x_nchw, params):
    """Pure-JAX f32 reference mirroring the PyTorch forward (text_embedding=None)."""
    B, C, H, W = x_nchw.shape
    S = H * W
    nh, hd = NUM_HEADS, C // NUM_HEADS
    x = x_nchw.reshape(B, C, S).transpose(0, 2, 1)

    def ln(z, g, b):
        mu = jnp.mean(z, -1, keepdims=True)
        var = jnp.mean((z - mu) ** 2, -1, keepdims=True)
        return (z - mu) / jnp.sqrt(var + LN_EPS) * g + b

    h = ln(x, params["norm1_weight"], params["norm1_bias"])
    qkv = h @ params["in_proj_weight"].T + params["in_proj_bias"]
    q, k, v = jnp.split(qkv, 3, axis=-1)
    sp = lambda z: z.reshape(B, S, nh, hd).transpose(0, 2, 1, 3)
    q, k, v = sp(q), sp(k), sp(v)
    s = jnp.einsum("bhqd,bhkd->bhqk", q, k) / math.sqrt(hd)
    p = jax.nn.softmax(s, axis=-1)
    a = jnp.einsum("bhqk,bhkd->bhqd", p, v).transpose(0, 2, 1, 3).reshape(B, S, C)
    a = a @ params["out_proj_weight"].T + params["out_proj_bias"]
    x = x + a
    h2 = ln(x, params["norm2_weight"], params["norm2_bias"])
    m = h2 @ params["mlp_w1"].T + params["mlp_b1"]
    m = jax.nn.gelu(m, approximate=False)
    m = m @ params["mlp_w2"].T + params["mlp_b2"]
    x = x + m
    return x.transpose(0, 2, 1).reshape(B, C, H, W)


if __name__ == "__main__":
    key = jax.random.PRNGKey(0)
    B, C, H, W = 2, 32, 8, 8          # dim=32 (divisible by num_heads=8), seq = H*W = 64
    keys = jax.random.split(key, 13)

    def init(k, shape, scale=0.1):
        return scale * jax.random.normal(k, shape, dtype=jnp.float32)

    params = {
        "norm1_weight": 1.0 + init(keys[0], (C,)),
        "norm1_bias": init(keys[1], (C,)),
        "norm2_weight": 1.0 + init(keys[2], (C,)),
        "norm2_bias": init(keys[3], (C,)),
        "in_proj_weight": init(keys[4], (3 * C, C)),
        "in_proj_bias": init(keys[5], (3 * C,)),
        "out_proj_weight": init(keys[6], (C, C)),
        "out_proj_bias": init(keys[7], (C,)),
        "mlp_w1": init(keys[8], (4 * C, C)),
        "mlp_b1": init(keys[9], (4 * C,)),
        "mlp_w2": init(keys[10], (C, 4 * C)),
        "mlp_b2": init(keys[11], (C,)),
    }
    x = jax.random.normal(keys[12], (B, C, H, W), dtype=jnp.float32)

    y = jax.block_until_ready(transformer_block(x, params))
    y_ref = reference(x, params)
    max_err = float(jnp.max(jnp.abs(y - y_ref)))
    assert y.shape == (B, C, H, W)
    # bf16 matmul operands + tanh-GELU + approx reciprocal => relaxed tolerance
    assert jnp.allclose(y, y_ref, atol=2e-2, rtol=2e-2), max_err
    print("KERNEL_OK")
</pallas_src>

<mosaic_0001>
module attributes {stable_mosaic.version = 11 : i64} {
  func.func @kernel(%arg0: i32, %arg1: memref<1x32x64xf32, #tpu.memory_space<vmem>>, %arg2: memref<32x96xbf16, #tpu.memory_space<vmem>>, %arg3: memref<1x96xf32, #tpu.memory_space<vmem>>, %arg4: memref<32x32xbf16, #tpu.memory_space<vmem>>, %arg5: memref<1x32xf32, #tpu.memory_space<vmem>>, %arg6: memref<1x32xf32, #tpu.memory_space<vmem>>, %arg7: memref<1x32xf32, #tpu.memory_space<vmem>>, %arg8: memref<1x32xf32, #tpu.memory_space<vmem>>, %arg9: memref<1x32xf32, #tpu.memory_space<vmem>>, %arg10: memref<32x128xbf16, #tpu.memory_space<vmem>>, %arg11: memref<1x128xf32, #tpu.memory_space<vmem>>, %arg12: memref<128x32xbf16, #tpu.memory_space<vmem>>, %arg13: memref<1x32xf32, #tpu.memory_space<vmem>>, %arg14: memref<1x32x64xf32, #tpu.memory_space<vmem>>, %arg15: memref<64x32xf32, #tpu.memory_space<vmem>>) attributes {dimension_semantics = [#tpu.dimension_semantics<parallel>], iteration_bounds = array<i64: 2>, scalar_prefetch = 0 : i64, scratch_operands = 1 : i64, tpu.core_type = #tpu.core_type<tc>, window_params = [{transform_indices = @transform_0, window_bounds = array<i64: 1, 32, 64>}, {pipeline_mode = #tpu.pipeline_mode<synchronous>, transform_indices = @transform_1, window_bounds = array<i64: 32, 96>}, {pipeline_mode = #tpu.pipeline_mode<synchronous>, transform_indices = @transform_2, window_bounds = array<i64: 1, 96>}, {pipeline_mode = #tpu.pipeline_mode<synchronous>, transform_indices = @transform_3, window_bounds = array<i64: 32, 32>}, {pipeline_mode = #tpu.pipeline_mode<synchronous>, transform_indices = @transform_4, window_bounds = array<i64: 1, 32>}, {pipeline_mode = #tpu.pipeline_mode<synchronous>, transform_indices = @transform_5, window_bounds = array<i64: 1, 32>}, {pipeline_mode = #tpu.pipeline_mode<synchronous>, transform_indices = @transform_6, window_bounds = array<i64: 1, 32>}, {pipeline_mode = #tpu.pipeline_mode<synchronous>, transform_indices = @transform_7, window_bounds = array<i64: 1, 32>}, {pipeline_mode = #tpu.pipeline_mode<synchronous>, transform_indices = @transform_8, window_bounds = array<i64: 1, 32>}, {pipeline_mode = #tpu.pipeline_mode<synchronous>, transform_indices = @transform_9, window_bounds = array<i64: 32, 128>}, {pipeline_mode = #tpu.pipeline_mode<synchronous>, transform_indices = @transform_10, window_bounds = array<i64: 1, 128>}, {pipeline_mode = #tpu.pipeline_mode<synchronous>, transform_indices = @transform_11, window_bounds = array<i64: 128, 32>}, {pipeline_mode = #tpu.pipeline_mode<synchronous>, transform_indices = @transform_12, window_bounds = array<i64: 1, 32>}, {transform_indices = @transform_13, window_bounds = array<i64: 1, 32, 64>}]} {
    %c0 = arith.constant 0 : index
    %c0_0 = arith.constant 0 : index
    %c0_1 = arith.constant 0 : index
    %0 = vector.load %arg1[%c0, %c0_0, %c0_1] : memref<1x32x64xf32, #tpu.memory_space<vmem>>, vector<1x32x64xf32>
    %1 = vector.shape_cast %0 : vector<1x32x64xf32> to vector<32x64xf32>
    %2 = tpu.transpose %1, [1, 0] : vector<32x64xf32> -> vector<64x32xf32>
    %c0_2 = arith.constant 0 : index
    %c0_3 = arith.constant 0 : index
    %3 = vector.load %arg6[%c0_2, %c0_3] : memref<1x32xf32, #tpu.memory_space<vmem>>, vector<1x32xf32>
    %c0_4 = arith.constant 0 : index
    %c0_5 = arith.constant 0 : index
    %4 = vector.load %arg7[%c0_4, %c0_5] : memref<1x32xf32, #tpu.memory_space<vmem>>, vector<1x32xf32>
    %cst = arith.constant dense<0.000000e+00> : vector<64xf32>
    %5 = vector.multi_reduction <add>, %2, %cst [1] : vector<64x32xf32> to vector<64xf32>
    %6 = vector.shape_cast %5 : vector<64xf32> to vector<64x1xf32>
    %cst_6 = arith.constant 3.200000e+01 : f32
    %7 = vector.broadcast %cst_6 : f32 to vector<64x1xf32>
    %8 = arith.divf %6, %7 : vector<64x1xf32>
    %9 = vector.broadcast %8 : vector<64x1xf32> to vector<64x32xf32>
    %10 = arith.subf %2, %9 : vector<64x32xf32>
    %11 = arith.mulf %10, %10 : vector<64x32xf32>
    %cst_7 = arith.constant dense<0.000000e+00> : vector<64xf32>
    %12 = vector.multi_reduction <add>, %11, %cst_7 [1] : vector<64x32xf32> to vector<64xf32>
    %13 = vector.shape_cast %12 : vector<64xf32> to vector<64x1xf32>
    %cst_8 = arith.constant 3.200000e+01 : f32
    %14 = vector.broadcast %cst_8 : f32 to vector<64x1xf32>
    %15 = arith.divf %13, %14 : vector<64x1xf32>
    %16 = vector.broadcast %8 : vector<64x1xf32> to vector<64x32xf32>
    %17 = arith.subf %2, %16 : vector<64x32xf32>
    %cst_9 = arith.constant 9.99999974E-6 : f32
    %18 = vector.broadcast %cst_9 : f32 to vector<64x1xf32>
    %19 = arith.addf %15, %18 : vector<64x1xf32>
    %20 = math.rsqrt %19 : vector<64x1xf32>
    %21 = vector.broadcast %20 : vector<64x1xf32> to vector<64x32xf32>
    %22 = arith.mulf %17, %21 : vector<64x32xf32>
    %23 = vector.broadcast %3 : vector<1x32xf32> to vector<64x32xf32>
    %24 = arith.mulf %22, %23 : vector<64x32xf32>
    %25 = vector.broadcast %4 : vector<1x32xf32> to vector<64x32xf32>
    %26 = arith.addf %24, %25 : vector<64x32xf32>
    %27 = arith.truncf %26 : vector<64x32xf32> to vector<64x32xbf16>
    %c0_10 = arith.constant 0 : index
    %c0_11 = arith.constant 0 : index
    %28 = vector.load %arg2[%c0_10, %c0_11] : memref<32x96xbf16, #tpu.memory_space<vmem>>, vector<32x96xbf16>
    %cst_12 = arith.constant dense<0.000000e+00> : vector<64x96xf32>
    %29 = tpu.matmul %27, %28, %cst_12 {dimension_numbers = #tpu.dot_dimension_numbers<[1], [0], [0], [1], [0, 0, 1, 1], [], []>} : vector<64x32xbf16>, vector<32x96xbf16>, vector<64x96xf32> -> vector<64x96xf32>
    %c0_13 = arith.constant 0 : index
    %c0_14 = arith.constant 0 : index
    %30 = vector.load %arg3[%c0_13, %c0_14] : memref<1x96xf32, #tpu.memory_space<vmem>>, vector<1x96xf32>
    %31 = vector.broadcast %30 : vector<1x96xf32> to vector<64x96xf32>
    %32 = arith.addf %29, %31 : vector<64x96xf32>
    %33 = arith.truncf %32 : vector<64x96xf32> to vector<64x96xbf16>
    %34 = vector.extract_strided_slice %33 {offsets = [0, 0], sizes = [64, 4], strides = [1, 1]} : vector<64x96xbf16> to vector<64x4xbf16>
    %35 = vector.extract_strided_slice %33 {offsets = [0, 32], sizes = [64, 4], strides = [1, 1]} : vector<64x96xbf16> to vector<64x4xbf16>
    %36 = vector.extract_strided_slice %33 {offsets = [0, 64], sizes = [64, 4], strides = [1, 1]} : vector<64x96xbf16> to vector<64x4xbf16>
    %cst_15 = arith.constant dense<0.000000e+00> : vector<64x64xf32>
    %37 = tpu.matmul %34, %35, %cst_15 {dimension_numbers = #tpu.dot_dimension_numbers<[1], [1], [0], [0], [0, 0, 1, 0], [], []>} : vector<64x4xbf16>, vector<64x4xbf16>, vector<64x64xf32> -> vector<64x64xf32>
    %cst_16 = arith.constant dense<0xFF800000> : vector<64xf32>
    %38 = vector.multi_reduction <maximumf>, %37, %cst_16 [1] : vector<64x64xf32> to vector<64xf32>
    %39 = vector.shape_cast %38 : vector<64xf32> to vector<64x1xf32>
    %40 = vector.broadcast %39 : vector<64x1xf32> to vector<64x64xf32>
    %41 = arith.subf %37, %40 : vector<64x64xf32>
    %42 = math.exp %41 : vector<64x64xf32>
    %cst_17 = arith.constant dense<0.000000e+00> : vector<64xf32>
    %43 = vector.multi_reduction <add>, %42, %cst_17 [1] : vector<64x64xf32> to vector<64xf32>
    %44 = vector.shape_cast %43 : vector<64xf32> to vector<64x1xf32>
    %45 = tpu.reciprocal %44 {approx = true} : vector<64x1xf32> -> vector<64x1xf32>
    %46 = vector.broadcast %45 : vector<64x1xf32> to vector<64x64xf32>
    %47 = arith.mulf %42, %46 : vector<64x64xf32>
    %48 = arith.truncf %47 : vector<64x64xf32> to vector<64x64xbf16>
    %cst_18 = arith.constant dense<0.000000e+00> : vector<64x4xf32>
    %49 = tpu.matmul %48, %36, %cst_18 {dimension_numbers = #tpu.dot_dimension_numbers<[1], [0], [0], [1], [0, 0, 1, 1], [], []>} : vector<64x64xbf16>, vector<64x4xbf16>, vector<64x4xf32> -> vector<64x4xf32>
    %c0_19 = arith.constant 0 : index
    %c0_20 = arith.constant 0 : index
    %50 = vector.load %arg15[%c0_19, %c0_20] : memref<64x32xf32, #tpu.memory_space<vmem>>, vector<64x4xf32>
    tpu.vector_store %arg15[%c0_19, %c0_20], %49 {strides = array<i32>} : memref<64x32xf32, #tpu.memory_space<vmem>>, vector<64x4xf32>,
    %51 = vector.extract_strided_slice %33 {offsets = [0, 4], sizes = [64, 4], strides = [1, 1]} : vector<64x96xbf16> to vector<64x4xbf16>
    %52 = vector.extract_strided_slice %33 {offsets = [0, 36], sizes = [64, 4], strides = [1, 1]} : vector<64x96xbf16> to vector<64x4xbf16>
    %53 = vector.extract_strided_slice %33 {offsets = [0, 68], sizes = [64, 4], strides = [1, 1]} : vector<64x96xbf16> to vector<64x4xbf16>
    %cst_21 = arith.constant dense<0.000000e+00> : vector<64x64xf32>
    %54 = tpu.matmul %51, %52, %cst_21 {dimension_numbers = #tpu.dot_dimension_numbers<[1], [1], [0], [0], [0, 0, 1, 0], [], []>} : vector<64x4xbf16>, vector<64x4xbf16>, vector<64x64xf32> -> vector<64x64xf32>
    %cst_22 = arith.constant dense<0xFF800000> : vector<64xf32>
    %55 = vector.multi_reduction <maximumf>, %54, %cst_22 [1] : vector<64x64xf32> to vector<64xf32>
    %56 = vector.shape_cast %55 : vector<64xf32> to vector<64x1xf32>
    %57 = vector.broadcast %56 : vector<64x1xf32> to vector<64x64xf32>
    %58 = arith.subf %54, %57 : vector<64x64xf32>
    %59 = math.exp %58 : vector<64x64xf32>
    %cst_23 = arith.constant dense<0.000000e+00> : vector<64xf32>
    %60 = vector.multi_reduction <add>, %59, %cst_23 [1] : vector<64x64xf32> to vector<64xf32>
    %61 = vector.shape_cast %60 : vector<64xf32> to vector<64x1xf32>
    %62 = tpu.reciprocal %61 {approx = true} : vector<64x1xf32> -> vector<64x1xf32>
    %63 = vector.broadcast %62 : vector<64x1xf32> to vector<64x64xf32>
    %64 = arith.mulf %59, %63 : vector<64x64xf32>
    %65 = arith.truncf %64 : vector<64x64xf32> to vector<64x64xbf16>
    %cst_24 = arith.constant dense<0.000000e+00> : vector<64x4xf32>
    %66 = tpu.matmul %65, %53, %cst_24 {dimension_numbers = #tpu.dot_dimension_numbers<[1], [0], [0], [1], [0, 0, 1, 1], [], []>} : vector<64x64xbf16>, vector<64x4xbf16>, vector<64x4xf32> -> vector<64x4xf32>
    %c0_25 = arith.constant 0 : index
    %c4 = arith.constant 4 : index
    %67 = vector.load %arg15[%c0_25, %c4] : memref<64x32xf32, #tpu.memory_space<vmem>>, vector<64x4xf32>
    tpu.vector_store %arg15[%c0_25, %c4], %66 {strides = array<i32>} : memref<64x32xf32, #tpu.memory_space<vmem>>, vector<64x4xf32>,
    %68 = vector.extract_strided_slice %33 {offsets = [0, 8], sizes = [64, 4], strides = [1, 1]} : vector<64x96xbf16> to vector<64x4xbf16>
    %69 = vector.extract_strided_slice %33 {offsets = [0, 40], sizes = [64, 4], strides = [1, 1]} : vector<64x96xbf16> to vector<64x4xbf16>
    %70 = vector.extract_strided_slice %33 {offsets = [0, 72], sizes = [64, 4], strides = [1, 1]} : vector<64x96xbf16> to vector<64x4xbf16>
    %cst_26 = arith.constant dense<0.000000e+00> : vector<64x64xf32>
    %71 = tpu.matmul %68, %69, %cst_26 {dimension_numbers = #tpu.dot_dimension_numbers<[1], [1], [0], [0], [0, 0, 1, 0], [], []>} : vector<64x4xbf16>, vector<64x4xbf16>, vector<64x64xf32> -> vector<64x64xf32>
    %cst_27 = arith.constant dense<0xFF800000> : vector<64xf32>
    %72 = vector.multi_reduction <maximumf>, %71, %cst_27 [1] : vector<64x64xf32> to vector<64xf32>
    %73 = vector.shape_cast %72 : vector<64xf32> to vector<64x1xf32>
    %74 = vector.broadcast %73 : vector<64x1xf32> to vector<64x64xf32>
    %75 = arith.subf %71, %74 : vector<64x64xf32>
    %76 = math.exp %75 : vector<64x64xf32>
    %cst_28 = arith.constant dense<0.000000e+00> : vector<64xf32>
    %77 = vector.multi_reduction <add>, %76, %cst_28 [1] : vector<64x64xf32> to vector<64xf32>
    %78 = vector.shape_cast %77 : vector<64xf32> to vector<64x1xf32>
    %79 = tpu.reciprocal %78 {approx = true} : vector<64x1xf32> -> vector<64x1xf32>
    %80 = vector.broadcast %79 : vector<64x1xf32> to vector<64x64xf32>
    %81 = arith.mulf %76, %80 : vector<64x64xf32>
    %82 = arith.truncf %81 : vector<64x64xf32> to vector<64x64xbf16>
    %cst_29 = arith.constant dense<0.000000e+00> : vector<64x4xf32>
    %83 = tpu.matmul %82, %70, %cst_29 {dimension_numbers = #tpu.dot_dimension_numbers<[1], [0], [0], [1], [0, 0, 1, 1], [], []>} : vector<64x64xbf16>, vector<64x4xbf16>, vector<64x4xf32> -> vector<64x4xf32>
    %c0_30 = arith.constant 0 : index
    %c8 = arith.constant 8 : index
    %84 = vector.load %arg15[%c0_30, %c8] : memref<64x32xf32, #tpu.memory_space<vmem>>, vector<64x4xf32>
    tpu.vector_store %arg15[%c0_30, %c8], %83 {strides = array<i32>} : memref<64x32xf32, #tpu.memory_space<vmem>>, vector<64x4xf32>,
    %85 = vector.extract_strided_slice %33 {offsets = [0, 12], sizes = [64, 4], strides = [1, 1]} : vector<64x96xbf16> to vector<64x4xbf16>
    %86 = vector.extract_strided_slice %33 {offsets = [0, 44], sizes = [64, 4], strides = [1, 1]} : vector<64x96xbf16> to vector<64x4xbf16>
    %87 = vector.extract_strided_slice %33 {offsets = [0, 76], sizes = [64, 4], strides = [1, 1]} : vector<64x96xbf16> to vector<64x4xbf16>
    %cst_31 = arith.constant dense<0.000000e+00> : vector<64x64xf32>
    %88 = tpu.matmul %85, %86, %cst_31 {dimension_numbers = #tpu.dot_dimension_numbers<[1], [1], [0], [0], [0, 0, 1, 0], [], []>} : vector<64x4xbf16>, vector<64x4xbf16>, vector<64x64xf32> -> vector<64x64xf32>
    %cst_32 = arith.constant dense<0xFF800000> : vector<64xf32>
    %89 = vector.multi_reduction <maximumf>, %88, %cst_32 [1] : vector<64x64xf32> to vector<64xf32>
    %90 = vector.shape_cast %89 : vector<64xf32> to vector<64x1xf32>
    %91 = vector.broadcast %90 : vector<64x1xf32> to vector<64x64xf32>
    %92 = arith.subf %88, %91 : vector<64x64xf32>
    %93 = math.exp %92 : vector<64x64xf32>
    %cst_33 = arith.constant dense<0.000000e+00> : vector<64xf32>
    %94 = vector.multi_reduction <add>, %93, %cst_33 [1] : vector<64x64xf32> to vector<64xf32>
    %95 = vector.shape_cast %94 : vector<64xf32> to vector<64x1xf32>
    %96 = tpu.reciprocal %95 {approx = true} : vector<64x1xf32> -> vector<64x1xf32>
    %97 = vector.broadcast %96 : vector<64x1xf32> to vector<64x64xf32>
    %98 = arith.mulf %93, %97 : vector<64x64xf32>
    %99 = arith.truncf %98 : vector<64x64xf32> to vector<64x64xbf16>
    %cst_34 = arith.constant dense<0.000000e+00> : vector<64x4xf32>
    %100 = tpu.matmul %99, %87, %cst_34 {dimension_numbers = #tpu.dot_dimension_numbers<[1], [0], [0], [1], [0, 0, 1, 1], [], []>} : vector<64x64xbf16>, vector<64x4xbf16>, vector<64x4xf32> -> vector<64x4xf32>
    %c0_35 = arith.constant 0 : index
    %c12 = arith.constant 12 : index
    %101 = vector.load %arg15[%c0_35, %c12] : memref<64x32xf32, #tpu.memory_space<vmem>>, vector<64x4xf32>
    tpu.vector_store %arg15[%c0_35, %c12], %100 {strides = array<i32>} : memref<64x32xf32, #tpu.memory_space<vmem>>, vector<64x4xf32>,
    %102 = vector.extract_strided_slice %33 {offsets = [0, 16], sizes = [64, 4], strides = [1, 1]} : vector<64x96xbf16> to vector<64x4xbf16>
    %103 = vector.extract_strided_slice %33 {offsets = [0, 48], sizes = [64, 4], strides = [1, 1]} : vector<64x96xbf16> to vector<64x4xbf16>
    %104 = vector.extract_strided_slice %33 {offsets = [0, 80], sizes = [64, 4], strides = [1, 1]} : vector<64x96xbf16> to vector<64x4xbf16>
    %cst_36 = arith.constant dense<0.000000e+00> : vector<64x64xf32>
    %105 = tpu.matmul %102, %103, %cst_36 {dimension_numbers = #tpu.dot_dimension_numbers<[1], [1], [0], [0], [0, 0, 1, 0], [], []>} : vector<64x4xbf16>, vector<64x4xbf16>, vector<64x64xf32> -> vector<64x64xf32>
    %cst_37 = arith.constant dense<0xFF800000> : vector<64xf32>
    %106 = vector.multi_reduction <maximumf>, %105, %cst_37 [1] : vector<64x64xf32> to vector<64xf32>
    %107 = vector.shape_cast %106 : vector<64xf32> to vector<64x1xf32>
    %108 = vector.broadcast %107 : vector<64x1xf32> to vector<64x64xf32>
    %109 = arith.subf %105, %108 : vector<64x64xf32>
    %110 = math.exp %109 : vector<64x64xf32>
    %cst_38 = arith.constant dense<0.000000e+00> : vector<64xf32>
    %111 = vector.multi_reduction <add>, %110, %cst_38 [1] : vector<64x64xf32> to vector<64xf32>
    %112 = vector.shape_cast %111 : vector<64xf32> to vector<64x1xf32>
    %113 = tpu.reciprocal %112 {approx = true} : vector<64x1xf32> -> vector<64x1xf32>
    %114 = vector.broadcast %113 : vector<64x1xf32> to vector<64x64xf32>
    %115 = arith.mulf %110, %114 : vector<64x64xf32>
    %116 = arith.truncf %115 : vector<64x64xf32> to vector<64x64xbf16>
    %cst_39 = arith.constant dense<0.000000e+00> : vector<64x4xf32>
    %117 = tpu.matmul %116, %104, %cst_39 {dimension_numbers = #tpu.dot_dimension_numbers<[1], [0], [0], [1], [0, 0, 1, 1], [], []>} : vector<64x64xbf16>, vector<64x4xbf16>, vector<64x4xf32> -> vector<64x4xf32>
    %c0_40 = arith.constant 0 : index
    %c16 = arith.constant 16 : index
    %118 = vector.load %arg15[%c0_40, %c16] : memref<64x32xf32, #tpu.memory_space<vmem>>, vector<64x4xf32>
    tpu.vector_store %arg15[%c0_40, %c16], %117 {strides = array<i32>} : memref<64x32xf32, #tpu.memory_space<vmem>>, vector<64x4xf32>,
    %119 = vector.extract_strided_slice %33 {offsets = [0, 20], sizes = [64, 4], strides = [1, 1]} : vector<64x96xbf16> to vector<64x4xbf16>
    %120 = vector.extract_strided_slice %33 {offsets = [0, 52], sizes = [64, 4], strides = [1, 1]} : vector<64x96xbf16> to vector<64x4xbf16>
    %121 = vector.extract_strided_slice %33 {offsets = [0, 84], sizes = [64, 4], strides = [1, 1]} : vector<64x96xbf16> to vector<64x4xbf16>
    %cst_41 = arith.constant dense<0.000000e+00> : vector<64x64xf32>
    %122 = tpu.matmul %119, %120, %cst_41 {dimension_numbers = #tpu.dot_dimension_numbers<[1], [1], [0], [0], [0, 0, 1, 0], [], []>} : vector<64x4xbf16>, vector<64x4xbf16>, vector<64x64xf32> -> vector<64x64xf32>
    %cst_42 = arith.constant dense<0xFF800000> : vector<64xf32>
    %123 = vector.multi_reduction <maximumf>, %122, %cst_42 [1] : vector<64x64xf32> to vector<64xf32>
    %124 = vector.shape_cast %123 : vector<64xf32> to vector<64x1xf32>
    %125 = vector.broadcast %124 : vector<64x1xf32> to vector<64x64xf32>
    %126 = arith.subf %122, %125 : vector<64x64xf32>
    %127 = math.exp %126 : vector<64x64xf32>
    %cst_43 = arith.constant dense<0.000000e+00> : vector<64xf32>
    %128 = vector.multi_reduction <add>, %127, %cst_43 [1] : vector<64x64xf32> to vector<64xf32>
    %129 = vector.shape_cast %128 : vector<64xf32> to vector<64x1xf32>
    %130 = tpu.reciprocal %129 {approx = true} : vector<64x1xf32> -> vector<64x1xf32>
    %131 = vector.broadcast %130 : vector<64x1xf32> to vector<64x64xf32>
    %132 = arith.mulf %127, %131 : vector<64x64xf32>
    %133 = arith.truncf %132 : vector<64x64xf32> to vector<64x64xbf16>
    %cst_44 = arith.constant dense<0.000000e+00> : vector<64x4xf32>
    %134 = tpu.matmul %133, %121, %cst_44 {dimension_numbers = #tpu.dot_dimension_numbers<[1], [0], [0], [1], [0, 0, 1, 1], [], []>} : vector<64x64xbf16>, vector<64x4xbf16>, vector<64x4xf32> -> vector<64x4xf32>
    %c0_45 = arith.constant 0 : index
    %c20 = arith.constant 20 : index
    %135 = vector.load %arg15[%c0_45, %c20] : memref<64x32xf32, #tpu.memory_space<vmem>>, vector<64x4xf32>
    tpu.vector_store %arg15[%c0_45, %c20], %134 {strides = array<i32>} : memref<64x32xf32, #tpu.memory_space<vmem>>, vector<64x4xf32>,
    %136 = vector.extract_strided_slice %33 {offsets = [0, 24], sizes = [64, 4], strides = [1, 1]} : vector<64x96xbf16> to vector<64x4xbf16>
    %137 = vector.extract_strided_slice %33 {offsets = [0, 56], sizes = [64, 4], strides = [1, 1]} : vector<64x96xbf16> to vector<64x4xbf16>
    %138 = vector.extract_strided_slice %33 {offsets = [0, 88], sizes = [64, 4], strides = [1, 1]} : vector<64x96xbf16> to vector<64x4xbf16>
    %cst_46 = arith.constant dense<0.000000e+00> : vector<64x64xf32>
    %139 = tpu.matmul %136, %137, %cst_46 {dimension_numbers = #tpu.dot_dimension_numbers<[1], [1], [0], [0], [0, 0, 1, 0], [], []>} : vector<64x4xbf16>, vector<64x4xbf16>, vector<64x64xf32> -> vector<64x64xf32>
    %cst_47 = arith.constant dense<0xFF800000> : vector<64xf32>
    %140 = vector.multi_reduction <maximumf>, %139, %cst_47 [1] : vector<64x64xf32> to vector<64xf32>
    %141 = vector.shape_cast %140 : vector<64xf32> to vector<64x1xf32>
    %142 = vector.broadcast %141 : vector<64x1xf32> to vector<64x64xf32>
    %143 = arith.subf %139, %142 : vector<64x64xf32>
    %144 = math.exp %143 : vector<64x64xf32>
    %cst_48 = arith.constant dense<0.000000e+00> : vector<64xf32>
    %145 = vector.multi_reduction <add>, %144, %cst_48 [1] : vector<64x64xf32> to vector<64xf32>
    %146 = vector.shape_cast %145 : vector<64xf32> to vector<64x1xf32>
    %147 = tpu.reciprocal %146 {approx = true} : vector<64x1xf32> -> vector<64x1xf32>
    %148 = vector.broadcast %147 : vector<64x1xf32> to vector<64x64xf32>
    %149 = arith.mulf %144, %148 : vector<64x64xf32>
    %150 = arith.truncf %149 : vector<64x64xf32> to vector<64x64xbf16>
    %cst_49 = arith.constant dense<0.000000e+00> : vector<64x4xf32>
    %151 = tpu.matmul %150, %138, %cst_49 {dimension_numbers = #tpu.dot_dimension_numbers<[1], [0], [0], [1], [0, 0, 1, 1], [], []>} : vector<64x64xbf16>, vector<64x4xbf16>, vector<64x4xf32> -> vector<64x4xf32>
    %c0_50 = arith.constant 0 : index
    %c24 = arith.constant 24 : index
    %152 = vector.load %arg15[%c0_50, %c24] : memref<64x32xf32, #tpu.memory_space<vmem>>, vector<64x4xf32>
    tpu.vector_store %arg15[%c0_50, %c24], %151 {strides = array<i32>} : memref<64x32xf32, #tpu.memory_space<vmem>>, vector<64x4xf32>,
    %153 = vector.extract_strided_slice %33 {offsets = [0, 28], sizes = [64, 4], strides = [1, 1]} : vector<64x96xbf16> to vector<64x4xbf16>
    %154 = vector.extract_strided_slice %33 {offsets = [0, 60], sizes = [64, 4], strides = [1, 1]} : vector<64x96xbf16> to vector<64x4xbf16>
    %155 = vector.extract_strided_slice %33 {offsets = [0, 92], sizes = [64, 4], strides = [1, 1]} : vector<64x96xbf16> to vector<64x4xbf16>
    %cst_51 = arith.constant dense<0.000000e+00> : vector<64x64xf32>
    %156 = tpu.matmul %153, %154, %cst_51 {dimension_numbers = #tpu.dot_dimension_numbers<[1], [1], [0], [0], [0, 0, 1, 0], [], []>} : vector<64x4xbf16>, vector<64x4xbf16>, vector<64x64xf32> -> vector<64x64xf32>
    %cst_52 = arith.constant dense<0xFF800000> : vector<64xf32>
    %157 = vector.multi_reduction <maximumf>, %156, %cst_52 [1] : vector<64x64xf32> to vector<64xf32>
    %158 = vector.shape_cast %157 : vector<64xf32> to vector<64x1xf32>
    %159 = vector.broadcast %158 : vector<64x1xf32> to vector<64x64xf32>
    %160 = arith.subf %156, %159 : vector<64x64xf32>
    %161 = math.exp %160 : vector<64x64xf32>
    %cst_53 = arith.constant dense<0.000000e+00> : vector<64xf32>
    %162 = vector.multi_reduction <add>, %161, %cst_53 [1] : vector<64x64xf32> to vector<64xf32>
    %163 = vector.shape_cast %162 : vector<64xf32> to vector<64x1xf32>
    %164 = tpu.reciprocal %163 {approx = true} : vector<64x1xf32> -> vector<64x1xf32>
    %165 = vector.broadcast %164 : vector<64x1xf32> to vector<64x64xf32>
    %166 = arith.mulf %161, %165 : vector<64x64xf32>
    %167 = arith.truncf %166 : vector<64x64xf32> to vector<64x64xbf16>
    %cst_54 = arith.constant dense<0.000000e+00> : vector<64x4xf32>
    %168 = tpu.matmul %167, %155, %cst_54 {dimension_numbers = #tpu.dot_dimension_numbers<[1], [0], [0], [1], [0, 0, 1, 1], [], []>} : vector<64x64xbf16>, vector<64x4xbf16>, vector<64x4xf32> -> vector<64x4xf32>
    %c0_55 = arith.constant 0 : index
    %c28 = arith.constant 28 : index
    %169 = vector.load %arg15[%c0_55, %c28] : memref<64x32xf32, #tpu.memory_space<vmem>>, vector<64x4xf32>
    tpu.vector_store %arg15[%c0_55, %c28], %168 {strides = array<i32>} : memref<64x32xf32, #tpu.memory_space<vmem>>, vector<64x4xf32>,
    %c0_56 = arith.constant 0 : index
    %c0_57 = arith.constant 0 : index
    %170 = vector.load %arg15[%c0_56, %c0_57] : memref<64x32xf32, #tpu.memory_space<vmem>>, vector<64x32xf32>
    %171 = arith.truncf %170 : vector<64x32xf32> to vector<64x32xbf16>
    %c0_58 = arith.constant 0 : index
    %c0_59 = arith.constant 0 : index
    %172 = vector.load %arg4[%c0_58, %c0_59] : memref<32x32xbf16, #tpu.memory_space<vmem>>, vector<32x32xbf16>
    %cst_60 = arith.constant dense<0.000000e+00> : vector<64x32xf32>
    %173 = tpu.matmul %171, %172, %cst_60 {dimension_numbers = #tpu.dot_dimension_numbers<[1], [0], [0], [1], [0, 0, 1, 1], [], []>} : vector<64x32xbf16>, vector<32x32xbf16>, vector<64x32xf32> -> vector<64x32xf32>
    %c0_61 = arith.constant 0 : index
    %c0_62 = arith.constant 0 : index
    %174 = vector.load %arg5[%c0_61, %c0_62] : memref<1x32xf32, #tpu.memory_space<vmem>>, vector<1x32xf32>
    %175 = vector.broadcast %174 : vector<1x32xf32> to vector<64x32xf32>
    %176 = arith.addf %173, %175 : vector<64x32xf32>
    %177 = arith.addf %2, %176 : vector<64x32xf32>
    %c0_63 = arith.constant 0 : index
    %c0_64 = arith.constant 0 : index
    %178 = vector.load %arg8[%c0_63, %c0_64] : memref<1x32xf32, #tpu.memory_space<vmem>>, vector<1x32xf32>
    %c0_65 = arith.constant 0 : index
    %c0_66 = arith.constant 0 : index
    %179 = vector.load %arg9[%c0_65, %c0_66] : memref<1x32xf32, #tpu.memory_space<vmem>>, vector<1x32xf32>
    %cst_67 = arith.constant dense<0.000000e+00> : vector<64xf32>
    %180 = vector.multi_reduction <add>, %177, %cst_67 [1] : vector<64x32xf32> to vector<64xf32>
    %181 = vector.shape_cast %180 : vector<64xf32> to vector<64x1xf32>
    %cst_68 = arith.constant 3.200000e+01 : f32
    %182 = vector.broadcast %cst_68 : f32 to vector<64x1xf32>
    %183 = arith.divf %181, %182 : vector<64x1xf32>
    %184 = vector.broadcast %183 : vector<64x1xf32> to vector<64x32xf32>
    %185 = arith.subf %177, %184 : vector<64x32xf32>
    %186 = arith.mulf %185, %185 : vector<64x32xf32>
    %cst_69 = arith.constant dense<0.000000e+00> : vector<64xf32>
    %187 = vector.multi_reduction <add>, %186, %cst_69 [1] : vector<64x32xf32> to vector<64xf32>
    %188 = vector.shape_cast %187 : vector<64xf32> to vector<64x1xf32>
    %cst_70 = arith.constant 3.200000e+01 : f32
    %189 = vector.broadcast %cst_70 : f32 to vector<64x1xf32>
    %190 = arith.divf %188, %189 : vector<64x1xf32>
    %191 = vector.broadcast %183 : vector<64x1xf32> to vector<64x32xf32>
    %192 = arith.subf %177, %191 : vector<64x32xf32>
    %cst_71 = arith.constant 9.99999974E-6 : f32
    %193 = vector.broadcast %cst_71 : f32 to vector<64x1xf32>
    %194 = arith.addf %190, %193 : vector<64x1xf32>
    %195 = math.rsqrt %194 : vector<64x1xf32>
    %196 = vector.broadcast %195 : vector<64x1xf32> to vector<64x32xf32>
    %197 = arith.mulf %192, %196 : vector<64x32xf32>
    %198 = vector.broadcast %178 : vector<1x32xf32> to vector<64x32xf32>
    %199 = arith.mulf %197, %198 : vector<64x32xf32>
    %200 = vector.broadcast %179 : vector<1x32xf32> to vector<64x32xf32>
    %201 = arith.addf %199, %200 : vector<64x32xf32>
    %202 = arith.truncf %201 : vector<64x32xf32> to vector<64x32xbf16>
    %c0_72 = arith.constant 0 : index
    %c0_73 = arith.constant 0 : index
    %203 = vector.load %arg10[%c0_72, %c0_73] : memref<32x128xbf16, #tpu.memory_space<vmem>>, vector<32x128xbf16>
    %cst_74 = arith.constant dense<0.000000e+00> : vector<64x128xf32>
    %204 = tpu.matmul %202, %203, %cst_74 {dimension_numbers = #tpu.dot_dimension_numbers<[1], [0], [0], [1], [0, 0, 1, 1], [], []>} : vector<64x32xbf16>, vector<32x128xbf16>, vector<64x128xf32> -> vector<64x128xf32>
    %c0_75 = arith.constant 0 : index
    %c0_76 = arith.constant 0 : index
    %205 = vector.load %arg11[%c0_75, %c0_76] : memref<1x128xf32, #tpu.memory_space<vmem>>, vector<1x128xf32>
    %206 = vector.broadcast %205 : vector<1x128xf32> to vector<64x128xf32>
    %207 = arith.addf %204, %206 : vector<64x128xf32>
    %cst_77 = arith.constant 5.000000e-01 : f32
    %208 = vector.broadcast %cst_77 : f32 to vector<64x128xf32>
    %209 = arith.mulf %208, %207 : vector<64x128xf32>
    %cst_78 = arith.constant 4.471500e-02 : f32
    %210 = vector.broadcast %cst_78 : f32 to vector<64x128xf32>
    %211 = arith.mulf %210, %207 : vector<64x128xf32>
    %212 = arith.mulf %211, %207 : vector<64x128xf32>
    %213 = arith.mulf %212, %207 : vector<64x128xf32>
    %214 = arith.addf %207, %213 : vector<64x128xf32>
    %cst_79 = arith.constant 0.797884583 : f32
    %215 = vector.broadcast %cst_79 : f32 to vector<64x128xf32>
    %216 = arith.mulf %215, %214 : vector<64x128xf32>
    %217 = math.tanh %216 : vector<64x128xf32>
    %cst_80 = arith.constant 1.000000e+00 : f32
    %218 = vector.broadcast %cst_80 : f32 to vector<64x128xf32>
    %219 = arith.addf %218, %217 : vector<64x128xf32>
    %220 = arith.mulf %209, %219 : vector<64x128xf32>
    %221 = arith.truncf %220 : vector<64x128xf32> to vector<64x128xbf16>
    %c0_81 = arith.constant 0 : index
    %c0_82 = arith.constant 0 : index
    %222 = vector.load %arg12[%c0_81, %c0_82] : memref<128x32xbf16, #tpu.memory_space<vmem>>, vector<128x32xbf16>
    %cst_83 = arith.constant dense<0.000000e+00> : vector<64x32xf32>
    %223 = tpu.matmul %221, %222, %cst_83 {dimension_numbers = #tpu.dot_dimension_numbers<[1], [0], [0], [1], [0, 0, 1, 1], [], []>} : vector<64x128xbf16>, vector<128x32xbf16>, vector<64x32xf32> -> vector<64x32xf32>
    %c0_84 = arith.constant 0 : index
    %c0_85 = arith.constant 0 : index
    %224 = vector.load %arg13[%c0_84, %c0_85] : memref<1x32xf32, #tpu.memory_space<vmem>>, vector<1x32xf32>
    %225 = vector.broadcast %224 : vector<1x32xf32> to vector<64x32xf32>
    %226 = arith.addf %223, %225 : vector<64x32xf32>
    %227 = arith.addf %177, %226 : vector<64x32xf32>
    %228 = tpu.transpose %227, [1, 0] : vector<64x32xf32> -> vector<32x64xf32>
    %c0_86 = arith.constant 0 : index
    %c0_87 = arith.constant 0 : index
    %c0_88 = arith.constant 0 : index
    %229 = vector.load %arg14[%c0_86, %c0_87, %c0_88] : memref<1x32x64xf32, #tpu.memory_space<vmem>>, vector<1x32x64xf32>
    %230 = vector.shape_cast %229 : vector<1x32x64xf32> to vector<32x64xf32>
    %231 = vector.shape_cast %228 : vector<32x64xf32> to vector<1x32x64xf32>
    tpu.vector_store %arg14[%c0_86, %c0_87, %c0_88], %231 {strides = array<i32>} : memref<1x32x64xf32, #tpu.memory_space<vmem>>, vector<1x32x64xf32>,
    return
  }
  func.func @transform_0(%arg0: i32) -> (i32, i32, i32) {
    %c0_i32 = arith.constant 0 : i32
    %c0_i32_0 = arith.constant 0 : i32
    %c0_i32_1 = arith.constant 0 : i32
    return %arg0, %c0_i32, %c0_i32_0 : i32, i32, i32
  }
  func.func @transform_1(%arg0: i32) -> (i32, i32) {
    %c0_i32 = arith.constant 0 : i32
    %c0_i32_0 = arith.constant 0 : i32
    %c0_i32_1 = arith.constant 0 : i32
    return %c0_i32, %c0_i32_0 : i32, i32
  }
  func.func @transform_2(%arg0: i32) -> (i32, i32) {
    %c0_i32 = arith.constant 0 : i32
    %c0_i32_0 = arith.constant 0 : i32
    %c0_i32_1 = arith.constant 0 : i32
    return %c0_i32, %c0_i32_0 : i32, i32
  }
  func.func @transform_3(%arg0: i32) -> (i32, i32) {
    %c0_i32 = arith.constant 0 : i32
    %c0_i32_0 = arith.constant 0 : i32
    %c0_i32_1 = arith.constant 0 : i32
    return %c0_i32, %c0_i32_0 : i32, i32
  }
  func.func @transform_4(%arg0: i32) -> (i32, i32) {
    %c0_i32 = arith.constant 0 : i32
    %c0_i32_0 = arith.constant 0 : i32
    %c0_i32_1 = arith.constant 0 : i32
    return %c0_i32, %c0_i32_0 : i32, i32
  }
  func.func @transform_5(%arg0: i32) -> (i32, i32) {
    %c0_i32 = arith.constant 0 : i32
    %c0_i32_0 = arith.constant 0 : i32
    %c0_i32_1 = arith.constant 0 : i32
    return %c0_i32, %c0_i32_0 : i32, i32
  }
  func.func @transform_6(%arg0: i32) -> (i32, i32) {
    %c0_i32 = arith.constant 0 : i32
    %c0_i32_0 = arith.constant 0 : i32
    %c0_i32_1 = arith.constant 0 : i32
    return %c0_i32, %c0_i32_0 : i32, i32
  }
  func.func @transform_7(%arg0: i32) -> (i32, i32) {
    %c0_i32 = arith.constant 0 : i32
    %c0_i32_0 = arith.constant 0 : i32
    %c0_i32_1 = arith.constant 0 : i32
    return %c0_i32, %c0_i32_0 : i32, i32
  }
  func.func @transform_8(%arg0: i32) -> (i32, i32) {
    %c0_i32 = arith.constant 0 : i32
    %c0_i32_0 = arith.constant 0 : i32
    %c0_i32_1 = arith.constant 0 : i32
    return %c0_i32, %c0_i32_0 : i32, i32
  }
  func.func @transform_9(%arg0: i32) -> (i32, i32) {
    %c0_i32 = arith.constant 0 : i32
    %c0_i32_0 = arith.constant 0 : i32
    %c0_i32_1 = arith.constant 0 : i32
    return %c0_i32, %c0_i32_0 : i32, i32
  }
  func.func @transform_10(%arg0: i32) -> (i32, i32) {
    %c0_i32 = arith.constant 0 : i32
    %c0_i32_0 = arith.constant 0 : i32
    %c0_i32_1 = arith.constant 0 : i32
    return %c0_i32, %c0_i32_0 : i32, i32
  }
  func.func @transform_11(%arg0: i32) -> (i32, i32) {
    %c0_i32 = arith.constant 0 : i32
    %c0_i32_0 = arith.constant 0 : i32
    %c0_i32_1 = arith.constant 0 : i32
    return %c0_i32, %c0_i32_0 : i32, i32
  }
  func.func @transform_12(%arg0: i32) -> (i32, i32) {
    %c0_i32 = arith.constant 0 : i32
    %c0_i32_0 = arith.constant 0 : i32
    %c0_i32_1 = arith.constant 0 : i32
    return %c0_i32, %c0_i32_0 : i32, i32
  }
  func.func @transform_13(%arg0: i32) -> (i32, i32, i32) {
    %c0_i32 = arith.constant 0 : i32
    %c0_i32_0 = arith.constant 0 : i32
    %c0_i32_1 = arith.constant 0 : i32
    return %arg0, %c0_i32, %c0_i32_0 : i32, i32, i32
  }
}

</mosaic_0001>

<llo_original>
// kernel: transformer_block.1
$region0: #{transformer_block.1}
  #allocation0 [shape = 'u32[]', space=smem, size = 0x4, offset = 0x4, fixed_abs, tag = 'smem constant byte address 0x4 - core index']
  #allocation1 [shape = 'u32[72,128]{1,0:T(1,128)}', space=vmem, size = 0x9000, scoped, tag = 'internal scratch']
  #allocation2 [shape = 'f32[64,32]{1,0:T(8,128)}', space=vmem, size = 0x8000, scoped, tag = 'scratch operand']
  %s0 = inlined_call_operand.vmem [shape: f32[2,32,64], index: 0, kind: input, shape index: {}]
  %s1 = inlined_call_operand.vmem [shape: bf16[32,96], index: 1, kind: input, shape index: {}]
  %s2 = inlined_call_operand.vmem [shape: f32[1,96], index: 2, kind: input, shape index: {}]
  %s3 = inlined_call_operand.vmem [shape: bf16[32,32], index: 3, kind: input, shape index: {}]
  %s4 = inlined_call_operand.vmem [shape: f32[1,32], index: 4, kind: input, shape index: {}]
  %s5 = inlined_call_operand.vmem [shape: f32[1,32], index: 5, kind: input, shape index: {}]
  %s6 = inlined_call_operand.vmem [shape: f32[1,32], index: 6, kind: input, shape index: {}]
  %s7 = inlined_call_operand.vmem [shape: f32[1,32], index: 7, kind: input, shape index: {}]
  %s8 = inlined_call_operand.vmem [shape: f32[1,32], index: 8, kind: input, shape index: {}]
  %s9 = inlined_call_operand.vmem [shape: bf16[32,128], index: 9, kind: input, shape index: {}]
  %s10 = inlined_call_operand.vmem [shape: f32[1,128], index: 10, kind: input, shape index: {}]
  %s11 = inlined_call_operand.vmem [shape: bf16[128,32], index: 11, kind: input, shape index: {}]
  %s12 = inlined_call_operand.vmem [shape: f32[1,32], index: 12, kind: input, shape index: {}]
  %s13 = inlined_call_operand.vmem [shape: f32[2,32,64], index: 13, kind: output, shape index: {}]
  %s14 = sld [smem:[#allocation0]]
  $region85: #{transformer_block.1} parent=0
    _
  %s16 = ssub.s32 1, %s14
  %s17 = scalar_select 0, %s16, %s14
  loop: start=0, step=1, limit=4
  $region2: #{transformer_block.1} parent=0 // loop_pre_header
    _
  $region3: #{transformer_block.1} parent=0 // loop_header
    %s19 = sphi 0, %s23
    %p20 = scmp.ge.s32.totalorder %s19, 4
    %s29 = sphi 0, %s31
    %s32 = sphi 0, %s29
    %s33 = sphi 0, %s32
    %s49 = sphi 0, %s33
    %s53 = sphi 0, %s53
    %s55 = sphi 0, %s53
    %s56 = sphi 0, %s55
    %s70 = sphi 0, %s56
    %s74 = sphi 0, %s74
    %s76 = sphi 0, %s74
    %s77 = sphi 0, %s76
    %s91 = sphi 0, %s77
    %s95 = sphi 0, %s95
    %s97 = sphi 0, %s95
    %s98 = sphi 0, %s97
    %s112 = sphi 0, %s98
    %s116 = sphi 0, %s116
    %s118 = sphi 0, %s116
    %s119 = sphi 0, %s118
    %s133 = sphi 0, %s119
    %s137 = sphi 0, %s137
    %s139 = sphi 0, %s137
    %s140 = sphi 0, %s139
    %s154 = sphi 0, %s140
    %s158 = sphi 0, %s158
    %s160 = sphi 0, %s158
    %s161 = sphi 0, %s160
    %s175 = sphi 0, %s161
    %s179 = sphi 0, %s179
    %s181 = sphi 0, %s179
    %s182 = sphi 0, %s181
    %s196 = sphi 0, %s182
    %s200 = sphi 0, %s200
    %s202 = sphi 0, %s200
    %s203 = sphi 0, %s202
    %s217 = sphi 0, %s203
    %s221 = sphi 0, %s221
    %s223 = sphi 0, %s221
    %s224 = sphi 0, %s223
    %s238 = sphi 0, %s224
    %s242 = sphi 0, %s242
    %s244 = sphi 0, %s242
    %s245 = sphi 0, %s244
    %s259 = sphi 0, %s245
    %s263 = sphi 0, %s263
    %s265 = sphi 0, %s263
    %s266 = sphi 0, %s265
    %s280 = sphi 0, %s266
    %s284 = sphi 0, %s284
    %s286 = sphi 0, %s284
    %s287 = sphi 0, %s286
    %s301 = sphi 0, %s287
    %s307 = sphi 0, %s309
    %s310 = sphi 0, %s307
    %s311 = sphi 0, %s310
    %s327 = sphi 0, %s311
  $region4: #{transformer_block.1} parent=0 // loop_header_branch
    %22 = sbr.rel (%p20) target = $region8
  $region5: #{transformer_block.1} parent=0 // loop_body
    %s24 = ssub.s32 %s19, 1
    %s25 = ssub.s32 %s19, 2
    %s26 = sadd.s32 %s19, 1
    %s27 = ssub.s32 %s19, %s26
    %p28 = scmp.eq.s32.totalorder %s27, 0
    %s30 = sadd.s32 %s29, 1
    %s31 = scalar_select %p28, %s29, %s30
    %p34 = pneg %p28
    %p35 = scmp.eq.s32.totalorder %s19, 1
    %p36 = por %p34, %p35
    %p37 = scmp.ne.s32.totalorder %s29, %s32
    %p38 = scmp.eq.s32.totalorder %s19, 0
    %p39 = por %p37, %p38
    %p40 = scmp.ne.s32.totalorder %s29, %s32
    %p41 = scmp.eq.s32.totalorder %s24, 1
    %p42 = por %p40, %p41
    %p43 = scmp.ne.s32.totalorder %s32, %s33
    %p44 = scmp.eq.s32.totalorder %s24, 0
    %p45 = por %p43, %p44
    %p46 = scmp.ne.s32.totalorder %s32, %s33
    %p47 = scmp.eq.s32.totalorder %s25, 1
    %p48 = por %p46, %p47
    %p50 = scmp.ne.s32.totalorder %s33, %s49
    %p51 = scmp.eq.s32.totalorder %s25, 0
    %p52 = por %p50, %p51
    %s54 = sadd.s32 %s53, 1
    %p57 = scmp.eq.s32.totalorder %s19, 1
    %p58 = scmp.ne.s32.totalorder %s53, %s55
    %p59 = scmp.eq.s32.totalorder %s19, 0
    %p60 = por %p58, %p59
    %p61 = scmp.ne.s32.totalorder %s53, %s55
    %p62 = scmp.eq.s32.totalorder %s24, 1
    %p63 = por %p61, %p62
    %p64 = scmp.ne.s32.totalorder %s55, %s56
    %p65 = scmp.eq.s32.totalorder %s24, 0
    %p66 = por %p64, %p65
    %p67 = scmp.ne.s32.totalorder %s55, %s56
    %p68 = scmp.eq.s32.totalorder %s25, 1
    %p69 = por %p67, %p68
    %p71 = scmp.ne.s32.totalorder %s56, %s70
    %p72 = scmp.eq.s32.totalorder %s25, 0
    %p73 = por %p71, %p72
    %s75 = sadd.s32 %s74, 1
    %p78 = scmp.eq.s32.totalorder %s19, 1
    %p79 = scmp.ne.s32.totalorder %s74, %s76
    %p80 = scmp.eq.s32.totalorder %s19, 0
    %p81 = por %p79, %p80
    %p82 = scmp.ne.s32.totalorder %s74, %s76
    %p83 = scmp.eq.s32.totalorder %s24, 1
    %p84 = por %p82, %p83
    %p85 = scmp.ne.s32.totalorder %s76, %s77
    %p86 = scmp.eq.s32.totalorder %s24, 0
    %p87 = por %p85, %p86
    %p88 = scmp.ne.s32.totalorder %s76, %s77
    %p89 = scmp.eq.s32.totalorder %s25, 1
    %p90 = por %p88, %p89
    %p92 = scmp.ne.s32.totalorder %s77, %s91
    %p93 = scmp.eq.s32.totalorder %s25, 0
    %p94 = por %p92, %p93
    %s96 = sadd.s32 %s95, 1
    %p99 = scmp.eq.s32.totalorder %s19, 1
    %p100 = scmp.ne.s32.totalorder %s95, %s97
    %p101 = scmp.eq.s32.totalorder %s19, 0
    %p102 = por %p100, %p101
    %p103 = scmp.ne.s32.totalorder %s95, %s97
    %p104 = scmp.eq.s32.totalorder %s24, 1
    %p105 = por %p103, %p104
    %p106 = scmp.ne.s32.totalorder %s97, %s98
    %p107 = scmp.eq.s32.totalorder %s24, 0
    %p108 = por %p106, %p107
    %p109 = scmp.ne.s32.totalorder %s97, %s98
    %p110 = scmp.eq.s32.totalorder %s25, 1
    %p111 = por %p109, %p110
    %p113 = scmp.ne.s32.totalorder %s98, %s112
    %p114 = scmp.eq.s32.totalorder %s25, 0
    %p115 = por %p113, %p114
    %s117 = sadd.s32 %s116, 1
    %p120 = scmp.eq.s32.totalorder %s19, 1
    %p121 = scmp.ne.s32.totalorder %s116, %s118
    %p122 = scmp.eq.s32.totalorder %s19, 0
    %p123 = por %p121, %p122
    %p124 = scmp.ne.s32.totalorder %s116, %s118
    %p125 = scmp.eq.s32.totalorder %s24, 1
    %p126 = por %p124, %p125
    %p127 = scmp.ne.s32.totalorder %s118, %s119
    %p128 = scmp.eq.s32.totalorder %s24, 0
    %p129 = por %p127, %p128
    %p130 = scmp.ne.s32.totalorder %s118, %s119
    %p131 = scmp.eq.s32.totalorder %s25, 1
    %p132 = por %p130, %p131
    %p134 = scmp.ne.s32.totalorder %s119, %s133
    %p135 = scmp.eq.s32.totalorder %s25, 0
    %p136 = por %p134, %p135
    %s138 = sadd.s32 %s137, 1
    %p141 = scmp.eq.s32.totalorder %s19, 1
    %p142 = scmp.ne.s32.totalorder %s137, %s139
    %p143 = scmp.eq.s32.totalorder %s19, 0
    %p144 = por %p142, %p143
    %p145 = scmp.ne.s32.totalorder %s137, %s139
    %p146 = scmp.eq.s32.totalorder %s24, 1
    %p147 = por %p145, %p146
    %p148 = scmp.ne.s32.totalorder %s139, %s140
    %p149 = scmp.eq.s32.totalorder %s24, 0
    %p150 = por %p148, %p149
    %p151 = scmp.ne.s32.totalorder %s139, %s140
    %p152 = scmp.eq.s32.totalorder %s25, 1
    %p153 = por %p151, %p152
    %p155 = scmp.ne.s32.totalorder %s140, %s154
    %p156 = scmp.eq.s32.totalorder %s25, 0
    %p157 = por %p155, %p156
    %s159 = sadd.s32 %s158, 1
    %p162 = scmp.eq.s32.totalorder %s19, 1
    %p163 = scmp.ne.s32.totalorder %s158, %s160
    %p164 = scmp.eq.s32.totalorder %s19, 0
    %p165 = por %p163, %p164
    %p166 = scmp.ne.s32.totalorder %s158, %s160
    %p167 = scmp.eq.s32.totalorder %s24, 1
    %p168 = por %p166, %p167
    %p169 = scmp.ne.s32.totalorder %s160, %s161
    %p170 = scmp.eq.s32.totalorder %s24, 0
    %p171 = por %p169, %p170
    %p172 = scmp.ne.s32.totalorder %s160, %s161
    %p173 = scmp.eq.s32.totalorder %s25, 1
    %p174 = por %p172, %p173
    %p176 = scmp.ne.s32.totalorder %s161, %s175
    %p177 = scmp.eq.s32.totalorder %s25, 0
    %p178 = por %p176, %p177
    %s180 = sadd.s32 %s179, 1
    %p183 = scmp.eq.s32.totalorder %s19, 1
    %p184 = scmp.ne.s32.totalorder %s179, %s181
    %p185 = scmp.eq.s32.totalorder %s19, 0
    %p186 = por %p184, %p185
    %p187 = scmp.ne.s32.totalorder %s179, %s181
    %p188 = scmp.eq.s32.totalorder %s24, 1
    %p189 = por %p187, %p188
    %p190 = scmp.ne.s32.totalorder %s181, %s182
    %p191 = scmp.eq.s32.totalorder %s24, 0
    %p192 = por %p190, %p191
    %p193 = scmp.ne.s32.totalorder %s181, %s182
    %p194 = scmp.eq.s32.totalorder %s25, 1
    %p195 = por %p193, %p194
    %p197 = scmp.ne.s32.totalorder %s182, %s196
    %p198 = scmp.eq.s32.totalorder %s25, 0
    %p199 = por %p197, %p198
    %s201 = sadd.s32 %s200, 1
    %p204 = scmp.eq.s32.totalorder %s19, 1
    %p205 = scmp.ne.s32.totalorder %s200, %s202
    %p206 = scmp.eq.s32.totalorder %s19, 0
    %p207 = por %p205, %p206
    %p208 = scmp.ne.s32.totalorder %s200, %s202
    %p209 = scmp.eq.s32.totalorder %s24, 1
    %p210 = por %p208, %p209
    %p211 = scmp.ne.s32.totalorder %s202, %s203
    %p212 = scmp.eq.s32.totalorder %s24, 0
    %p213 = por %p211, %p212
    %p214 = scmp.ne.s32.totalorder %s202, %s203
    %p215 = scmp.eq.s32.totalorder %s25, 1
    %p216 = por %p214, %p215
    %p218 = scmp.ne.s32.totalorder %s203, %s217
    %p219 = scmp.eq.s32.totalorder %s25, 0
    %p220 = por %p218, %p219
    %s222 = sadd.s32 %s221, 1
    %p225 = scmp.eq.s32.totalorder %s19, 1
    %p226 = scmp.ne.s32.totalorder %s221, %s223
    %p227 = scmp.eq.s32.totalorder %s19, 0
    %p228 = por %p226, %p227
    %p229 = scmp.ne.s32.totalorder %s221, %s223
    %p230 = scmp.eq.s32.totalorder %s24, 1
    %p231 = por %p229, %p230
    %p232 = scmp.ne.s32.totalorder %s223, %s224
    %p233 = scmp.eq.s32.totalorder %s24, 0
    %p234 = por %p232, %p233
    %p235 = scmp.ne.s32.totalorder %s223, %s224
    %p236 = scmp.eq.s32.totalorder %s25, 1
    %p237 = por %p235, %p236
    %p239 = scmp.ne.s32.totalorder %s224, %s238
    %p240 = scmp.eq.s32.totalorder %s25, 0
    %p241 = por %p239, %p240
    %s243 = sadd.s32 %s242, 1
    %p246 = scmp.eq.s32.totalorder %s19, 1
    %p247 = scmp.ne.s32.totalorder %s242, %s244
    %p248 = scmp.eq.s32.totalorder %s19, 0
    %p249 = por %p247, %p248
    %p250 = scmp.ne.s32.totalorder %s242, %s244
    %p251 = scmp.eq.s32.totalorder %s24, 1
    %p252 = por %p250, %p251
    %p253 = scmp.ne.s32.totalorder %s244, %s245
    %p254 = scmp.eq.s32.totalorder %s24, 0
    %p255 = por %p253, %p254
    %p256 = scmp.ne.s32.totalorder %s244, %s245
    %p257 = scmp.eq.s32.totalorder %s25, 1
    %p258 = por %p256, %p257
    %p260 = scmp.ne.s32.totalorder %s245, %s259
    %p261 = scmp.eq.s32.totalorder %s25, 0
    %p262 = por %p260, %p261
    %s264 = sadd.s32 %s263, 1
    %p267 = scmp.eq.s32.totalorder %s19, 1
    %p268 = scmp.ne.s32.totalorder %s263, %s265
    %p269 = scmp.eq.s32.totalorder %s19, 0
    %p270 = por %p268, %p269
    %p271 = scmp.ne.s32.totalorder %s263, %s265
    %p272 = scmp.eq.s32.totalorder %s24, 1
    %p273 = por %p271, %p272
    %p274 = scmp.ne.s32.totalorder %s265, %s266
    %p275 = scmp.eq.s32.totalorder %s24, 0
    %p276 = por %p274, %p275
    %p277 = scmp.ne.s32.totalorder %s265, %s266
    %p278 = scmp.eq.s32.totalorder %s25, 1
    %p279 = por %p277, %p278
    %p281 = scmp.ne.s32.totalorder %s266, %s280
    %p282 = scmp.eq.s32.totalorder %s25, 0
    %p283 = por %p281, %p282
    %s285 = sadd.s32 %s284, 1
    %p288 = scmp.eq.s32.totalorder %s19, 1
    %p289 = scmp.ne.s32.totalorder %s284, %s286
    %p290 = scmp.eq.s32.totalorder %s19, 0
    %p291 = por %p289, %p290
    %p292 = scmp.ne.s32.totalorder %s284, %s286
    %p293 = scmp.eq.s32.totalorder %s24, 1
    %p294 = por %p292, %p293
    %p295 = scmp.ne.s32.totalorder %s286, %s287
    %p296 = scmp.eq.s32.totalorder %s24, 0
    %p297 = por %p295, %p296
    %p298 = scmp.ne.s32.totalorder %s286, %s287
    %p299 = scmp.eq.s32.totalorder %s25, 1
    %p300 = por %p298, %p299
    %p302 = scmp.ne.s32.totalorder %s287, %s301
    %p303 = scmp.eq.s32.totalorder %s25, 0
    %p304 = por %p302, %p303
    %s305 = ssub.s32 %s19, %s26
    %p306 = scmp.eq.s32.totalorder %s305, 0
    %s308 = sadd.s32 %s307, 1
    %s309 = scalar_select %p306, %s307, %s308
    %p312 = pneg %p306
    %p313 = scmp.eq.s32.totalorder %s19, 1
    %p314 = por %p312, %p313
    %p315 = scmp.ne.s32.totalorder %s307, %s310
    %p316 = scmp.eq.s32.totalorder %s19, 0
    %p317 = por %p315, %p316
    %p318 = scmp.ne.s32.totalorder %s307, %s310
    %p319 = scmp.eq.s32.totalorder %s24, 1
    %p320 = por %p318, %p319
    %p321 = scmp.ne.s32.totalorder %s310, %s311
    %p322 = scmp.eq.s32.totalorder %s24, 0
    %p323 = por %p321, %p322
    %p324 = scmp.ne.s32.totalorder %s310, %s311
    %p325 = scmp.eq.s32.totalorder %s25, 1
    %p326 = por %p324, %p325
    %p328 = scmp.ne.s32.totalorder %s311, %s327
    %p329 = scmp.eq.s32.totalorder %s25, 0
    %p330 = por %p328, %p329
    %p331 = scmp.le.s32.totalorder 1, %s19
    %p332 = scmp.lt.s32.totalorder %s19, 3
    %p333 = pnand %p331, %p332
    %p334 = pneg %p333
    // Predicated region
    $region9: #{transformer_block.1} parent=5 // pred_check
      _
    $region10: #{transformer_block.1} parent=5 // pred_check_branch
      %336 = sbr.rel (%p333) target = $region12
    $region11: #{transformer_block.1} parent=5 // pred_region
      %s337 = ssub.s32 %s19, 1
      // Predicated region
      $region13: #{transformer_block.1} parent=11 // pred_check
        %p338 = pneg %p66
      $region14: #{transformer_block.1} parent=11 // pred_check_branch
        %340 = sbr.rel (%p338) target = $region16
      $region15: #{transformer_block.1} parent=11 // pred_region
        _
      $region16: #{transformer_block.1} parent=11 // pred_fallthru
        _
      // Predicated region
      $region17: #{transformer_block.1} parent=11 // pred_check
        %p341 = pneg %p87
      $region18: #{transformer_block.1} parent=11 // pred_check_branch
        %343 = sbr.rel (%p341) target = $region20
      $region19: #{transformer_block.1} parent=11 // pred_region
        _
      $region20: #{transformer_block.1} parent=11 // pred_fallthru
        _
      // Predicated region
      $region21: #{transformer_block.1} parent=11 // pred_check
        %p344 = pneg %p108
      $region22: #{transformer_block.1} parent=11 // pred_check_branch
        %346 = sbr.rel (%p344) target = $region24
      $region23: #{transformer_block.1} parent=11 // pred_region
        _
      $region24: #{transformer_block.1} parent=11 // pred_fallthru
        _
      // Predicated region
      $region25: #{transformer_block.1} parent=11 // pred_check
        %p347 = pneg %p129
      $region26: #{transformer_block.1} parent=11 // pred_check_branch
        %349 = sbr.rel (%p347) target = $region28
      $region27: #{transformer_block.1} parent=11 // pred_region
        _
      $region28: #{transformer_block.1} parent=11 // pred_fallthru
        _
      // Predicated region
      $region29: #{transformer_block.1} parent=11 // pred_check
        %p350 = pneg %p150
      $region30: #{transformer_block.1} parent=11 // pred_check_branch
        %352 = sbr.rel (%p350) target = $region32
      $region31: #{transformer_block.1} parent=11 // pred_region
        _
      $region32: #{transformer_block.1} parent=11 // pred_fallthru
        _
      // Predicated region
      $region33: #{transformer_block.1} parent=11 // pred_check
        %p353 = pneg %p171
      $region34: #{transformer_block.1} parent=11 // pred_check_branch
        %355 = sbr.rel (%p353) target = $region36
      $region35: #{transformer_block.1} parent=11 // pred_region
        _
      $region36: #{transformer_block.1} parent=11 // pred_fallthru
        _
      // Predicated region
      $region37: #{transformer_block.1} parent=11 // pred_check
        %p356 = pneg %p192
      $region38: #{transformer_block.1} parent=11 // pred_check_branch
        %358 = sbr.rel (%p356) target = $region40
      $region39: #{transformer_block.1} parent=11 // pred_region
        _
      $region40: #{transformer_block.1} parent=11 // pred_fallthru
        _
      // Predicated region
      $region41: #{transformer_block.1} parent=11 // pred_check
        %p359 = pneg %p213
      $region42: #{transformer_block.1} parent=11 // pred_check_branch
        %361 = sbr.rel (%p359) target = $region44
      $region43: #{transformer_block.1} parent=11 // pred_region
        _
      $region44: #{transformer_block.1} parent=11 // pred_fallthru
        _
      // Predicated region
      $region45: #{transformer_block.1} parent=11 // pred_check
        %p362 = pneg %p234
      $region46: #{transformer_block.1} parent=11 // pred_check_branch
        %364 = sbr.rel (%p362) target = $region48
      $region47: #{transformer_block.1} parent=11 // pred_region
        _
      $region48: #{transformer_block.1} parent=11 // pred_fallthru
        _
      // Predicated region
      $region49: #{transformer_block.1} parent=11 // pred_check
        %p365 = pneg %p255
      $region50: #{transformer_block.1} parent=11 // pred_check_branch
        %367 = sbr.rel (%p365) target = $region52
      $region51: #{transformer_block.1} parent=11 // pred_region
        _
      $region52: #{transformer_block.1} parent=11 // pred_fallthru
        _
      // Predicated region
      $region53: #{transformer_block.1} parent=11 // pred_check
        %p368 = pneg %p276
      $region54: #{transformer_block.1} parent=11 // pred_check_branch
        %370 = sbr.rel (%p368) target = $region56
      $region55: #{transformer_block.1} parent=11 // pred_region
        _
      $region56: #{transformer_block.1} parent=11 // pred_fallthru
        _
      // Predicated region
      $region57: #{transformer_block.1} parent=11 // pred_check
        %p371 = pneg %p297
      $region58: #{transformer_block.1} parent=11 // pred_check_branch
        %373 = sbr.rel (%p371) target = $region60
      $region59: #{transformer_block.1} parent=11 // pred_region
        _
      $region60: #{transformer_block.1} parent=11 // pred_fallthru
        _
    $region12: #{transformer_block.1} parent=5 // pred_fallthru
      _
    %p374 = scmp.lt.s32.totalorder %s19, 2
    // Predicated region
    $region61: #{transformer_block.1} parent=5 // pred_check
      %p375 = pneg %p374
    $region62: #{transformer_block.1} parent=5 // pred_check_branch
      %377 = sbr.rel (%p375) target = $region64
    $region63: #{transformer_block.1} parent=5 // pred_region
      // Predicated region
      $region65: #{transformer_block.1} parent=63 // pred_check
        %p378 = pneg %p39
      $region66: #{transformer_block.1} parent=63 // pred_check_branch
        %380 = sbr.rel (%p378) target = $region68
      $region67: #{transformer_block.1} parent=63 // pred_region
        %p381 = scmp.lt.s32.totalorder %s19, 1
        %s382 = scalar_select %p381, %s19, 1
        %s383 = smul.addr %s382, 4
        %s384 = smul.addr %s383, 8
        %s385 = scalar_lea.vmem %s0, %s384
      $region68: #{transformer_block.1} parent=63 // pred_fallthru
        _
    $region64: #{transformer_block.1} parent=5 // pred_fallthru
      _
    %p386 = scmp.le.s32.totalorder 1, %s19
    %p387 = scmp.lt.s32.totalorder %s19, 3
    %p388 = pnand %p386, %p387
    %p389 = pneg %p388
    // Predicated region
    $region69: #{transformer_block.1} parent=5 // pred_check
      _
    $region70: #{transformer_block.1} parent=5 // pred_check_branch
      %391 = sbr.rel (%p388) target = $region72
    $region71: #{transformer_block.1} parent=5 // pred_region
      %s392 = ssub.s32 %s19, 1
      %p393 = scmp.lt.s32.totalorder %s24, 1
      %s394 = scalar_select %p393, %s24, 1
      %s395 = smul.addr %s394, 4
      %s396 = smul.addr %s395, 8
      %s397 = scalar_lea.vmem %s0, %s396
      %p398 = pneg %p45
      %p399 = pneg %p42
      %p400 = pneg %p66
      %p401 = pneg %p63
      %p402 = pneg %p87
      %p403 = pneg %p84
      %p404 = pneg %p108
      %p405 = pneg %p105
      %p406 = pneg %p129
      %p407 = pneg %p126
      %p408 = pneg %p150
      %p409 = pneg %p147
      %p410 = pneg %p171
      %p411 = pneg %p168
      %p412 = pneg %p192
      %p413 = pneg %p189
      %p414 = pneg %p213
      %p415 = pneg %p210
      %p416 = pneg %p234
      %p417 = pneg %p231
      %p418 = pneg %p255
      %p419 = pneg %p252
      %p420 = pneg %p276
      %p421 = pneg %p273
      %p422 = pneg %p297
      %p423 = pneg %p294
      %p424 = pneg %p323
      %p425 = pneg %p320
      %p426 = scmp.lt.s32.totalorder %s24, 1
      %s427 = scalar_select %p426, %s24, 1
      %s428 = smul.addr %s427, 4
      %s429 = smul.addr %s428, 8
      %s430 = scalar_lea.vmem %s13, %s429
      %p431 = scmp.lt.s32.totalorder %s24, 1
      %s432 = scalar_select %p431, %s24, 1
      %s433 = smul.addr %s432, 4
      %s434 = smul.addr %s433, 8
      %s435 = scalar_lea.vmem %s0, %s434
      %p436 = scmp.lt.s32.totalorder %s24, 1
      %s437 = scalar_select %p436, %s24, 1
      %s438 = smul.addr %s437, 4
      %s439 = smul.addr %s438, 8
      %s440 = scalar_lea.vmem %s13, %s439
      %v442 = vld [vmem:[%s435] sm:$0xff]
      %v443 = vld [vmem:[%s435 + $0x8] sm:$0xff]
      %v444 = vld [vmem:[%s435 + $0x10] sm:$0xff]
      %v445 = vld [vmem:[%s435 + $0x18] sm:$0xff]
      %446 = vxpose.xlu0.b32.start [1/16] %v442, 128
      %447 = vxpose.xlu0.b32.cont [2/16] %v443, 128
      %448 = vxpose.xlu0.b32.cont [3/16] %v444, 128
      %449 = vxpose.xlu0.b32.cont [4/16] %v445, 128
      %450 = vxpose.xlu0.b32.cont [5/16] 0.0, 128
      %451 = vxpose.xlu0.b32.cont [6/16] 0.0, 128
      %452 = vxpose.xlu0.b32.cont [7/16] 0.0, 128
      %453 = vxpose.xlu0.b32.cont [8/16] 0.0, 128
      %454 = vxpose.xlu0.b32.cont [9/16] 0.0, 128
      %455 = vxpose.xlu0.b32.cont [10/16] 0.0, 128
      %456 = vxpose.xlu0.b32.cont [11/16] 0.0, 128
      %457 = vxpose.xlu0.b32.cont [12/16] 0.0, 128
      %458 = vxpose.xlu0.b32.cont [13/16] 0.0, 128
      %459 = vxpose.xlu0.b32.cont [14/16] 0.0, 128
      %460 = vxpose.xlu0.b32.cont [15/16] 0.0, 128
      %461 = vxpose.xlu0.b32.end [16/16] 0.0, 128
      %v462 = vpop.trf.xlu0
      %v463 = vpop.trf.xlu0
      %v464 = vpop.trf.xlu0
      %v465 = vpop.trf.xlu0
      %v466 = vpop.trf.xlu0
      %v467 = vpop.trf.xlu0
      %v468 = vpop.trf.xlu0
      %v469 = vpop.trf.xlu0
      %v470 = vpop.trf.xlu0
      %v471 = vpop.trf.xlu0
      %v472 = vpop.trf.xlu0
      %v473 = vpop.trf.xlu0
      %v474 = vpop.trf.xlu0
      %v475 = vpop.trf.xlu0
      %v476 = vpop.trf.xlu0
      %v477 = vpop.trf.xlu0
      %v478 = vld [vmem:[%s5] sm:$0x1]
      %v479 = vld [vmem:[%s6] sm:$0x1]
      %vm480 = vcmask 261120
      %v481 = vsel %vm480, %v462, 0.0
      %482 = vadd.xlane.f32.xlu0 %v481
      %v483 = vpop.xlane.xlu0 %482
      %v484 = vsel %vm480, %v463, 0.0
      %485 = vadd.xlane.f32.xlu0 %v484
      %v486 = vpop.xlane.xlu0 %485
      %v487 = vsel %vm480, %v464, 0.0
      %488 = vadd.xlane.f32.xlu0 %v487
      %v489 = vpop.xlane.xlu0 %488
      %v490 = vsel %vm480, %v465, 0.0
      %491 = vadd.xlane.f32.xlu0 %v490
      %v492 = vpop.xlane.xlu0 %491
      %v493 = vsel %vm480, %v466, 0.0
      %494 = vadd.xlane.f32.xlu0 %v493
      %v495 = vpop.xlane.xlu0 %494
      %v496 = vsel %vm480, %v467, 0.0
      %497 = vadd.xlane.f32.xlu0 %v496
      %v498 = vpop.xlane.xlu0 %497
      %v499 = vsel %vm480, %v468, 0.0
      %500 = vadd.xlane.f32.xlu0 %v499
      %v501 = vpop.xlane.xlu0 %500
      %v502 = vsel %vm480, %v469, 0.0
      %503 = vadd.xlane.f32.xlu0 %v502
      %v504 = vpop.xlane.xlu0 %503
      %v505 = vrcp.pop 32.0
      %v506 = vmul.f32 32.0, %v505
      %v507 = vsub.f32 1.0, %v506
      %v508 = vmul.f32 %v505, %v507
      %v509 = vadd.f32 %v505, %v508
      %vm510 = vweird.f32 %v505
      %v511 = vsel %vm510, %v505, %v509
      %v512 = vmul.f32 %v483, %v511
      %v513 = vmul.f32 %v486, %v511
      %v514 = vmul.f32 %v489, %v511
      %v515 = vmul.f32 %v492, %v511
      %v516 = vmul.f32 %v495, %v511
      %v517 = vmul.f32 %v498, %v511
      %v518 = vmul.f32 %v501, %v511
      %v519 = vmul.f32 %v504, %v511
      %v520 = vsub.f32 %v462, %v512
      %v521 = vsub.f32 %v463, %v513
      %v522 = vsub.f32 %v464, %v514
      %v523 = vsub.f32 %v465, %v515
      %v524 = vsub.f32 %v466, %v516
      %v525 = vsub.f32 %v467, %v517
      %v526 = vsub.f32 %v468, %v518
      %v527 = vsub.f32 %v469, %v519
      %v528 = vmul.f32 %v520, %v520
      %v529 = vmul.f32 %v521, %v521
      %v530 = vmul.f32 %v522, %v522
      %v531 = vmul.f32 %v523, %v523
      %v532 = vmul.f32 %v524, %v524
      %v533 = vmul.f32 %v525, %v525
      %v534 = vmul.f32 %v526, %v526
      %v535 = vmul.f32 %v527, %v527
      %v536 = vsel %vm480, %v528, 0.0
      %537 = vadd.xlane.f32.xlu0 %v536
      %v538 = vpop.xlane.xlu0 %537
      %v539 = vsel %vm480, %v529, 0.0
      %540 = vadd.xlane.f32.xlu0 %v539
      %v541 = vpop.xlane.xlu0 %540
      %v542 = vsel %vm480, %v530, 0.0
      %543 = vadd.xlane.f32.xlu0 %v542
      %v544 = vpop.xlane.xlu0 %543
      %v545 = vsel %vm480, %v531, 0.0
      %546 = vadd.xlane.f32.xlu0 %v545
      %v547 = vpop.xlane.xlu0 %546
      %v548 = vsel %vm480, %v532, 0.0
      %549 = vadd.xlane.f32.xlu0 %v548
      %v550 = vpop.xlane.xlu0 %549
      %v551 = vsel %vm480, %v533, 0.0
      %552 = vadd.xlane.f32.xlu0 %v551
      %v553 = vpop.xlane.xlu0 %552
      %v554 = vsel %vm480, %v534, 0.0
      %555 = vadd.xlane.f32.xlu0 %v554
      %v556 = vpop.xlane.xlu0 %555
      %v557 = vsel %vm480, %v535, 0.0
      %558 = vadd.xlane.f32.xlu0 %v557
      %v559 = vpop.xlane.xlu0 %558
      %v560 = vmul.f32 %v538, %v511
      %v561 = vmul.f32 %v541, %v511
      %v562 = vmul.f32 %v544, %v511
      %v563 = vmul.f32 %v547, %v511
      %v564 = vmul.f32 %v550, %v511
      %v565 = vmul.f32 %v553, %v511
      %v566 = vmul.f32 %v556, %v511
      %v567 = vmul.f32 %v559, %v511
      %v568 = vadd.f32 %v560, 1e-05
      %v569 = vadd.f32 %v561, 1e-05
      %v570 = vadd.f32 %v562, 1e-05
      %v571 = vadd.f32 %v563, 1e-05
      %v572 = vadd.f32 %v564, 1e-05
      %v573 = vadd.f32 %v565, 1e-05
      %v574 = vadd.f32 %v566, 1e-05
      %v575 = vadd.f32 %v567, 1e-05
      %v576 = vrsqrt.pop %v568
      %v577 = vmul.f32 %v576, %v568
      %v578 = vmul.f32 %v577, %v576
      %v579 = vmul.f32 0.5, %v578
      %v580 = vsub.f32 1.5, %v579
      %v581 = vmul.f32 %v576, %v580
      %vm582 = vweird.f32 %v568
      %vm583 = vweird.f32 %v576
      %vm584 = vmor %vm582, %vm583
      %v585 = vsel %vm584, %v576, %v581
      %v586 = vrsqrt.pop %v569
      %v587 = vmul.f32 %v586, %v569
      %v588 = vmul.f32 %v587, %v586
      %v589 = vmul.f32 0.5, %v588
      %v590 = vsub.f32 1.5, %v589
      %v591 = vmul.f32 %v586, %v590
      %vm592 = vweird.f32 %v569
      %vm593 = vweird.f32 %v586
      %vm594 = vmor %vm592, %vm593
      %v595 = vsel %vm594, %v586, %v591
      %v596 = vrsqrt.pop %v570
      %v597 = vmul.f32 %v596, %v570
      %v598 = vmul.f32 %v597, %v596
      %v599 = vmul.f32 0.5, %v598
      %v600 = vsub.f32 1.5, %v599
      %v601 = vmul.f32 %v596, %v600
      %vm602 = vweird.f32 %v570
      %vm603 = vweird.f32 %v596
      %vm604 = vmor %vm602, %vm603
      %v605 = vsel %vm604, %v596, %v601
      %v606 = vrsqrt.pop %v571
      %v607 = vmul.f32 %v606, %v571
      %v608 = vmul.f32 %v607, %v606
      %v609 = vmul.f32 0.5, %v608
      %v610 = vsub.f32 1.5, %v609
      %v611 = vmul.f32 %v606, %v610
      %vm612 = vweird.f32 %v571
      %vm613 = vweird.f32 %v606
      %vm614 = vmor %vm612, %vm613
      %v615 = vsel %vm614, %v606, %v611
      %v616 = vrsqrt.pop %v572
      %v617 = vmul.f32 %v616, %v572
      %v618 = vmul.f32 %v617, %v616
      %v619 = vmul.f32 0.5, %v618
      %v620 = vsub.f32 1.5, %v619
      %v621 = vmul.f32 %v616, %v620
      %vm622 = vweird.f32 %v572
      %vm623 = vweird.f32 %v616
      %vm624 = vmor %vm622, %vm623
      %v625 = vsel %vm624, %v616, %v621
      %v626 = vrsqrt.pop %v573
      %v627 = vmul.f32 %v626, %v573
      %v628 = vmul.f32 %v627, %v626
      %v629 = vmul.f32 0.5, %v628
      %v630 = vsub.f32 1.5, %v629
      %v631 = vmul.f32 %v626, %v630
      %vm632 = vweird.f32 %v573
      %vm633 = vweird.f32 %v626
      %vm634 = vmor %vm632, %vm633
      %v635 = vsel %vm634, %v626, %v631
      %v636 = vrsqrt.pop %v574
      %v637 = vmul.f32 %v636, %v574
      %v638 = vmul.f32 %v637, %v636
      %v639 = vmul.f32 0.5, %v638
      %v640 = vsub.f32 1.5, %v639
      %v641 = vmul.f32 %v636, %v640
      %vm642 = vweird.f32 %v574
      %vm643 = vweird.f32 %v636
      %vm644 = vmor %vm642, %vm643
      %v645 = vsel %vm644, %v636, %v641
      %v646 = vrsqrt.pop %v575
      %v647 = vmul.f32 %v646, %v575
      %v648 = vmul.f32 %v647, %v646
      %v649 = vmul.f32 0.5, %v648
      %v650 = vsub.f32 1.5, %v649
      %v651 = vmul.f32 %v646, %v650
      %vm652 = vweird.f32 %v575
      %vm653 = vweird.f32 %v646
      %vm654 = vmor %vm652, %vm653
      %v655 = vsel %vm654, %v646, %v651
      %v656 = vmul.f32 %v520, %v585
      %v657 = vmul.f32 %v521, %v595
      %v658 = vmul.f32 %v522, %v605
      %v659 = vmul.f32 %v523, %v615
      %v660 = vmul.f32 %v524, %v625
      %v661 = vmul.f32 %v525, %v635
      %v662 = vmul.f32 %v526, %v645
      %v663 = vmul.f32 %v527, %v655
      %v665 = vperm.slane %v478, 0
      %v667 = vmul.f32 %v656, %v665
      %v668 = vmul.f32 %v657, %v665
      %v669 = vmul.f32 %v658, %v665
      %v670 = vmul.f32 %v659, %v665
      %v671 = vmul.f32 %v660, %v665
      %v672 = vmul.f32 %v661, %v665
      %v673 = vmul.f32 %v662, %v665
      %v674 = vmul.f32 %v663, %v665
      %v676 = vperm.slane %v479, 0
      %v678 = vadd.f32 %v667, %v676
      %v679 = vadd.f32 %v668, %v676
      %v680 = vadd.f32 %v669, %v676
      %v681 = vadd.f32 %v670, %v676
      %v682 = vadd.f32 %v671, %v676
      %v683 = vadd.f32 %v672, %v676
      %v684 = vadd.f32 %v673, %v676
      %v685 = vadd.f32 %v674, %v676
      %v686 = vpack.c.bf16 %v679, %v678
      %v687 = vpack.c.bf16 %v681, %v680
      %v688 = vpack.c.bf16 %v683, %v682
      %v689 = vpack.c.bf16 %v685, %v684
      %v690 = vld [vmem:[%s1] sm:$0xf]
      %v691 = vld [vmem:[%s1 + $0x4] sm:$0xf]
      %v692 = vld [vmem:[%s1 + $0x8] sm:$0xf]
      %v693 = vld [vmem:[%s1 + $0xc] sm:$0xf]
      %v694 = vld [vmem:[%s2] sm:$0x1]
      %v696 = vperm.slane %v694, 0
      %v702 = vunpack.c.l.b16 %v690
      %v703 = vunpack.c.l.b16 %v691
      %v704 = vunpack.c.l.b16 %v692
      %v705 = vunpack.c.l.b16 %v693
      %v706 = vpack.c.b16 %v703, %v702
      %v707 = vpack.c.b16 %v705, %v704
      %v711 = vsel %vm480, %v686, 0
      %v714 = vsel %vm480, %v687, 0
      %v717 = vsel %vm480, %v688, 0
      %v720 = vsel %vm480, %v689, 0
      %722 = vmatpush.bf16.msra.mxu0 0
      %723 = vmatpush.bf16.msra.mxu0 0
      %724 = vmatpush.bf16.msra.mxu0 0
      %725 = vmatpush.bf16.msra.mxu0 0
      %726 = vmatpush.bf16.msra.mxu0 0
      %727 = vmatpush.bf16.msra.mxu0 0
      %728 = vmatpush.bf16.msra.mxu0 %v707
      %729 = vmatpush.bf16.msra.mxu0 %v706
      %730 = vmatmul.bf16.gmra.mxu0 %v711
      %v731 = vpop.f32.mrf.mxu0
      %v732 = vadd.f32 %v696, %v731
      %v733 = vpop.f32.mrf.mxu0
      %v734 = vadd.f32 %v696, %v733
      %735 = vmatmul.bf16.gmra.mxu0 %v714
      %v736 = vpop.f32.mrf.mxu0
      %v737 = vadd.f32 %v696, %v736
      %v738 = vpop.f32.mrf.mxu0
      %v739 = vadd.f32 %v696, %v738
      %740 = vmatmul.bf16.gmra.mxu0 %v717
      %v741 = vpop.f32.mrf.mxu0
      %v742 = vadd.f32 %v696, %v741
      %v743 = vpop.f32.mrf.mxu0
      %v744 = vadd.f32 %v696, %v743
      %745 = vmatmul.bf16.gmra.mxu0 %v720
      %v746 = vpop.f32.mrf.mxu0
      %v747 = vadd.f32 %v696, %v746
      %v748 = vpop.f32.mrf.mxu0
      %v749 = vadd.f32 %v696, %v748
      %750 = vdwg.mxu0
      %v751 = vpack.c.bf16 %v732, %v732
      %v752 = vpack.c.bf16 %v734, %v734
      %v753 = vpack.c.bf16 %v737, %v737
      %v754 = vpack.c.bf16 %v739, %v739
      %v755 = vpack.c.bf16 %v742, %v742
      %v756 = vpack.c.bf16 %v744, %v744
      %v757 = vpack.c.bf16 %v747, %v747
      %v758 = vpack.c.bf16 %v749, %v749
      %v767 = vunpack.c.l.b16 %v751
      %v768 = vunpack.c.l.b16 %v752
      %v769 = vunpack.c.l.b16 %v753
      %v770 = vunpack.c.l.b16 %v754
      %v771 = vunpack.c.l.b16 %v755
      %v772 = vunpack.c.l.b16 %v756
      %v773 = vunpack.c.l.b16 %v757
      %v774 = vunpack.c.l.b16 %v758
      %v775 = vpack.c.b16 %v768, %v767
      %v776 = vpack.c.b16 %v770, %v769
      %v777 = vpack.c.b16 %v772, %v771
      %v778 = vpack.c.b16 %v774, %v773
      %779 = vrot.lane.b32.xlu0 %v775, 96
      %v780 = vpop.permute.xlu0 %779
      %781 = vrot.lane.b32.xlu0 %v776, 96
      %v782 = vpop.permute.xlu0 %781
      %783 = vrot.lane.b32.xlu0 %v777, 96
      %v784 = vpop.permute.xlu0 %783
      %785 = vrot.lane.b32.xlu0 %v778, 96
      %v786 = vpop.permute.xlu0 %785
      %vm787 = vcmask 31744
      %v789 = vsel %vm787, %v775, 0
      %v792 = vsel %vm787, %v776, 0
      %v795 = vsel %vm787, %v777, 0
      %v798 = vsel %vm787, %v778, 0
      %v801 = vsel %vm787, %v780, 0
      %v804 = vsel %vm787, %v782, 0
      %v807 = vsel %vm787, %v784, 0
      %v810 = vsel %vm787, %v786, 0
      %812 = vmatpush.bf16.xpose.msra.mxu0 0
      %813 = vmatpush.bf16.xpose.msra.mxu0 0
      %814 = vmatpush.bf16.xpose.msra.mxu0 0
      %815 = vmatpush.bf16.xpose.msra.mxu0 0
      %816 = vmatpush.bf16.xpose.msra.mxu0 %v810
      %817 = vmatpush.bf16.xpose.msra.mxu0 %v807
      %818 = vmatpush.bf16.xpose.msra.mxu0 %v804
      %819 = vmatpush.bf16.xpose.msra.mxu0 %v801
      %820 = vmatmul.bf16.gmra.mxu0 %v789
      %v821 = vpop.f32.mrf.mxu0
      %v822 = vadd.f32 0.0, %v821
      %v823 = vpop.f32.mrf.mxu0
      %v824 = vadd.f32 0.0, %v823
      %825 = vmatmul.bf16.gmra.mxu0 %v792
      %v826 = vpop.f32.mrf.mxu0
      %v827 = vadd.f32 0.0, %v826
      %v828 = vpop.f32.mrf.mxu0
      %v829 = vadd.f32 0.0, %v828
      %830 = vmatmul.bf16.gmra.mxu0 %v795
      %v831 = vpop.f32.mrf.mxu0
      %v832 = vadd.f32 0.0, %v831
      %v833 = vpop.f32.mrf.mxu0
      %v834 = vadd.f32 0.0, %v833
      %835 = vmatmul.bf16.gmra.mxu0 %v798
      %v836 = vpop.f32.mrf.mxu0
      %v837 = vadd.f32 0.0, %v836
      %v838 = vpop.f32.mrf.mxu0
      %v839 = vadd.f32 0.0, %v838
      %840 = vdwg.mxu0
      %vm841 = vcmask 523264
      %v842 = vsel %vm841, %v822, -inf
      %843 = vmax.xlane.f32.xlu0 %v842
      %v844 = vpop.xlane.xlu0 %843
      %v845 = vsel %vm841, %v824, -inf
      %846 = vmax.xlane.f32.xlu0 %v845
      %v847 = vpop.xlane.xlu0 %846
      %v848 = vsel %vm841, %v827, -inf
      %849 = vmax.xlane.f32.xlu0 %v848
      %v850 = vpop.xlane.xlu0 %849
      %v851 = vsel %vm841, %v829, -inf
      %852 = vmax.xlane.f32.xlu0 %v851
      %v853 = vpop.xlane.xlu0 %852
      %v854 = vsel %vm841, %v832, -inf
      %855 = vmax.xlane.f32.xlu0 %v854
      %v856 = vpop.xlane.xlu0 %855
      %v857 = vsel %vm841, %v834, -inf
      %858 = vmax.xlane.f32.xlu0 %v857
      %v859 = vpop.xlane.xlu0 %858
      %v860 = vsel %vm841, %v837, -inf
      %861 = vmax.xlane.f32.xlu0 %v860
      %v862 = vpop.xlane.xlu0 %861
      %v863 = vsel %vm841, %v839, -inf
      %864 = vmax.xlane.f32.xlu0 %v863
      %v865 = vpop.xlane.xlu0 %864
      %v866 = vsub.f32 %v822, %v844
      %v867 = vsub.f32 %v824, %v847
      %v868 = vsub.f32 %v827, %v850
      %v869 = vsub.f32 %v829, %v853
      %v870 = vsub.f32 %v832, %v856
      %v871 = vsub.f32 %v834, %v859
      %v872 = vsub.f32 %v837, %v862
      %v873 = vsub.f32 %v839, %v865
      %v874 = vmul.f32 %v866, 1.442695
      %v875 = vpow.pop %v874
      %v876 = vmul.f32 %v867, 1.442695
      %v877 = vpow.pop %v876
      %v878 = vmul.f32 %v868, 1.442695
      %v879 = vpow.pop %v878
      %v880 = vmul.f32 %v869, 1.442695
      %v881 = vpow.pop %v880
      %v882 = vmul.f32 %v870, 1.442695
      %v883 = vpow.pop %v882
      %v884 = vmul.f32 %v871, 1.442695
      %v885 = vpow.pop %v884
      %v886 = vmul.f32 %v872, 1.442695
      %v887 = vpow.pop %v886
      %v888 = vmul.f32 %v873, 1.442695
      %v889 = vpow.pop %v888
      %v890 = vsel %vm841, %v875, 0.0
      %891 = vadd.xlane.f32.xlu0 %v890
      %v892 = vpop.xlane.xlu0 %891
      %v893 = vsel %vm841, %v877, 0.0
      %894 = vadd.xlane.f32.xlu0 %v893
      %v895 = vpop.xlane.xlu0 %894
      %v896 = vsel %vm841, %v879, 0.0
      %897 = vadd.xlane.f32.xlu0 %v896
      %v898 = vpop.xlane.xlu0 %897
      %v899 = vsel %vm841, %v881, 0.0
      %900 = vadd.xlane.f32.xlu0 %v899
      %v901 = vpop.xlane.xlu0 %900
      %v902 = vsel %vm841, %v883, 0.0
      %903 = vadd.xlane.f32.xlu0 %v902
      %v904 = vpop.xlane.xlu0 %903
      %v905 = vsel %vm841, %v885, 0.0
      %906 = vadd.xlane.f32.xlu0 %v905
      %v907 = vpop.xlane.xlu0 %906
      %v908 = vsel %vm841, %v887, 0.0
      %909 = vadd.xlane.f32.xlu0 %v908
      %v910 = vpop.xlane.xlu0 %909
      %v911 = vsel %vm841, %v889, 0.0
      %912 = vadd.xlane.f32.xlu0 %v911
      %v913 = vpop.xlane.xlu0 %912
      %v914 = vrcp.pop %v892
      %v915 = vrcp.pop %v895
      %v916 = vrcp.pop %v898
      %v917 = vrcp.pop %v901
      %v918 = vrcp.pop %v904
      %v919 = vrcp.pop %v907
      %v920 = vrcp.pop %v910
      %v921 = vrcp.pop %v913
      %v922 = vmul.f32 %v875, %v914
      %v923 = vmul.f32 %v877, %v915
      %v924 = vmul.f32 %v879, %v916
      %v925 = vmul.f32 %v881, %v917
      %v926 = vmul.f32 %v883, %v918
      %v927 = vmul.f32 %v885, %v919
      %v928 = vmul.f32 %v887, %v920
      %v929 = vmul.f32 %v889, %v921
      %v930 = vpack.c.bf16 %v923, %v922
      %v931 = vpack.c.bf16 %v925, %v924
      %v932 = vpack.c.bf16 %v927, %v926
      %v933 = vpack.c.bf16 %v929, %v928
      %934 = vrot.lane.b32.xlu0 %v775, 64
      %v935 = vpop.permute.xlu0 %934
      %936 = vrot.lane.b32.xlu0 %v776, 64
      %v937 = vpop.permute.xlu0 %936
      %938 = vrot.lane.b32.xlu0 %v777, 64
      %v939 = vpop.permute.xlu0 %938
      %940 = vrot.lane.b32.xlu0 %v778, 64
      %v941 = vpop.permute.xlu0 %940
      %v947 = vsel %vm841, %v930, 0
      %v950 = vsel %vm841, %v931, 0
      %v953 = vsel %vm841, %v932, 0
      %v956 = vsel %vm841, %v933, 0
      %958 = vmatpush.bf16.msra.mxu0 0
      %959 = vmatpush.bf16.msra.mxu0 0
      %960 = vmatpush.bf16.msra.mxu0 0
      %961 = vmatpush.bf16.msra.mxu0 0
      %962 = vmatpush.bf16.msra.mxu0 %v941
      %963 = vmatpush.bf16.msra.mxu0 %v939
      %964 = vmatpush.bf16.msra.mxu0 %v937
      %965 = vmatpush.bf16.msra.mxu0 %v935
      %966 = vmatmul.bf16.gmra.mxu0 %v947
      %v967 = vpop.f32.mrf.mxu0
      %v968 = vadd.f32 0.0, %v967
      %v969 = vpop.f32.mrf.mxu0
      %v970 = vadd.f32 0.0, %v969
      %971 = vmatmul.bf16.gmra.mxu0 %v950
      %v972 = vpop.f32.mrf.mxu0
      %v973 = vadd.f32 0.0, %v972
      %v974 = vpop.f32.mrf.mxu0
      %v975 = vadd.f32 0.0, %v974
      %976 = vmatmul.bf16.gmra.mxu0 %v953
      %v977 = vpop.f32.mrf.mxu0
      %v978 = vadd.f32 0.0, %v977
      %v979 = vpop.f32.mrf.mxu0
      %v980 = vadd.f32 0.0, %v979
      %981 = vmatmul.bf16.gmra.mxu0 %v956
      %v982 = vpop.f32.mrf.mxu0
      %v983 = vadd.f32 0.0, %v982
      %v984 = vpop.f32.mrf.mxu0
      %v985 = vadd.f32 0.0, %v984
      %986 = vdwg.mxu0
      %987 = vst.msk [vmem:[#allocation2] sm:$0xff] %vm787, %v968
      %988 = vst.msk [vmem:[#allocation2 + $0x8] sm:$0xff] %vm787, %v970
      %989 = vst.msk [vmem:[#allocation2 + $0x10] sm:$0xff] %vm787, %v973
      %990 = vst.msk [vmem:[#allocation2 + $0x18] sm:$0xff] %vm787, %v975
      %991 = vst.msk [vmem:[#allocation2 + $0x20] sm:$0xff] %vm787, %v978
      %992 = vst.msk [vmem:[#allocation2 + $0x28] sm:$0xff] %vm787, %v980
      %993 = vst.msk [vmem:[#allocation2 + $0x30] sm:$0xff] %vm787, %v983
      %994 = vst.msk [vmem:[#allocation2 + $0x38] sm:$0xff] %vm787, %v985
      %995 = vrot.lane.b32.xlu0 %v775, 124
      %v996 = vpop.permute.xlu0 %995
      %997 = vrot.lane.b32.xlu0 %v776, 124
      %v998 = vpop.permute.xlu0 %997
      %999 = vrot.lane.b32.xlu0 %v777, 124
      %v1000 = vpop.permute.xlu0 %999
      %1001 = vrot.lane.b32.xlu0 %v778, 124
      %v1002 = vpop.permute.xlu0 %1001
      %1003 = vrot.lane.b32.xlu0 %v775, 92
      %v1004 = vpop.permute.xlu0 %1003
      %1005 = vrot.lane.b32.xlu0 %v776, 92
      %v1006 = vpop.permute.xlu0 %1005
      %1007 = vrot.lane.b32.xlu0 %v777, 92
      %v1008 = vpop.permute.xlu0 %1007
      %1009 = vrot.lane.b32.xlu0 %v778, 92
      %v1010 = vpop.permute.xlu0 %1009
      %v1012 = vsel %vm787, %v996, 0
      %v1015 = vsel %vm787, %v998, 0
      %v1018 = vsel %vm787, %v1000, 0
      %v1021 = vsel %vm787, %v1002, 0
      %v1024 = vsel %vm787, %v1004, 0
      %v1027 = vsel %vm787, %v1006, 0
      %v1030 = vsel %vm787, %v1008, 0
      %v1033 = vsel %vm787, %v1010, 0
      %1035 = vmatpush.bf16.xpose.msra.mxu0 0
      %1036 = vmatpush.bf16.xpose.msra.mxu0 0
      %1037 = vmatpush.bf16.xpose.msra.mxu0 0
      %1038 = vmatpush.bf16.xpose.msra.mxu0 0
      %1039 = vmatpush.bf16.xpose.msra.mxu0 %v1033
      %1040 = vmatpush.bf16.xpose.msra.mxu0 %v1030
      %1041 = vmatpush.bf16.xpose.msra.mxu0 %v1027
      %1042 = vmatpush.bf16.xpose.msra.mxu0 %v1024
      %1043 = vmatmul.bf16.gmra.mxu0 %v1012
      %v1044 = vpop.f32.mrf.mxu0
      %v1045 = vadd.f32 0.0, %v1044
      %v1046 = vpop.f32.mrf.mxu0
      %v1047 = vadd.f32 0.0, %v1046
      %1048 = vmatmul.bf16.gmra.mxu0 %v1015
      %v1049 = vpop.f32.mrf.mxu0
      %v1050 = vadd.f32 0.0, %v1049
      %v1051 = vpop.f32.mrf.mxu0
      %v1052 = vadd.f32 0.0, %v1051
      %1053 = vmatmul.bf16.gmra.mxu0 %v1018
      %v1054 = vpop.f32.mrf.mxu0
      %v1055 = vadd.f32 0.0, %v1054
      %v1056 = vpop.f32.mrf.mxu0
      %v1057 = vadd.f32 0.0, %v1056
      %1058 = vmatmul.bf16.gmra.mxu0 %v1021
      %v1059 = vpop.f32.mrf.mxu0
      %v1060 = vadd.f32 0.0, %v1059
      %v1061 = vpop.f32.mrf.mxu0
      %v1062 = vadd.f32 0.0, %v1061
      %1063 = vdwg.mxu0
      %v1064 = vsel %vm841, %v1045, -inf
      %1065 = vmax.xlane.f32.xlu0 %v1064
      %v1066 = vpop.xlane.xlu0 %1065
      %v1067 = vsel %vm841, %v1047, -inf
      %1068 = vmax.xlane.f32.xlu0 %v1067
      %v1069 = vpop.xlane.xlu0 %1068
      %v1070 = vsel %vm841, %v1050, -inf
      %1071 = vmax.xlane.f32.xlu0 %v1070
      %v1072 = vpop.xlane.xlu0 %1071
      %v1073 = vsel %vm841, %v1052, -inf
      %1074 = vmax.xlane.f32.xlu0 %v1073
      %v1075 = vpop.xlane.xlu0 %1074
      %v1076 = vsel %vm841, %v1055, -inf
      %1077 = vmax.xlane.f32.xlu0 %v1076
      %v1078 = vpop.xlane.xlu0 %1077
      %v1079 = vsel %vm841, %v1057, -inf
      %1080 = vmax.xlane.f32.xlu0 %v1079
      %v1081 = vpop.xlane.xlu0 %1080
      %v1082 = vsel %vm841, %v1060, -inf
      %1083 = vmax.xlane.f32.xlu0 %v1082
      %v1084 = vpop.xlane.xlu0 %1083
      %v1085 = vsel %vm841, %v1062, -inf
      %1086 = vmax.xlane.f32.xlu0 %v1085
      %v1087 = vpop.xlane.xlu0 %1086
      %v1088 = vsub.f32 %v1045, %v1066
      %v1089 = vsub.f32 %v1047, %v1069
      %v1090 = vsub.f32 %v1050, %v1072
      %v1091 = vsub.f32 %v1052, %v1075
      %v1092 = vsub.f32 %v1055, %v1078
      %v1093 = vsub.f32 %v1057, %v1081
      %v1094 = vsub.f32 %v1060, %v1084
      %v1095 = vsub.f32 %v1062, %v1087
      %v1096 = vmul.f32 %v1088, 1.442695
      %v1097 = vpow.pop %v1096
      %v1098 = vmul.f32 %v1089, 1.442695
      %v1099 = vpow.pop %v1098
      %v1100 = vmul.f32 %v1090, 1.442695
      %v1101 = vpow.pop %v1100
      %v1102 = vmul.f32 %v1091, 1.442695
      %v1103 = vpow.pop %v1102
      %v1104 = vmul.f32 %v1092, 1.442695
      %v1105 = vpow.pop %v1104
      %v1106 = vmul.f32 %v1093, 1.442695
      %v1107 = vpow.pop %v1106
      %v1108 = vmul.f32 %v1094, 1.442695
      %v1109 = vpow.pop %v1108
      %v1110 = vmul.f32 %v1095, 1.442695
      %v1111 = vpow.pop %v1110
      %v1112 = vsel %vm841, %v1097, 0.0
      %1113 = vadd.xlane.f32.xlu0 %v1112
      %v1114 = vpop.xlane.xlu0 %1113
      %v1115 = vsel %vm841, %v1099, 0.0
      %1116 = vadd.xlane.f32.xlu0 %v1115
      %v1117 = vpop.xlane.xlu0 %1116
      %v1118 = vsel %vm841, %v1101, 0.0
      %1119 = vadd.xlane.f32.xlu0 %v1118
      %v1120 = vpop.xlane.xlu0 %1119
      %v1121 = vsel %vm841, %v1103, 0.0
      %1122 = vadd.xlane.f32.xlu0 %v1121
      %v1123 = vpop.xlane.xlu0 %1122
      %v1124 = vsel %vm841, %v1105, 0.0
      %1125 = vadd.xlane.f32.xlu0 %v1124
      %v1126 = vpop.xlane.xlu0 %1125
      %v1127 = vsel %vm841, %v1107, 0.0
      %1128 = vadd.xlane.f32.xlu0 %v1127
      %v1129 = vpop.xlane.xlu0 %1128
      %v1130 = vsel %vm841, %v1109, 0.0
      %1131 = vadd.xlane.f32.xlu0 %v1130
      %v1132 = vpop.xlane.xlu0 %1131
      %v1133 = vsel %vm841, %v1111, 0.0
      %1134 = vadd.xlane.f32.xlu0 %v1133
      %v1135 = vpop.xlane.xlu0 %1134
      %v1136 = vrcp.pop %v1114
      %v1137 = vrcp.pop %v1117
      %v1138 = vrcp.pop %v1120
      %v1139 = vrcp.pop %v1123
      %v1140 = vrcp.pop %v1126
      %v1141 = vrcp.pop %v1129
      %v1142 = vrcp.pop %v1132
      %v1143 = vrcp.pop %v1135
      %v1144 = vmul.f32 %v1097, %v1136
      %v1145 = vmul.f32 %v1099, %v1137
      %v1146 = vmul.f32 %v1101, %v1138
      %v1147 = vmul.f32 %v1103, %v1139
      %v1148 = vmul.f32 %v1105, %v1140
      %v1149 = vmul.f32 %v1107, %v1141
      %v1150 = vmul.f32 %v1109, %v1142
      %v1151 = vmul.f32 %v1111, %v1143
      %v1152 = vpack.c.bf16 %v1145, %v1144
      %v1153 = vpack.c.bf16 %v1147, %v1146
      %v1154 = vpack.c.bf16 %v1149, %v1148
      %v1155 = vpack.c.bf16 %v1151, %v1150
      %1156 = vrot.lane.b32.xlu0 %v775, 60
      %v1157 = vpop.permute.xlu0 %1156
      %1158 = vrot.lane.b32.xlu0 %v776, 60
      %v1159 = vpop.permute.xlu0 %1158
      %1160 = vrot.lane.b32.xlu0 %v777, 60
      %v1161 = vpop.permute.xlu0 %1160
      %1162 = vrot.lane.b32.xlu0 %v778, 60
      %v1163 = vpop.permute.xlu0 %1162
      %v1169 = vsel %vm841, %v1152, 0
      %v1172 = vsel %vm841, %v1153, 0
      %v1175 = vsel %vm841, %v1154, 0
      %v1178 = vsel %vm841, %v1155, 0
      %1180 = vmatpush.bf16.msra.mxu0 0
      %1181 = vmatpush.bf16.msra.mxu0 0
      %1182 = vmatpush.bf16.msra.mxu0 0
      %1183 = vmatpush.bf16.msra.mxu0 0
      %1184 = vmatpush.bf16.msra.mxu0 %v1163
      %1185 = vmatpush.bf16.msra.mxu0 %v1161
      %1186 = vmatpush.bf16.msra.mxu0 %v1159
      %1187 = vmatpush.bf16.msra.mxu0 %v1157
      %1188 = vmatmul.bf16.gmra.mxu0 %v1169
      %v1189 = vpop.f32.mrf.mxu0
      %v1190 = vadd.f32 0.0, %v1189
      %v1191 = vpop.f32.mrf.mxu0
      %v1192 = vadd.f32 0.0, %v1191
      %1193 = vmatmul.bf16.gmra.mxu0 %v1172
      %v1194 = vpop.f32.mrf.mxu0
      %v1195 = vadd.f32 0.0, %v1194
      %v1196 = vpop.f32.mrf.mxu0
      %v1197 = vadd.f32 0.0, %v1196
      %1198 = vmatmul.bf16.gmra.mxu0 %v1175
      %v1199 = vpop.f32.mrf.mxu0
      %v1200 = vadd.f32 0.0, %v1199
      %v1201 = vpop.f32.mrf.mxu0
      %v1202 = vadd.f32 0.0, %v1201
      %1203 = vmatmul.bf16.gmra.mxu0 %v1178
      %v1204 = vpop.f32.mrf.mxu0
      %v1205 = vadd.f32 0.0, %v1204
      %v1206 = vpop.f32.mrf.mxu0
      %v1207 = vadd.f32 0.0, %v1206
      %1208 = vdwg.mxu0
      %1217 = vrot.lane.b32.xlu0 %v1190, 4
      %v1218 = vpop.permute.xlu0 %1217
      %1219 = vrot.lane.b32.xlu0 %v1192, 4
      %v1220 = vpop.permute.xlu0 %1219
      %1221 = vrot.lane.b32.xlu0 %v1195, 4
      %v1222 = vpop.permute.xlu0 %1221
      %1223 = vrot.lane.b32.xlu0 %v1197, 4
      %v1224 = vpop.permute.xlu0 %1223
      %1225 = vrot.lane.b32.xlu0 %v1200, 4
      %v1226 = vpop.permute.xlu0 %1225
      %1227 = vrot.lane.b32.xlu0 %v1202, 4
      %v1228 = vpop.permute.xlu0 %1227
      %1229 = vrot.lane.b32.xlu0 %v1205, 4
      %v1230 = vpop.permute.xlu0 %1229
      %1231 = vrot.lane.b32.xlu0 %v1207, 4
      %v1232 = vpop.permute.xlu0 %1231
      %vm1241 = vcmask 64544
      %1242 = vst.msk [vmem:[#allocation2] sm:$0xff] %vm1241, %v1218
      %1243 = vst.msk [vmem:[#allocation2 + $0x8] sm:$0xff] %vm1241, %v1220
      %1244 = vst.msk [vmem:[#allocation2 + $0x10] sm:$0xff] %vm1241, %v1222
      %1245 = vst.msk [vmem:[#allocation2 + $0x18] sm:$0xff] %vm1241, %v1224
      %1246 = vst.msk [vmem:[#allocation2 + $0x20] sm:$0xff] %vm1241, %v1226
      %1247 = vst.msk [vmem:[#allocation2 + $0x28] sm:$0xff] %vm1241, %v1228
      %1248 = vst.msk [vmem:[#allocation2 + $0x30] sm:$0xff] %vm1241, %v1230
      %1249 = vst.msk [vmem:[#allocation2 + $0x38] sm:$0xff] %vm1241, %v1232
      %1250 = vrot.lane.b32.xlu0 %v775, 120
      %v1251 = vpop.permute.xlu0 %1250
      %1252 = vrot.lane.b32.xlu0 %v776, 120
      %v1253 = vpop.permute.xlu0 %1252
      %1254 = vrot.lane.b32.xlu0 %v777, 120
      %v1255 = vpop.permute.xlu0 %1254
      %1256 = vrot.lane.b32.xlu0 %v778, 120
      %v1257 = vpop.permute.xlu0 %1256
      %1258 = vrot.lane.b32.xlu0 %v775, 88
      %v1259 = vpop.permute.xlu0 %1258
      %1260 = vrot.lane.b32.xlu0 %v776, 88
      %v1261 = vpop.permute.xlu0 %1260
      %1262 = vrot.lane.b32.xlu0 %v777, 88
      %v1263 = vpop.permute.xlu0 %1262
      %1264 = vrot.lane.b32.xlu0 %v778, 88
      %v1265 = vpop.permute.xlu0 %1264
      %v1267 = vsel %vm787, %v1251, 0
      %v1270 = vsel %vm787, %v1253, 0
      %v1273 = vsel %vm787, %v1255, 0
      %v1276 = vsel %vm787, %v1257, 0
      %v1279 = vsel %vm787, %v1259, 0
      %v1282 = vsel %vm787, %v1261, 0
      %v1285 = vsel %vm787, %v1263, 0
      %v1288 = vsel %vm787, %v1265, 0
      %1290 = vmatpush.bf16.xpose.msra.mxu0 0
      %1291 = vmatpush.bf16.xpose.msra.mxu0 0
      %1292 = vmatpush.bf16.xpose.msra.mxu0 0
      %1293 = vmatpush.bf16.xpose.msra.mxu0 0
      %1294 = vmatpush.bf16.xpose.msra.mxu0 %v1288
      %1295 = vmatpush.bf16.xpose.msra.mxu0 %v1285
      %1296 = vmatpush.bf16.xpose.msra.mxu0 %v1282
      %1297 = vmatpush.bf16.xpose.msra.mxu0 %v1279
      %1298 = vmatmul.bf16.gmra.mxu0 %v1267
      %v1299 = vpop.f32.mrf.mxu0
      %v1300 = vadd.f32 0.0, %v1299
      %v1301 = vpop.f32.mrf.mxu0
      %v1302 = vadd.f32 0.0, %v1301
      %1303 = vmatmul.bf16.gmra.mxu0 %v1270
      %v1304 = vpop.f32.mrf.mxu0
      %v1305 = vadd.f32 0.0, %v1304
      %v1306 = vpop.f32.mrf.mxu0
      %v1307 = vadd.f32 0.0, %v1306
      %1308 = vmatmul.bf16.gmra.mxu0 %v1273
      %v1309 = vpop.f32.mrf.mxu0
      %v1310 = vadd.f32 0.0, %v1309
      %v1311 = vpop.f32.mrf.mxu0
      %v1312 = vadd.f32 0.0, %v1311
      %1313 = vmatmul.bf16.gmra.mxu0 %v1276
      %v1314 = vpop.f32.mrf.mxu0
      %v1315 = vadd.f32 0.0, %v1314
      %v1316 = vpop.f32.mrf.mxu0
      %v1317 = vadd.f32 0.0, %v1316
      %1318 = vdwg.mxu0
      %v1319 = vsel %vm841, %v1300, -inf
      %1320 = vmax.xlane.f32.xlu0 %v1319
      %v1321 = vpop.xlane.xlu0 %1320
      %v1322 = vsel %vm841, %v1302, -inf
      %1323 = vmax.xlane.f32.xlu0 %v1322
      %v1324 = vpop.xlane.xlu0 %1323
      %v1325 = vsel %vm841, %v1305, -inf
      %1326 = vmax.xlane.f32.xlu0 %v1325
      %v1327 = vpop.xlane.xlu0 %1326
      %v1328 = vsel %vm841, %v1307, -inf
      %1329 = vmax.xlane.f32.xlu0 %v1328
      %v1330 = vpop.xlane.xlu0 %1329
      %v1331 = vsel %vm841, %v1310, -inf
      %1332 = vmax.xlane.f32.xlu0 %v1331
      %v1333 = vpop.xlane.xlu0 %1332
      %v1334 = vsel %vm841, %v1312, -inf
      %1335 = vmax.xlane.f32.xlu0 %v1334
      %v1336 = vpop.xlane.xlu0 %1335
      %v1337 = vsel %vm841, %v1315, -inf
      %1338 = vmax.xlane.f32.xlu0 %v1337
      %v1339 = vpop.xlane.xlu0 %1338
      %v1340 = vsel %vm841, %v1317, -inf
      %1341 = vmax.xlane.f32.xlu0 %v1340
      %v1342 = vpop.xlane.xlu0 %1341
      %v1343 = vsub.f32 %v1300, %v1321
      %v1344 = vsub.f32 %v1302, %v1324
      %v1345 = vsub.f32 %v1305, %v1327
      %v1346 = vsub.f32 %v1307, %v1330
      %v1347 = vsub.f32 %v1310, %v1333
      %v1348 = vsub.f32 %v1312, %v1336
      %v1349 = vsub.f32 %v1315, %v1339
      %v1350 = vsub.f32 %v1317, %v1342
      %v1351 = vmul.f32 %v1343, 1.442695
      %v1352 = vpow.pop %v1351
      %v1353 = vmul.f32 %v1344, 1.442695
      %v1354 = vpow.pop %v1353
      %v1355 = vmul.f32 %v1345, 1.442695
      %v1356 = vpow.pop %v1355
      %v1357 = vmul.f32 %v1346, 1.442695
      %v1358 = vpow.pop %v1357
      %v1359 = vmul.f32 %v1347, 1.442695
      %v1360 = vpow.pop %v1359
      %v1361 = vmul.f32 %v1348, 1.442695
      %v1362 = vpow.pop %v1361
      %v1363 = vmul.f32 %v1349, 1.442695
      %v1364 = vpow.pop %v1363
      %v1365 = vmul.f32 %v1350, 1.442695
      %v1366 = vpow.pop %v1365
      %v1367 = vsel %vm841, %v1352, 0.0
      %1368 = vadd.xlane.f32.xlu0 %v1367
      %v1369 = vpop.xlane.xlu0 %1368
      %v1370 = vsel %vm841, %v1354, 0.0
      %1371 = vadd.xlane.f32.xlu0 %v1370
      %v1372 = vpop.xlane.xlu0 %1371
      %v1373 = vsel %vm841, %v1356, 0.0
      %1374 = vadd.xlane.f32.xlu0 %v1373
      %v1375 = vpop.xlane.xlu0 %1374
      %v1376 = vsel %vm841, %v1358, 0.0
      %1377 = vadd.xlane.f32.xlu0 %v1376
      %v1378 = vpop.xlane.xlu0 %1377
      %v1379 = vsel %vm841, %v1360, 0.0
      %1380 = vadd.xlane.f32.xlu0 %v1379
      %v1381 = vpop.xlane.xlu0 %1380
      %v1382 = vsel %vm841, %v1362, 0.0
      %1383 = vadd.xlane.f32.xlu0 %v1382
      %v1384 = vpop.xlane.xlu0 %1383
      %v1385 = vsel %vm841, %v1364, 0.0
      %1386 = vadd.xlane.f32.xlu0 %v1385
      %v1387 = vpop.xlane.xlu0 %1386
      %v1388 = vsel %vm841, %v1366, 0.0
      %1389 = vadd.xlane.f32.xlu0 %v1388
      %v1390 = vpop.xlane.xlu0 %1389
      %v1391 = vrcp.pop %v1369
      %v1392 = vrcp.pop %v1372
      %v1393 = vrcp.pop %v1375
      %v1394 = vrcp.pop %v1378
      %v1395 = vrcp.pop %v1381
      %v1396 = vrcp.pop %v1384
      %v1397 = vrcp.pop %v1387
      %v1398 = vrcp.pop %v1390
      %v1399 = vmul.f32 %v1352, %v1391
      %v1400 = vmul.f32 %v1354, %v1392
      %v1401 = vmul.f32 %v1356, %v1393
      %v1402 = vmul.f32 %v1358, %v1394
      %v1403 = vmul.f32 %v1360, %v1395
      %v1404 = vmul.f32 %v1362, %v1396
      %v1405 = vmul.f32 %v1364, %v1397
      %v1406 = vmul.f32 %v1366, %v1398
      %v1407 = vpack.c.bf16 %v1400, %v1399
      %v1408 = vpack.c.bf16 %v1402, %v1401
      %v1409 = vpack.c.bf16 %v1404, %v1403
      %v1410 = vpack.c.bf16 %v1406, %v1405
      %1411 = vrot.lane.b32.xlu0 %v775, 56
      %v1412 = vpop.permute.xlu0 %1411
      %1413 = vrot.lane.b32.xlu0 %v776, 56
      %v1414 = vpop.permute.xlu0 %1413
      %1415 = vrot.lane.b32.xlu0 %v777, 56
      %v1416 = vpop.permute.xlu0 %1415
      %1417 = vrot.lane.b32.xlu0 %v778, 56
      %v1418 = vpop.permute.xlu0 %1417
      %v1424 = vsel %vm841, %v1407, 0
      %v1427 = vsel %vm841, %v1408, 0
      %v1430 = vsel %vm841, %v1409, 0
      %v1433 = vsel %vm841, %v1410, 0
      %1435 = vmatpush.bf16.msra.mxu0 0
      %1436 = vmatpush.bf16.msra.mxu0 0
      %1437 = vmatpush.bf16.msra.mxu0 0
      %1438 = vmatpush.bf16.msra.mxu0 0
      %1439 = vmatpush.bf16.msra.mxu0 %v1418
      %1440 = vmatpush.bf16.msra.mxu0 %v1416
      %1441 = vmatpush.bf16.msra.mxu0 %v1414
      %1442 = vmatpush.bf16.msra.mxu0 %v1412
      %1443 = vmatmul.bf16.gmra.mxu0 %v1424
      %v1444 = vpop.f32.mrf.mxu0
      %v1445 = vadd.f32 0.0, %v1444
      %v1446 = vpop.f32.mrf.mxu0
      %v1447 = vadd.f32 0.0, %v1446
      %1448 = vmatmul.bf16.gmra.mxu0 %v1427
      %v1449 = vpop.f32.mrf.mxu0
      %v1450 = vadd.f32 0.0, %v1449
      %v1451 = vpop.f32.mrf.mxu0
      %v1452 = vadd.f32 0.0, %v1451
      %1453 = vmatmul.bf16.gmra.mxu0 %v1430
      %v1454 = vpop.f32.mrf.mxu0
      %v1455 = vadd.f32 0.0, %v1454
      %v1456 = vpop.f32.mrf.mxu0
      %v1457 = vadd.f32 0.0, %v1456
      %1458 = vmatmul.bf16.gmra.mxu0 %v1433
      %v1459 = vpop.f32.mrf.mxu0
      %v1460 = vadd.f32 0.0, %v1459
      %v1461 = vpop.f32.mrf.mxu0
      %v1462 = vadd.f32 0.0, %v1461
      %1463 = vdwg.mxu0
      %1472 = vrot.lane.b32.xlu0 %v1445, 8
      %v1473 = vpop.permute.xlu0 %1472
      %1474 = vrot.lane.b32.xlu0 %v1447, 8
      %v1475 = vpop.permute.xlu0 %1474
      %1476 = vrot.lane.b32.xlu0 %v1450, 8
      %v1477 = vpop.permute.xlu0 %1476
      %1478 = vrot.lane.b32.xlu0 %v1452, 8
      %v1479 = vpop.permute.xlu0 %1478
      %1480 = vrot.lane.b32.xlu0 %v1455, 8
      %v1481 = vpop.permute.xlu0 %1480
      %1482 = vrot.lane.b32.xlu0 %v1457, 8
      %v1483 = vpop.permute.xlu0 %1482
      %1484 = vrot.lane.b32.xlu0 %v1460, 8
      %v1485 = vpop.permute.xlu0 %1484
      %1486 = vrot.lane.b32.xlu0 %v1462, 8
      %v1487 = vpop.permute.xlu0 %1486
      %vm1496 = vcmask 97344
      %1497 = vst.msk [vmem:[#allocation2] sm:$0xff] %vm1496, %v1473
      %1498 = vst.msk [vmem:[#allocation2 + $0x8] sm:$0xff] %vm1496, %v1475
      %1499 = vst.msk [vmem:[#allocation2 + $0x10] sm:$0xff] %vm1496, %v1477
      %1500 = vst.msk [vmem:[#allocation2 + $0x18] sm:$0xff] %vm1496, %v1479
      %1501 = vst.msk [vmem:[#allocation2 + $0x20] sm:$0xff] %vm1496, %v1481
      %1502 = vst.msk [vmem:[#allocation2 + $0x28] sm:$0xff] %vm1496, %v1483
      %1503 = vst.msk [vmem:[#allocation2 + $0x30] sm:$0xff] %vm1496, %v1485
      %1504 = vst.msk [vmem:[#allocation2 + $0x38] sm:$0xff] %vm1496, %v1487
      %1505 = vrot.lane.b32.xlu0 %v775, 116
      %v1506 = vpop.permute.xlu0 %1505
      %1507 = vrot.lane.b32.xlu0 %v776, 116
      %v1508 = vpop.permute.xlu0 %1507
      %1509 = vrot.lane.b32.xlu0 %v777, 116
      %v1510 = vpop.permute.xlu0 %1509
      %1511 = vrot.lane.b32.xlu0 %v778, 116
      %v1512 = vpop.permute.xlu0 %1511
      %1513 = vrot.lane.b32.xlu0 %v775, 84
      %v1514 = vpop.permute.xlu0 %1513
      %1515 = vrot.lane.b32.xlu0 %v776, 84
      %v1516 = vpop.permute.xlu0 %1515
      %1517 = vrot.lane.b32.xlu0 %v777, 84
      %v1518 = vpop.permute.xlu0 %1517
      %1519 = vrot.lane.b32.xlu0 %v778, 84
      %v1520 = vpop.permute.xlu0 %1519
      %v1522 = vsel %vm787, %v1506, 0
      %v1525 = vsel %vm787, %v1508, 0
      %v1528 = vsel %vm787, %v1510, 0
      %v1531 = vsel %vm787, %v1512, 0
      %v1534 = vsel %vm787, %v1514, 0
      %v1537 = vsel %vm787, %v1516, 0
      %v1540 = vsel %vm787, %v1518, 0
      %v1543 = vsel %vm787, %v1520, 0
      %1545 = vmatpush.bf16.xpose.msra.mxu0 0
      %1546 = vmatpush.bf16.xpose.msra.mxu0 0
      %1547 = vmatpush.bf16.xpose.msra.mxu0 0
      %1548 = vmatpush.bf16.xpose.msra.mxu0 0
      %1549 = vmatpush.bf16.xpose.msra.mxu0 %v1543
      %1550 = vmatpush.bf16.xpose.msra.mxu0 %v1540
      %1551 = vmatpush.bf16.xpose.msra.mxu0 %v1537
      %1552 = vmatpush.bf16.xpose.msra.mxu0 %v1534
      %1553 = vmatmul.bf16.gmra.mxu0 %v1522
      %v1554 = vpop.f32.mrf.mxu0
      %v1555 = vadd.f32 0.0, %v1554
      %v1556 = vpop.f32.mrf.mxu0
      %v1557 = vadd.f32 0.0, %v1556
      %1558 = vmatmul.bf16.gmra.mxu0 %v1525
      %v1559 = vpop.f32.mrf.mxu0
      %v1560 = vadd.f32 0.0, %v1559
      %v1561 = vpop.f32.mrf.mxu0
      %v1562 = vadd.f32 0.0, %v1561
      %1563 = vmatmul.bf16.gmra.mxu0 %v1528
      %v1564 = vpop.f32.mrf.mxu0
      %v1565 = vadd.f32 0.0, %v1564
      %v1566 = vpop.f32.mrf.mxu0
      %v1567 = vadd.f32 0.0, %v1566
      %1568 = vmatmul.bf16.gmra.mxu0 %v1531
      %v1569 = vpop.f32.mrf.mxu0
      %v1570 = vadd.f32 0.0, %v1569
      %v1571 = vpop.f32.mrf.mxu0
      %v1572 = vadd.f32 0.0, %v1571
      %1573 = vdwg.mxu0
      %v1574 = vsel %vm841, %v1555, -inf
      %1575 = vmax.xlane.f32.xlu0 %v1574
      %v1576 = vpop.xlane.xlu0 %1575
      %v1577 = vsel %vm841, %v1557, -inf
      %1578 = vmax.xlane.f32.xlu0 %v1577
      %v1579 = vpop.xlane.xlu0 %1578
      %v1580 = vsel %vm841, %v1560, -inf
      %1581 = vmax.xlane.f32.xlu0 %v1580
      %v1582 = vpop.xlane.xlu0 %1581
      %v1583 = vsel %vm841, %v1562, -inf
      %1584 = vmax.xlane.f32.xlu0 %v1583
      %v1585 = vpop.xlane.xlu0 %1584
      %v1586 = vsel %vm841, %v1565, -inf
      %1587 = vmax.xlane.f32.xlu0 %v1586
      %v1588 = vpop.xlane.xlu0 %1587
      %v1589 = vsel %vm841, %v1567, -inf
      %1590 = vmax.xlane.f32.xlu0 %v1589
      %v1591 = vpop.xlane.xlu0 %1590
      %v1592 = vsel %vm841, %v1570, -inf
      %1593 = vmax.xlane.f32.xlu0 %v1592
      %v1594 = vpop.xlane.xlu0 %1593
      %v1595 = vsel %vm841, %v1572, -inf
      %1596 = vmax.xlane.f32.xlu0 %v1595
      %v1597 = vpop.xlane.xlu0 %1596
      %v1598 = vsub.f32 %v1555, %v1576
      %v1599 = vsub.f32 %v1557, %v1579
      %v1600 = vsub.f32 %v1560, %v1582
      %v1601 = vsub.f32 %v1562, %v1585
      %v1602 = vsub.f32 %v1565, %v1588
      %v1603 = vsub.f32 %v1567, %v1591
      %v1604 = vsub.f32 %v1570, %v1594
      %v1605 = vsub.f32 %v1572, %v1597
      %v1606 = vmul.f32 %v1598, 1.442695
      %v1607 = vpow.pop %v1606
      %v1608 = vmul.f32 %v1599, 1.442695
      %v1609 = vpow.pop %v1608
      %v1610 = vmul.f32 %v1600, 1.442695
      %v1611 = vpow.pop %v1610
      %v1612 = vmul.f32 %v1601, 1.442695
      %v1613 = vpow.pop %v1612
      %v1614 = vmul.f32 %v1602, 1.442695
      %v1615 = vpow.pop %v1614
      %v1616 = vmul.f32 %v1603, 1.442695
      %v1617 = vpow.pop %v1616
      %v1618 = vmul.f32 %v1604, 1.442695
      %v1619 = vpow.pop %v1618
      %v1620 = vmul.f32 %v1605, 1.442695
      %v1621 = vpow.pop %v1620
      %v1622 = vsel %vm841, %v1607, 0.0
      %1623 = vadd.xlane.f32.xlu0 %v1622
      %v1624 = vpop.xlane.xlu0 %1623
      %v1625 = vsel %vm841, %v1609, 0.0
      %1626 = vadd.xlane.f32.xlu0 %v1625
      %v1627 = vpop.xlane.xlu0 %1626
      %v1628 = vsel %vm841, %v1611, 0.0
      %1629 = vadd.xlane.f32.xlu0 %v1628
      %v1630 = vpop.xlane.xlu0 %1629
      %v1631 = vsel %vm841, %v1613, 0.0
      %1632 = vadd.xlane.f32.xlu0 %v1631
      %v1633 = vpop.xlane.xlu0 %1632
      %v1634 = vsel %vm841, %v1615, 0.0
      %1635 = vadd.xlane.f32.xlu0 %v1634
      %v1636 = vpop.xlane.xlu0 %1635
      %v1637 = vsel %vm841, %v1617, 0.0
      %1638 = vadd.xlane.f32.xlu0 %v1637
      %v1639 = vpop.xlane.xlu0 %1638
      %v1640 = vsel %vm841, %v1619, 0.0
      %1641 = vadd.xlane.f32.xlu0 %v1640
      %v1642 = vpop.xlane.xlu0 %1641
      %v1643 = vsel %vm841, %v1621, 0.0
      %1644 = vadd.xlane.f32.xlu0 %v1643
      %v1645 = vpop.xlane.xlu0 %1644
      %v1646 = vrcp.pop %v1624
      %v1647 = vrcp.pop %v1627
      %v1648 = vrcp.pop %v1630
      %v1649 = vrcp.pop %v1633
      %v1650 = vrcp.pop %v1636
      %v1651 = vrcp.pop %v1639
      %v1652 = vrcp.pop %v1642
      %v1653 = vrcp.pop %v1645
      %v1654 = vmul.f32 %v1607, %v1646
      %v1655 = vmul.f32 %v1609, %v1647
      %v1656 = vmul.f32 %v1611, %v1648
      %v1657 = vmul.f32 %v1613, %v1649
      %v1658 = vmul.f32 %v1615, %v1650
      %v1659 = vmul.f32 %v1617, %v1651
      %v1660 = vmul.f32 %v1619, %v1652
      %v1661 = vmul.f32 %v1621, %v1653
      %v1662 = vpack.c.bf16 %v1655, %v1654
      %v1663 = vpack.c.bf16 %v1657, %v1656
      %v1664 = vpack.c.bf16 %v1659, %v1658
      %v1665 = vpack.c.bf16 %v1661, %v1660
      %1666 = vrot.lane.b32.xlu0 %v775, 52
      %v1667 = vpop.permute.xlu0 %1666
      %1668 = vrot.lane.b32.xlu0 %v776, 52
      %v1669 = vpop.permute.xlu0 %1668
      %1670 = vrot.lane.b32.xlu0 %v777, 52
      %v1671 = vpop.permute.xlu0 %1670
      %1672 = vrot.lane.b32.xlu0 %v778, 52
      %v1673 = vpop.permute.xlu0 %1672
      %v1679 = vsel %vm841, %v1662, 0
      %v1682 = vsel %vm841, %v1663, 0
      %v1685 = vsel %vm841, %v1664, 0
      %v1688 = vsel %vm841, %v1665, 0
      %1690 = vmatpush.bf16.msra.mxu0 0
      %1691 = vmatpush.bf16.msra.mxu0 0
      %1692 = vmatpush.bf16.msra.mxu0 0
      %1693 = vmatpush.bf16.msra.mxu0 0
      %1694 = vmatpush.bf16.msra.mxu0 %v1673
      %1695 = vmatpush.bf16.msra.mxu0 %v1671
      %1696 = vmatpush.bf16.msra.mxu0 %v1669
      %1697 = vmatpush.bf16.msra.mxu0 %v1667
      %1698 = vmatmul.bf16.gmra.mxu0 %v1679
      %v1699 = vpop.f32.mrf.mxu0
      %v1700 = vadd.f32 0.0, %v1699
      %v1701 = vpop.f32.mrf.mxu0
      %v1702 = vadd.f32 0.0, %v1701
      %1703 = vmatmul.bf16.gmra.mxu0 %v1682
      %v1704 = vpop.f32.mrf.mxu0
      %v1705 = vadd.f32 0.0, %v1704
      %v1706 = vpop.f32.mrf.mxu0
      %v1707 = vadd.f32 0.0, %v1706
      %1708 = vmatmul.bf16.gmra.mxu0 %v1685
      %v1709 = vpop.f32.mrf.mxu0
      %v1710 = vadd.f32 0.0, %v1709
      %v1711 = vpop.f32.mrf.mxu0
      %v1712 = vadd.f32 0.0, %v1711
      %1713 = vmatmul.bf16.gmra.mxu0 %v1688
      %v1714 = vpop.f32.mrf.mxu0
      %v1715 = vadd.f32 0.0, %v1714
      %v1716 = vpop.f32.mrf.mxu0
      %v1717 = vadd.f32 0.0, %v1716
      %1718 = vdwg.mxu0
      %1727 = vrot.lane.b32.xlu0 %v1700, 12
      %v1728 = vpop.permute.xlu0 %1727
      %1729 = vrot.lane.b32.xlu0 %v1702, 12
      %v1730 = vpop.permute.xlu0 %1729
      %1731 = vrot.lane.b32.xlu0 %v1705, 12
      %v1732 = vpop.permute.xlu0 %1731
      %1733 = vrot.lane.b32.xlu0 %v1707, 12
      %v1734 = vpop.permute.xlu0 %1733
      %1735 = vrot.lane.b32.xlu0 %v1710, 12
      %v1736 = vpop.permute.xlu0 %1735
      %1737 = vrot.lane.b32.xlu0 %v1712, 12
      %v1738 = vpop.permute.xlu0 %1737
      %1739 = vrot.lane.b32.xlu0 %v1715, 12
      %v1740 = vpop.permute.xlu0 %1739
      %1741 = vrot.lane.b32.xlu0 %v1717, 12
      %v1742 = vpop.permute.xlu0 %1741
      %vm1751 = vcmask 130144
      %1752 = vst.msk [vmem:[#allocation2] sm:$0xff] %vm1751, %v1728
      %1753 = vst.msk [vmem:[#allocation2 + $0x8] sm:$0xff] %vm1751, %v1730
      %1754 = vst.msk [vmem:[#allocation2 + $0x10] sm:$0xff] %vm1751, %v1732
      %1755 = vst.msk [vmem:[#allocation2 + $0x18] sm:$0xff] %vm1751, %v1734
      %1756 = vst.msk [vmem:[#allocation2 + $0x20] sm:$0xff] %vm1751, %v1736
      %1757 = vst.msk [vmem:[#allocation2 + $0x28] sm:$0xff] %vm1751, %v1738
      %1758 = vst.msk [vmem:[#allocation2 + $0x30] sm:$0xff] %vm1751, %v1740
      %1759 = vst.msk [vmem:[#allocation2 + $0x38] sm:$0xff] %vm1751, %v1742
      %1760 = vrot.lane.b32.xlu0 %v775, 112
      %v1761 = vpop.permute.xlu0 %1760
      %1762 = vrot.lane.b32.xlu0 %v776, 112
      %v1763 = vpop.permute.xlu0 %1762
      %1764 = vrot.lane.b32.xlu0 %v777, 112
      %v1765 = vpop.permute.xlu0 %1764
      %1766 = vrot.lane.b32.xlu0 %v778, 112
      %v1767 = vpop.permute.xlu0 %1766
      %1768 = vrot.lane.b32.xlu0 %v775, 80
      %v1769 = vpop.permute.xlu0 %1768
      %1770 = vrot.lane.b32.xlu0 %v776, 80
      %v1771 = vpop.permute.xlu0 %1770
      %1772 = vrot.lane.b32.xlu0 %v777, 80
      %v1773 = vpop.permute.xlu0 %1772
      %1774 = vrot.lane.b32.xlu0 %v778, 80
      %v1775 = vpop.permute.xlu0 %1774
      %v1777 = vsel %vm787, %v1761, 0
      %v1780 = vsel %vm787, %v1763, 0
      %v1783 = vsel %vm787, %v1765, 0
      %v1786 = vsel %vm787, %v1767, 0
      %v1789 = vsel %vm787, %v1769, 0
      %v1792 = vsel %vm787, %v1771, 0
      %v1795 = vsel %vm787, %v1773, 0
      %v1798 = vsel %vm787, %v1775, 0
      %1800 = vmatpush.bf16.xpose.msra.mxu0 0
      %1801 = vmatpush.bf16.xpose.msra.mxu0 0
      %1802 = vmatpush.bf16.xpose.msra.mxu0 0
      %1803 = vmatpush.bf16.xpose.msra.mxu0 0
      %1804 = vmatpush.bf16.xpose.msra.mxu0 %v1798
      %1805 = vmatpush.bf16.xpose.msra.mxu0 %v1795
      %1806 = vmatpush.bf16.xpose.msra.mxu0 %v1792
      %1807 = vmatpush.bf16.xpose.msra.mxu0 %v1789
      %1808 = vmatmul.bf16.gmra.mxu0 %v1777
      %v1809 = vpop.f32.mrf.mxu0
      %v1810 = vadd.f32 0.0, %v1809
      %v1811 = vpop.f32.mrf.mxu0
      %v1812 = vadd.f32 0.0, %v1811
      %1813 = vmatmul.bf16.gmra.mxu0 %v1780
      %v1814 = vpop.f32.mrf.mxu0
      %v1815 = vadd.f32 0.0, %v1814
      %v1816 = vpop.f32.mrf.mxu0
      %v1817 = vadd.f32 0.0, %v1816
      %1818 = vmatmul.bf16.gmra.mxu0 %v1783
      %v1819 = vpop.f32.mrf.mxu0
      %v1820 = vadd.f32 0.0, %v1819
      %v1821 = vpop.f32.mrf.mxu0
      %v1822 = vadd.f32 0.0, %v1821
      %1823 = vmatmul.bf16.gmra.mxu0 %v1786
      %v1824 = vpop.f32.mrf.mxu0
      %v1825 = vadd.f32 0.0, %v1824
      %v1826 = vpop.f32.mrf.mxu0
      %v1827 = vadd.f32 0.0, %v1826
      %1828 = vdwg.mxu0
      %v1829 = vsel %vm841, %v1810, -inf
      %1830 = vmax.xlane.f32.xlu0 %v1829
      %v1831 = vpop.xlane.xlu0 %1830
      %v1832 = vsel %vm841, %v1812, -inf
      %1833 = vmax.xlane.f32.xlu0 %v1832
      %v1834 = vpop.xlane.xlu0 %1833
      %v1835 = vsel %vm841, %v1815, -inf
      %1836 = vmax.xlane.f32.xlu0 %v1835
      %v1837 = vpop.xlane.xlu0 %1836
      %v1838 = vsel %vm841, %v1817, -inf
      %1839 = vmax.xlane.f32.xlu0 %v1838
      %v1840 = vpop.xlane.xlu0 %1839
      %v1841 = vsel %vm841, %v1820, -inf
      %1842 = vmax.xlane.f32.xlu0 %v1841
      %v1843 = vpop.xlane.xlu0 %1842
      %v1844 = vsel %vm841, %v1822, -inf
      %1845 = vmax.xlane.f32.xlu0 %v1844
      %v1846 = vpop.xlane.xlu0 %1845
      %v1847 = vsel %vm841, %v1825, -inf
      %1848 = vmax.xlane.f32.xlu0 %v1847
      %v1849 = vpop.xlane.xlu0 %1848
      %v1850 = vsel %vm841, %v1827, -inf
      %1851 = vmax.xlane.f32.xlu0 %v1850
      %v1852 = vpop.xlane.xlu0 %1851
      %v1853 = vsub.f32 %v1810, %v1831
      %v1854 = vsub.f32 %v1812, %v1834
      %v1855 = vsub.f32 %v1815, %v1837
      %v1856 = vsub.f32 %v1817, %v1840
      %v1857 = vsub.f32 %v1820, %v1843
      %v1858 = vsub.f32 %v1822, %v1846
      %v1859 = vsub.f32 %v1825, %v1849
      %v1860 = vsub.f32 %v1827, %v1852
      %v1861 = vmul.f32 %v1853, 1.442695
      %v1862 = vpow.pop %v1861
      %v1863 = vmul.f32 %v1854, 1.442695
      %v1864 = vpow.pop %v1863
      %v1865 = vmul.f32 %v1855, 1.442695
      %v1866 = vpow.pop %v1865
      %v1867 = vmul.f32 %v1856, 1.442695
      %v1868 = vpow.pop %v1867
      %v1869 = vmul.f32 %v1857, 1.442695
      %v1870 = vpow.pop %v1869
      %v1871 = vmul.f32 %v1858, 1.442695
      %v1872 = vpow.pop %v1871
      %v1873 = vmul.f32 %v1859, 1.442695
      %v1874 = vpow.pop %v1873
      %v1875 = vmul.f32 %v1860, 1.442695
      %v1876 = vpow.pop %v1875
      %v1877 = vsel %vm841, %v1862, 0.0
      %1878 = vadd.xlane.f32.xlu0 %v1877
      %v1879 = vpop.xlane.xlu0 %1878
      %v1880 = vsel %vm841, %v1864, 0.0
      %1881 = vadd.xlane.f32.xlu0 %v1880
      %v1882 = vpop.xlane.xlu0 %1881
      %v1883 = vsel %vm841, %v1866, 0.0
      %1884 = vadd.xlane.f32.xlu0 %v1883
      %v1885 = vpop.xlane.xlu0 %1884
      %v1886 = vsel %vm841, %v1868, 0.0
      %1887 = vadd.xlane.f32.xlu0 %v1886
      %v1888 = vpop.xlane.xlu0 %1887
      %v1889 = vsel %vm841, %v1870, 0.0
      %1890 = vadd.xlane.f32.xlu0 %v1889
      %v1891 = vpop.xlane.xlu0 %1890
      %v1892 = vsel %vm841, %v1872, 0.0
      %1893 = vadd.xlane.f32.xlu0 %v1892
      %v1894 = vpop.xlane.xlu0 %1893
      %v1895 = vsel %vm841, %v1874, 0.0
      %1896 = vadd.xlane.f32.xlu0 %v1895
      %v1897 = vpop.xlane.xlu0 %1896
      %v1898 = vsel %vm841, %v1876, 0.0
      %1899 = vadd.xlane.f32.xlu0 %v1898
      %v1900 = vpop.xlane.xlu0 %1899
      %v1901 = vrcp.pop %v1879
      %v1902 = vrcp.pop %v1882
      %v1903 = vrcp.pop %v1885
      %v1904 = vrcp.pop %v1888
      %v1905 = vrcp.pop %v1891
      %v1906 = vrcp.pop %v1894
      %v1907 = vrcp.pop %v1897
      %v1908 = vrcp.pop %v1900
      %v1909 = vmul.f32 %v1862, %v1901
      %v1910 = vmul.f32 %v1864, %v1902
      %v1911 = vmul.f32 %v1866, %v1903
      %v1912 = vmul.f32 %v1868, %v1904
      %v1913 = vmul.f32 %v1870, %v1905
      %v1914 = vmul.f32 %v1872, %v1906
      %v1915 = vmul.f32 %v1874, %v1907
      %v1916 = vmul.f32 %v1876, %v1908
      %v1917 = vpack.c.bf16 %v1910, %v1909
      %v1918 = vpack.c.bf16 %v1912, %v1911
      %v1919 = vpack.c.bf16 %v1914, %v1913
      %v1920 = vpack.c.bf16 %v1916, %v1915
      %1921 = vrot.lane.b32.xlu0 %v775, 48
      %v1922 = vpop.permute.xlu0 %1921
      %1923 = vrot.lane.b32.xlu0 %v776, 48
      %v1924 = vpop.permute.xlu0 %1923
      %1925 = vrot.lane.b32.xlu0 %v777, 48
      %v1926 = vpop.permute.xlu0 %1925
      %1927 = vrot.lane.b32.xlu0 %v778, 48
      %v1928 = vpop.permute.xlu0 %1927
      %v1934 = vsel %vm841, %v1917, 0
      %v1937 = vsel %vm841, %v1918, 0
      %v1940 = vsel %vm841, %v1919, 0
      %v1943 = vsel %vm841, %v1920, 0
      %1945 = vmatpush.bf16.msra.mxu0 0
      %1946 = vmatpush.bf16.msra.mxu0 0
      %1947 = vmatpush.bf16.msra.mxu0 0
      %1948 = vmatpush.bf16.msra.mxu0 0
      %1949 = vmatpush.bf16.msra.mxu0 %v1928
      %1950 = vmatpush.bf16.msra.mxu0 %v1926
      %1951 = vmatpush.bf16.msra.mxu0 %v1924
      %1952 = vmatpush.bf16.msra.mxu0 %v1922
      %1953 = vmatmul.bf16.gmra.mxu0 %v1934
      %v1954 = vpop.f32.mrf.mxu0
      %v1955 = vadd.f32 0.0, %v1954
      %v1956 = vpop.f32.mrf.mxu0
      %v1957 = vadd.f32 0.0, %v1956
      %1958 = vmatmul.bf16.gmra.mxu0 %v1937
      %v1959 = vpop.f32.mrf.mxu0
      %v1960 = vadd.f32 0.0, %v1959
      %v1961 = vpop.f32.mrf.mxu0
      %v1962 = vadd.f32 0.0, %v1961
      %1963 = vmatmul.bf16.gmra.mxu0 %v1940
      %v1964 = vpop.f32.mrf.mxu0
      %v1965 = vadd.f32 0.0, %v1964
      %v1966 = vpop.f32.mrf.mxu0
      %v1967 = vadd.f32 0.0, %v1966
      %1968 = vmatmul.bf16.gmra.mxu0 %v1943
      %v1969 = vpop.f32.mrf.mxu0
      %v1970 = vadd.f32 0.0, %v1969
      %v1971 = vpop.f32.mrf.mxu0
      %v1972 = vadd.f32 0.0, %v1971
      %1973 = vdwg.mxu0
      %1982 = vrot.lane.b32.xlu0 %v1955, 16
      %v1983 = vpop.permute.xlu0 %1982
      %1984 = vrot.lane.b32.xlu0 %v1957, 16
      %v1985 = vpop.permute.xlu0 %1984
      %1986 = vrot.lane.b32.xlu0 %v1960, 16
      %v1987 = vpop.permute.xlu0 %1986
      %1988 = vrot.lane.b32.xlu0 %v1962, 16
      %v1989 = vpop.permute.xlu0 %1988
      %1990 = vrot.lane.b32.xlu0 %v1965, 16
      %v1991 = vpop.permute.xlu0 %1990
      %1992 = vrot.lane.b32.xlu0 %v1967, 16
      %v1993 = vpop.permute.xlu0 %1992
      %1994 = vrot.lane.b32.xlu0 %v1970, 16
      %v1995 = vpop.permute.xlu0 %1994
      %1996 = vrot.lane.b32.xlu0 %v1972, 16
      %v1997 = vpop.permute.xlu0 %1996
      %vm2006 = vcmask 162944
      %2007 = vst.msk [vmem:[#allocation2] sm:$0xff] %vm2006, %v1983
      %2008 = vst.msk [vmem:[#allocation2 + $0x8] sm:$0xff] %vm2006, %v1985
      %2009 = vst.msk [vmem:[#allocation2 + $0x10] sm:$0xff] %vm2006, %v1987
      %2010 = vst.msk [vmem:[#allocation2 + $0x18] sm:$0xff] %vm2006, %v1989
      %2011 = vst.msk [vmem:[#allocation2 + $0x20] sm:$0xff] %vm2006, %v1991
      %2012 = vst.msk [vmem:[#allocation2 + $0x28] sm:$0xff] %vm2006, %v1993
      %2013 = vst.msk [vmem:[#allocation2 + $0x30] sm:$0xff] %vm2006, %v1995
      %2014 = vst.msk [vmem:[#allocation2 + $0x38] sm:$0xff] %vm2006, %v1997
      %2015 = vrot.lane.b32.xlu0 %v775, 108
      %v2016 = vpop.permute.xlu0 %2015
      %2017 = vrot.lane.b32.xlu0 %v776, 108
      %v2018 = vpop.permute.xlu0 %2017
      %2019 = vrot.lane.b32.xlu0 %v777, 108
      %v2020 = vpop.permute.xlu0 %2019
      %2021 = vrot.lane.b32.xlu0 %v778, 108
      %v2022 = vpop.permute.xlu0 %2021
      %2023 = vrot.lane.b32.xlu0 %v775, 76
      %v2024 = vpop.permute.xlu0 %2023
      %2025 = vrot.lane.b32.xlu0 %v776, 76
      %v2026 = vpop.permute.xlu0 %2025
      %2027 = vrot.lane.b32.xlu0 %v777, 76
      %v2028 = vpop.permute.xlu0 %2027
      %2029 = vrot.lane.b32.xlu0 %v778, 76
      %v2030 = vpop.permute.xlu0 %2029
      %v2032 = vsel %vm787, %v2016, 0
      %v2035 = vsel %vm787, %v2018, 0
      %v2038 = vsel %vm787, %v2020, 0
      %v2041 = vsel %vm787, %v2022, 0
      %v2044 = vsel %vm787, %v2024, 0
      %v2047 = vsel %vm787, %v2026, 0
      %v2050 = vsel %vm787, %v2028, 0
      %v2053 = vsel %vm787, %v2030, 0
      %2055 = vmatpush.bf16.xpose.msra.mxu0 0
      %2056 = vmatpush.bf16.xpose.msra.mxu0 0
      %2057 = vmatpush.bf16.xpose.msra.mxu0 0
      %2058 = vmatpush.bf16.xpose.msra.mxu0 0
      %2059 = vmatpush.bf16.xpose.msra.mxu0 %v2053
      %2060 = vmatpush.bf16.xpose.msra.mxu0 %v2050
      %2061 = vmatpush.bf16.xpose.msra.mxu0 %v2047
      %2062 = vmatpush.bf16.xpose.msra.mxu0 %v2044
      %2063 = vmatmul.bf16.gmra.mxu0 %v2032
      %v2064 = vpop.f32.mrf.mxu0
      %v2065 = vadd.f32 0.0, %v2064
      %v2066 = vpop.f32.mrf.mxu0
      %v2067 = vadd.f32 0.0, %v2066
      %2068 = vmatmul.bf16.gmra.mxu0 %v2035
      %v2069 = vpop.f32.mrf.mxu0
      %v2070 = vadd.f32 0.0, %v2069
      %v2071 = vpop.f32.mrf.mxu0
      %v2072 = vadd.f32 0.0, %v2071
      %2073 = vmatmul.bf16.gmra.mxu0 %v2038
      %v2074 = vpop.f32.mrf.mxu0
      %v2075 = vadd.f32 0.0, %v2074
      %v2076 = vpop.f32.mrf.mxu0
      %v2077 = vadd.f32 0.0, %v2076
      %2078 = vmatmul.bf16.gmra.mxu0 %v2041
      %v2079 = vpop.f32.mrf.mxu0
      %v2080 = vadd.f32 0.0, %v2079
      %v2081 = vpop.f32.mrf.mxu0
      %v2082 = vadd.f32 0.0, %v2081
      %2083 = vdwg.mxu0
      %v2084 = vsel %vm841, %v2065, -inf
      %2085 = vmax.xlane.f32.xlu0 %v2084
      %v2086 = vpop.xlane.xlu0 %2085
      %v2087 = vsel %vm841, %v2067, -inf
      %2088 = vmax.xlane.f32.xlu0 %v2087
      %v2089 = vpop.xlane.xlu0 %2088
      %v2090 = vsel %vm841, %v2070, -inf
      %2091 = vmax.xlane.f32.xlu0 %v2090
      %v2092 = vpop.xlane.xlu0 %2091
      %v2093 = vsel %vm841, %v2072, -inf
      %2094 = vmax.xlane.f32.xlu0 %v2093
      %v2095 = vpop.xlane.xlu0 %2094
      %v2096 = vsel %vm841, %v2075, -inf
      %2097 = vmax.xlane.f32.xlu0 %v2096
      %v2098 = vpop.xlane.xlu0 %2097
      %v2099 = vsel %vm841, %v2077, -inf
      %2100 = vmax.xlane.f32.xlu0 %v2099
      %v2101 = vpop.xlane.xlu0 %2100
      %v2102 = vsel %vm841, %v2080, -inf
      %2103 = vmax.xlane.f32.xlu0 %v2102
      %v2104 = vpop.xlane.xlu0 %2103
      %v2105 = vsel %vm841, %v2082, -inf
      %2106 = vmax.xlane.f32.xlu0 %v2105
      %v2107 = vpop.xlane.xlu0 %2106
      %v2108 = vsub.f32 %v2065, %v2086
      %v2109 = vsub.f32 %v2067, %v2089
      %v2110 = vsub.f32 %v2070, %v2092
      %v2111 = vsub.f32 %v2072, %v2095
      %v2112 = vsub.f32 %v2075, %v2098
      %v2113 = vsub.f32 %v2077, %v2101
      %v2114 = vsub.f32 %v2080, %v2104
      %v2115 = vsub.f32 %v2082, %v2107
      %v2116 = vmul.f32 %v2108, 1.442695
      %v2117 = vpow.pop %v2116
      %v2118 = vmul.f32 %v2109, 1.442695
      %v2119 = vpow.pop %v2118
      %v2120 = vmul.f32 %v2110, 1.442695
      %v2121 = vpow.pop %v2120
      %v2122 = vmul.f32 %v2111, 1.442695
      %v2123 = vpow.pop %v2122
      %v2124 = vmul.f32 %v2112, 1.442695
      %v2125 = vpow.pop %v2124
      %v2126 = vmul.f32 %v2113, 1.442695
      %v2127 = vpow.pop %v2126
      %v2128 = vmul.f32 %v2114, 1.442695
      %v2129 = vpow.pop %v2128
      %v2130 = vmul.f32 %v2115, 1.442695
      %v2131 = vpow.pop %v2130
      %v2132 = vsel %vm841, %v2117, 0.0
      %2133 = vadd.xlane.f32.xlu0 %v2132
      %v2134 = vpop.xlane.xlu0 %2133
      %v2135 = vsel %vm841, %v2119, 0.0
      %2136 = vadd.xlane.f32.xlu0 %v2135
      %v2137 = vpop.xlane.xlu0 %2136
      %v2138 = vsel %vm841, %v2121, 0.0
      %2139 = vadd.xlane.f32.xlu0 %v2138
      %v2140 = vpop.xlane.xlu0 %2139
      %v2141 = vsel %vm841, %v2123, 0.0
      %2142 = vadd.xlane.f32.xlu0 %v2141
      %v2143 = vpop.xlane.xlu0 %2142
      %v2144 = vsel %vm841, %v2125, 0.0
      %2145 = vadd.xlane.f32.xlu0 %v2144
      %v2146 = vpop.xlane.xlu0 %2145
      %v2147 = vsel %vm841, %v2127, 0.0
      %2148 = vadd.xlane.f32.xlu0 %v2147
      %v2149 = vpop.xlane.xlu0 %2148
      %v2150 = vsel %vm841, %v2129, 0.0
      %2151 = vadd.xlane.f32.xlu0 %v2150
      %v2152 = vpop.xlane.xlu0 %2151
      %v2153 = vsel %vm841, %v2131, 0.0
      %2154 = vadd.xlane.f32.xlu0 %v2153
      %v2155 = vpop.xlane.xlu0 %2154
      %v2156 = vrcp.pop %v2134
      %v2157 = vrcp.pop %v2137
      %v2158 = vrcp.pop %v2140
      %v2159 = vrcp.pop %v2143
      %v2160 = vrcp.pop %v2146
      %v2161 = vrcp.pop %v2149
      %v2162 = vrcp.pop %v2152
      %v2163 = vrcp.pop %v2155
      %v2164 = vmul.f32 %v2117, %v2156
      %v2165 = vmul.f32 %v2119, %v2157
      %v2166 = vmul.f32 %v2121, %v2158
      %v2167 = vmul.f32 %v2123, %v2159
      %v2168 = vmul.f32 %v2125, %v2160
      %v2169 = vmul.f32 %v2127, %v2161
      %v2170 = vmul.f32 %v2129, %v2162
      %v2171 = vmul.f32 %v2131, %v2163
      %v2172 = vpack.c.bf16 %v2165, %v2164
      %v2173 = vpack.c.bf16 %v2167, %v2166
      %v2174 = vpack.c.bf16 %v2169, %v2168
      %v2175 = vpack.c.bf16 %v2171, %v2170
      %2176 = vrot.lane.b32.xlu0 %v775, 44
      %v2177 = vpop.permute.xlu0 %2176
      %2178 = vrot.lane.b32.xlu0 %v776, 44
      %v2179 = vpop.permute.xlu0 %2178
      %2180 = vrot.lane.b32.xlu0 %v777, 44
      %v2181 = vpop.permute.xlu0 %2180
      %2182 = vrot.lane.b32.xlu0 %v778, 44
      %v2183 = vpop.permute.xlu0 %2182
      %v2189 = vsel %vm841, %v2172, 0
      %v2192 = vsel %vm841, %v2173, 0
      %v2195 = vsel %vm841, %v2174, 0
      %v2198 = vsel %vm841, %v2175, 0
      %2200 = vmatpush.bf16.msra.mxu0 0
      %2201 = vmatpush.bf16.msra.mxu0 0
      %2202 = vmatpush.bf16.msra.mxu0 0
      %2203 = vmatpush.bf16.msra.mxu0 0
      %2204 = vmatpush.bf16.msra.mxu0 %v2183
      %2205 = vmatpush.bf16.msra.mxu0 %v2181
      %2206 = vmatpush.bf16.msra.mxu0 %v2179
      %2207 = vmatpush.bf16.msra.mxu0 %v2177
      %2208 = vmatmul.bf16.gmra.mxu0 %v2189
      %v2209 = vpop.f32.mrf.mxu0
      %v2210 = vadd.f32 0.0, %v2209
      %v2211 = vpop.f32.mrf.mxu0
      %v2212 = vadd.f32 0.0, %v2211
      %2213 = vmatmul.bf16.gmra.mxu0 %v2192
      %v2214 = vpop.f32.mrf.mxu0
      %v2215 = vadd.f32 0.0, %v2214
      %v2216 = vpop.f32.mrf.mxu0
      %v2217 = vadd.f32 0.0, %v2216
      %2218 = vmatmul.bf16.gmra.mxu0 %v2195
      %v2219 = vpop.f32.mrf.mxu0
      %v2220 = vadd.f32 0.0, %v2219
      %v2221 = vpop.f32.mrf.mxu0
      %v2222 = vadd.f32 0.0, %v2221
      %2223 = vmatmul.bf16.gmra.mxu0 %v2198
      %v2224 = vpop.f32.mrf.mxu0
      %v2225 = vadd.f32 0.0, %v2224
      %v2226 = vpop.f32.mrf.mxu0
      %v2227 = vadd.f32 0.0, %v2226
      %2228 = vdwg.mxu0
      %2237 = vrot.lane.b32.xlu0 %v2210, 20
      %v2238 = vpop.permute.xlu0 %2237
      %2239 = vrot.lane.b32.xlu0 %v2212, 20
      %v2240 = vpop.permute.xlu0 %2239
      %2241 = vrot.lane.b32.xlu0 %v2215, 20
      %v2242 = vpop.permute.xlu0 %2241
      %2243 = vrot.lane.b32.xlu0 %v2217, 20
      %v2244 = vpop.permute.xlu0 %2243
      %2245 = vrot.lane.b32.xlu0 %v2220, 20
      %v2246 = vpop.permute.xlu0 %2245
      %2247 = vrot.lane.b32.xlu0 %v2222, 20
      %v2248 = vpop.permute.xlu0 %2247
      %2249 = vrot.lane.b32.xlu0 %v2225, 20
      %v2250 = vpop.permute.xlu0 %2249
      %2251 = vrot.lane.b32.xlu0 %v2227, 20
      %v2252 = vpop.permute.xlu0 %2251
      %vm2261 = vcmask 195744
      %2262 = vst.msk [vmem:[#allocation2] sm:$0xff] %vm2261, %v2238
      %2263 = vst.msk [vmem:[#allocation2 + $0x8] sm:$0xff] %vm2261, %v2240
      %2264 = vst.msk [vmem:[#allocation2 + $0x10] sm:$0xff] %vm2261, %v2242
      %2265 = vst.msk [vmem:[#allocation2 + $0x18] sm:$0xff] %vm2261, %v2244
      %2266 = vst.msk [vmem:[#allocation2 + $0x20] sm:$0xff] %vm2261, %v2246
      %2267 = vst.msk [vmem:[#allocation2 + $0x28] sm:$0xff] %vm2261, %v2248
      %2268 = vst.msk [vmem:[#allocation2 + $0x30] sm:$0xff] %vm2261, %v2250
      %2269 = vst.msk [vmem:[#allocation2 + $0x38] sm:$0xff] %vm2261, %v2252
      %2270 = vrot.lane.b32.xlu0 %v775, 104
      %v2271 = vpop.permute.xlu0 %2270
      %2272 = vrot.lane.b32.xlu0 %v776, 104
      %v2273 = vpop.permute.xlu0 %2272
      %2274 = vrot.lane.b32.xlu0 %v777, 104
      %v2275 = vpop.permute.xlu0 %2274
      %2276 = vrot.lane.b32.xlu0 %v778, 104
      %v2277 = vpop.permute.xlu0 %2276
      %2278 = vrot.lane.b32.xlu0 %v775, 72
      %v2279 = vpop.permute.xlu0 %2278
      %2280 = vrot.lane.b32.xlu0 %v776, 72
      %v2281 = vpop.permute.xlu0 %2280
      %2282 = vrot.lane.b32.xlu0 %v777, 72
      %v2283 = vpop.permute.xlu0 %2282
      %2284 = vrot.lane.b32.xlu0 %v778, 72
      %v2285 = vpop.permute.xlu0 %2284
      %v2287 = vsel %vm787, %v2271, 0
      %v2290 = vsel %vm787, %v2273, 0
      %v2293 = vsel %vm787, %v2275, 0
      %v2296 = vsel %vm787, %v2277, 0
      %v2299 = vsel %vm787, %v2279, 0
      %v2302 = vsel %vm787, %v2281, 0
      %v2305 = vsel %vm787, %v2283, 0
      %v2308 = vsel %vm787, %v2285, 0
      %2310 = vmatpush.bf16.xpose.msra.mxu0 0
      %2311 = vmatpush.bf16.xpose.msra.mxu0 0
      %2312 = vmatpush.bf16.xpose.msra.mxu0 0
      %2313 = vmatpush.bf16.xpose.msra.mxu0 0
      %2314 = vmatpush.bf16.xpose.msra.mxu0 %v2308
      %2315 = vmatpush.bf16.xpose.msra.mxu0 %v2305
      %2316 = vmatpush.bf16.xpose.msra.mxu0 %v2302
      %2317 = vmatpush.bf16.xpose.msra.mxu0 %v2299
      %2318 = vmatmul.bf16.gmra.mxu0 %v2287
      %v2319 = vpop.f32.mrf.mxu0
      %v2320 = vadd.f32 0.0, %v2319
      %v2321 = vpop.f32.mrf.mxu0
      %v2322 = vadd.f32 0.0, %v2321
      %2323 = vmatmul.bf16.gmra.mxu0 %v2290
      %v2324 = vpop.f32.mrf.mxu0
      %v2325 = vadd.f32 0.0, %v2324
      %v2326 = vpop.f32.mrf.mxu0
      %v2327 = vadd.f32 0.0, %v2326
      %2328 = vmatmul.bf16.gmra.mxu0 %v2293
      %v2329 = vpop.f32.mrf.mxu0
      %v2330 = vadd.f32 0.0, %v2329
      %v2331 = vpop.f32.mrf.mxu0
      %v2332 = vadd.f32 0.0, %v2331
      %2333 = vmatmul.bf16.gmra.mxu0 %v2296
      %v2334 = vpop.f32.mrf.mxu0
      %v2335 = vadd.f32 0.0, %v2334
      %v2336 = vpop.f32.mrf.mxu0
      %v2337 = vadd.f32 0.0, %v2336
      %2338 = vdwg.mxu0
      %v2339 = vsel %vm841, %v2320, -inf
      %2340 = vmax.xlane.f32.xlu0 %v2339
      %v2341 = vpop.xlane.xlu0 %2340
      %v2342 = vsel %vm841, %v2322, -inf
      %2343 = vmax.xlane.f32.xlu0 %v2342
      %v2344 = vpop.xlane.xlu0 %2343
      %v2345 = vsel %vm841, %v2325, -inf
      %2346 = vmax.xlane.f32.xlu0 %v2345
      %v2347 = vpop.xlane.xlu0 %2346
      %v2348 = vsel %vm841, %v2327, -inf
      %2349 = vmax.xlane.f32.xlu0 %v2348
      %v2350 = vpop.xlane.xlu0 %2349
      %v2351 = vsel %vm841, %v2330, -inf
      %2352 = vmax.xlane.f32.xlu0 %v2351
      %v2353 = vpop.xlane.xlu0 %2352
      %v2354 = vsel %vm841, %v2332, -inf
      %2355 = vmax.xlane.f32.xlu0 %v2354
      %v2356 = vpop.xlane.xlu0 %2355
      %v2357 = vsel %vm841, %v2335, -inf
      %2358 = vmax.xlane.f32.xlu0 %v2357
      %v2359 = vpop.xlane.xlu0 %2358
      %v2360 = vsel %vm841, %v2337, -inf
      %2361 = vmax.xlane.f32.xlu0 %v2360
      %v2362 = vpop.xlane.xlu0 %2361
      %v2363 = vsub.f32 %v2320, %v2341
      %v2364 = vsub.f32 %v2322, %v2344
      %v2365 = vsub.f32 %v2325, %v2347
      %v2366 = vsub.f32 %v2327, %v2350
      %v2367 = vsub.f32 %v2330, %v2353
      %v2368 = vsub.f32 %v2332, %v2356
      %v2369 = vsub.f32 %v2335, %v2359
      %v2370 = vsub.f32 %v2337, %v2362
      %v2371 = vmul.f32 %v2363, 1.442695
      %v2372 = vpow.pop %v2371
      %v2373 = vmul.f32 %v2364, 1.442695
      %v2374 = vpow.pop %v2373
      %v2375 = vmul.f32 %v2365, 1.442695
      %v2376 = vpow.pop %v2375
      %v2377 = vmul.f32 %v2366, 1.442695
      %v2378 = vpow.pop %v2377
      %v2379 = vmul.f32 %v2367, 1.442695
      %v2380 = vpow.pop %v2379
      %v2381 = vmul.f32 %v2368, 1.442695
      %v2382 = vpow.pop %v2381
      %v2383 = vmul.f32 %v2369, 1.442695
      %v2384 = vpow.pop %v2383
      %v2385 = vmul.f32 %v2370, 1.442695
      %v2386 = vpow.pop %v2385
      %v2387 = vsel %vm841, %v2372, 0.0
      %2388 = vadd.xlane.f32.xlu0 %v2387
      %v2389 = vpop.xlane.xlu0 %2388
      %v2390 = vsel %vm841, %v2374, 0.0
      %2391 = vadd.xlane.f32.xlu0 %v2390
      %v2392 = vpop.xlane.xlu0 %2391
      %v2393 = vsel %vm841, %v2376, 0.0
      %2394 = vadd.xlane.f32.xlu0 %v2393
      %v2395 = vpop.xlane.xlu0 %2394
      %v2396 = vsel %vm841, %v2378, 0.0
      %2397 = vadd.xlane.f32.xlu0 %v2396
      %v2398 = vpop.xlane.xlu0 %2397
      %v2399 = vsel %vm841, %v2380, 0.0
      %2400 = vadd.xlane.f32.xlu0 %v2399
      %v2401 = vpop.xlane.xlu0 %2400
      %v2402 = vsel %vm841, %v2382, 0.0
      %2403 = vadd.xlane.f32.xlu0 %v2402
      %v2404 = vpop.xlane.xlu0 %2403
      %v2405 = vsel %vm841, %v2384, 0.0
      %2406 = vadd.xlane.f32.xlu0 %v2405
      %v2407 = vpop.xlane.xlu0 %2406
      %v2408 = vsel %vm841, %v2386, 0.0
      %2409 = vadd.xlane.f32.xlu0 %v2408
      %v2410 = vpop.xlane.xlu0 %2409
      %v2411 = vrcp.pop %v2389
      %v2412 = vrcp.pop %v2392
      %v2413 = vrcp.pop %v2395
      %v2414 = vrcp.pop %v2398
      %v2415 = vrcp.pop %v2401
      %v2416 = vrcp.pop %v2404
      %v2417 = vrcp.pop %v2407
      %v2418 = vrcp.pop %v2410
      %v2419 = vmul.f32 %v2372, %v2411
      %v2420 = vmul.f32 %v2374, %v2412
      %v2421 = vmul.f32 %v2376, %v2413
      %v2422 = vmul.f32 %v2378, %v2414
      %v2423 = vmul.f32 %v2380, %v2415
      %v2424 = vmul.f32 %v2382, %v2416
      %v2425 = vmul.f32 %v2384, %v2417
      %v2426 = vmul.f32 %v2386, %v2418
      %v2427 = vpack.c.bf16 %v2420, %v2419
      %v2428 = vpack.c.bf16 %v2422, %v2421
      %v2429 = vpack.c.bf16 %v2424, %v2423
      %v2430 = vpack.c.bf16 %v2426, %v2425
      %2431 = vrot.lane.b32.xlu0 %v775, 40
      %v2432 = vpop.permute.xlu0 %2431
      %2433 = vrot.lane.b32.xlu0 %v776, 40
      %v2434 = vpop.permute.xlu0 %2433
      %2435 = vrot.lane.b32.xlu0 %v777, 40
      %v2436 = vpop.permute.xlu0 %2435
      %2437 = vrot.lane.b32.xlu0 %v778, 40
      %v2438 = vpop.permute.xlu0 %2437
      %v2444 = vsel %vm841, %v2427, 0
      %v2447 = vsel %vm841, %v2428, 0
      %v2450 = vsel %vm841, %v2429, 0
      %v2453 = vsel %vm841, %v2430, 0
      %2455 = vmatpush.bf16.msra.mxu0 0
      %2456 = vmatpush.bf16.msra.mxu0 0
      %2457 = vmatpush.bf16.msra.mxu0 0
      %2458 = vmatpush.bf16.msra.mxu0 0
      %2459 = vmatpush.bf16.msra.mxu0 %v2438
      %2460 = vmatpush.bf16.msra.mxu0 %v2436
      %2461 = vmatpush.bf16.msra.mxu0 %v2434
      %2462 = vmatpush.bf16.msra.mxu0 %v2432
      %2463 = vmatmul.bf16.gmra.mxu0 %v2444
      %v2464 = vpop.f32.mrf.mxu0
      %v2465 = vadd.f32 0.0, %v2464
      %v2466 = vpop.f32.mrf.mxu0
      %v2467 = vadd.f32 0.0, %v2466
      %2468 = vmatmul.bf16.gmra.mxu0 %v2447
      %v2469 = vpop.f32.mrf.mxu0
      %v2470 = vadd.f32 0.0, %v2469
      %v2471 = vpop.f32.mrf.mxu0
      %v2472 = vadd.f32 0.0, %v2471
      %2473 = vmatmul.bf16.gmra.mxu0 %v2450
      %v2474 = vpop.f32.mrf.mxu0
      %v2475 = vadd.f32 0.0, %v2474
      %v2476 = vpop.f32.mrf.mxu0
      %v2477 = vadd.f32 0.0, %v2476
      %2478 = vmatmul.bf16.gmra.mxu0 %v2453
      %v2479 = vpop.f32.mrf.mxu0
      %v2480 = vadd.f32 0.0, %v2479
      %v2481 = vpop.f32.mrf.mxu0
      %v2482 = vadd.f32 0.0, %v2481
      %2483 = vdwg.mxu0
      %2492 = vrot.lane.b32.xlu0 %v2465, 24
      %v2493 = vpop.permute.xlu0 %2492
      %2494 = vrot.lane.b32.xlu0 %v2467, 24
      %v2495 = vpop.permute.xlu0 %2494
      %2496 = vrot.lane.b32.xlu0 %v2470, 24
      %v2497 = vpop.permute.xlu0 %2496
      %2498 = vrot.lane.b32.xlu0 %v2472, 24
      %v2499 = vpop.permute.xlu0 %2498
      %2500 = vrot.lane.b32.xlu0 %v2475, 24
      %v2501 = vpop.permute.xlu0 %2500
      %2502 = vrot.lane.b32.xlu0 %v2477, 24
      %v2503 = vpop.permute.xlu0 %2502
      %2504 = vrot.lane.b32.xlu0 %v2480, 24
      %v2505 = vpop.permute.xlu0 %2504
      %2506 = vrot.lane.b32.xlu0 %v2482, 24
      %v2507 = vpop.permute.xlu0 %2506
      %vm2516 = vcmask 228544
      %2517 = vst.msk [vmem:[#allocation2] sm:$0xff] %vm2516, %v2493
      %2518 = vst.msk [vmem:[#allocation2 + $0x8] sm:$0xff] %vm2516, %v2495
      %2519 = vst.msk [vmem:[#allocation2 + $0x10] sm:$0xff] %vm2516, %v2497
      %2520 = vst.msk [vmem:[#allocation2 + $0x18] sm:$0xff] %vm2516, %v2499
      %2521 = vst.msk [vmem:[#allocation2 + $0x20] sm:$0xff] %vm2516, %v2501
      %2522 = vst.msk [vmem:[#allocation2 + $0x28] sm:$0xff] %vm2516, %v2503
      %2523 = vst.msk [vmem:[#allocation2 + $0x30] sm:$0xff] %vm2516, %v2505
      %2524 = vst.msk [vmem:[#allocation2 + $0x38] sm:$0xff] %vm2516, %v2507
      %2525 = vrot.lane.b32.xlu0 %v775, 100
      %v2526 = vpop.permute.xlu0 %2525
      %2527 = vrot.lane.b32.xlu0 %v776, 100
      %v2528 = vpop.permute.xlu0 %2527
      %2529 = vrot.lane.b32.xlu0 %v777, 100
      %v2530 = vpop.permute.xlu0 %2529
      %2531 = vrot.lane.b32.xlu0 %v778, 100
      %v2532 = vpop.permute.xlu0 %2531
      %2533 = vrot.lane.b32.xlu0 %v775, 68
      %v2534 = vpop.permute.xlu0 %2533
      %2535 = vrot.lane.b32.xlu0 %v776, 68
      %v2536 = vpop.permute.xlu0 %2535
      %2537 = vrot.lane.b32.xlu0 %v777, 68
      %v2538 = vpop.permute.xlu0 %2537
      %2539 = vrot.lane.b32.xlu0 %v778, 68
      %v2540 = vpop.permute.xlu0 %2539
      %v2542 = vsel %vm787, %v2526, 0
      %v2545 = vsel %vm787, %v2528, 0
      %v2548 = vsel %vm787, %v2530, 0
      %v2551 = vsel %vm787, %v2532, 0
      %v2554 = vsel %vm787, %v2534, 0
      %v2557 = vsel %vm787, %v2536, 0
      %v2560 = vsel %vm787, %v2538, 0
      %v2563 = vsel %vm787, %v2540, 0
      %2565 = vmatpush.bf16.xpose.msra.mxu0 0
      %2566 = vmatpush.bf16.xpose.msra.mxu0 0
      %2567 = vmatpush.bf16.xpose.msra.mxu0 0
      %2568 = vmatpush.bf16.xpose.msra.mxu0 0
      %2569 = vmatpush.bf16.xpose.msra.mxu0 %v2563
      %2570 = vmatpush.bf16.xpose.msra.mxu0 %v2560
      %2571 = vmatpush.bf16.xpose.msra.mxu0 %v2557
      %2572 = vmatpush.bf16.xpose.msra.mxu0 %v2554
      %2573 = vmatmul.bf16.gmra.mxu0 %v2542
      %v2574 = vpop.f32.mrf.mxu0
      %v2575 = vadd.f32 0.0, %v2574
      %v2576 = vpop.f32.mrf.mxu0
      %v2577 = vadd.f32 0.0, %v2576
      %2578 = vmatmul.bf16.gmra.mxu0 %v2545
      %v2579 = vpop.f32.mrf.mxu0
      %v2580 = vadd.f32 0.0, %v2579
      %v2581 = vpop.f32.mrf.mxu0
      %v2582 = vadd.f32 0.0, %v2581
      %2583 = vmatmul.bf16.gmra.mxu0 %v2548
      %v2584 = vpop.f32.mrf.mxu0
      %v2585 = vadd.f32 0.0, %v2584
      %v2586 = vpop.f32.mrf.mxu0
      %v2587 = vadd.f32 0.0, %v2586
      %2588 = vmatmul.bf16.gmra.mxu0 %v2551
      %v2589 = vpop.f32.mrf.mxu0
      %v2590 = vadd.f32 0.0, %v2589
      %v2591 = vpop.f32.mrf.mxu0
      %v2592 = vadd.f32 0.0, %v2591
      %2593 = vdwg.mxu0
      %v2594 = vsel %vm841, %v2575, -inf
      %2595 = vmax.xlane.f32.xlu0 %v2594
      %v2596 = vpop.xlane.xlu0 %2595
      %v2597 = vsel %vm841, %v2577, -inf
      %2598 = vmax.xlane.f32.xlu0 %v2597
      %v2599 = vpop.xlane.xlu0 %2598
      %v2600 = vsel %vm841, %v2580, -inf
      %2601 = vmax.xlane.f32.xlu0 %v2600
      %v2602 = vpop.xlane.xlu0 %2601
      %v2603 = vsel %vm841, %v2582, -inf
      %2604 = vmax.xlane.f32.xlu0 %v2603
      %v2605 = vpop.xlane.xlu0 %2604
      %v2606 = vsel %vm841, %v2585, -inf
      %2607 = vmax.xlane.f32.xlu0 %v2606
      %v2608 = vpop.xlane.xlu0 %2607
      %v2609 = vsel %vm841, %v2587, -inf
      %2610 = vmax.xlane.f32.xlu0 %v2609
      %v2611 = vpop.xlane.xlu0 %2610
      %v2612 = vsel %vm841, %v2590, -inf
      %2613 = vmax.xlane.f32.xlu0 %v2612
      %v2614 = vpop.xlane.xlu0 %2613
      %v2615 = vsel %vm841, %v2592, -inf
      %2616 = vmax.xlane.f32.xlu0 %v2615
      %v2617 = vpop.xlane.xlu0 %2616
      %v2618 = vsub.f32 %v2575, %v2596
      %v2619 = vsub.f32 %v2577, %v2599
      %v2620 = vsub.f32 %v2580, %v2602
      %v2621 = vsub.f32 %v2582, %v2605
      %v2622 = vsub.f32 %v2585, %v2608
      %v2623 = vsub.f32 %v2587, %v2611
      %v2624 = vsub.f32 %v2590, %v2614
      %v2625 = vsub.f32 %v2592, %v2617
      %v2626 = vmul.f32 %v2618, 1.442695
      %v2627 = vpow.pop %v2626
      %v2628 = vmul.f32 %v2619, 1.442695
      %v2629 = vpow.pop %v2628
      %v2630 = vmul.f32 %v2620, 1.442695
      %v2631 = vpow.pop %v2630
      %v2632 = vmul.f32 %v2621, 1.442695
      %v2633 = vpow.pop %v2632
      %v2634 = vmul.f32 %v2622, 1.442695
      %v2635 = vpow.pop %v2634
      %v2636 = vmul.f32 %v2623, 1.442695
      %v2637 = vpow.pop %v2636
      %v2638 = vmul.f32 %v2624, 1.442695
      %v2639 = vpow.pop %v2638
      %v2640 = vmul.f32 %v2625, 1.442695
      %v2641 = vpow.pop %v2640
      %v2642 = vsel %vm841, %v2627, 0.0
      %2643 = vadd.xlane.f32.xlu0 %v2642
      %v2644 = vpop.xlane.xlu0 %2643
      %v2645 = vsel %vm841, %v2629, 0.0
      %2646 = vadd.xlane.f32.xlu0 %v2645
      %v2647 = vpop.xlane.xlu0 %2646
      %v2648 = vsel %vm841, %v2631, 0.0
      %2649 = vadd.xlane.f32.xlu0 %v2648
      %v2650 = vpop.xlane.xlu0 %2649
      %v2651 = vsel %vm841, %v2633, 0.0
      %2652 = vadd.xlane.f32.xlu0 %v2651
      %v2653 = vpop.xlane.xlu0 %2652
      %v2654 = vsel %vm841, %v2635, 0.0
      %2655 = vadd.xlane.f32.xlu0 %v2654
      %v2656 = vpop.xlane.xlu0 %2655
      %v2657 = vsel %vm841, %v2637, 0.0
      %2658 = vadd.xlane.f32.xlu0 %v2657
      %v2659 = vpop.xlane.xlu0 %2658
      %v2660 = vsel %vm841, %v2639, 0.0
      %2661 = vadd.xlane.f32.xlu0 %v2660
      %v2662 = vpop.xlane.xlu0 %2661
      %v2663 = vsel %vm841, %v2641, 0.0
      %2664 = vadd.xlane.f32.xlu0 %v2663
      %v2665 = vpop.xlane.xlu0 %2664
      %v2666 = vrcp.pop %v2644
      %v2667 = vrcp.pop %v2647
      %v2668 = vrcp.pop %v2650
      %v2669 = vrcp.pop %v2653
      %v2670 = vrcp.pop %v2656
      %v2671 = vrcp.pop %v2659
      %v2672 = vrcp.pop %v2662
      %v2673 = vrcp.pop %v2665
      %v2674 = vmul.f32 %v2627, %v2666
      %v2675 = vmul.f32 %v2629, %v2667
      %v2676 = vmul.f32 %v2631, %v2668
      %v2677 = vmul.f32 %v2633, %v2669
      %v2678 = vmul.f32 %v2635, %v2670
      %v2679 = vmul.f32 %v2637, %v2671
      %v2680 = vmul.f32 %v2639, %v2672
      %v2681 = vmul.f32 %v2641, %v2673
      %v2682 = vpack.c.bf16 %v2675, %v2674
      %v2683 = vpack.c.bf16 %v2677, %v2676
      %v2684 = vpack.c.bf16 %v2679, %v2678
      %v2685 = vpack.c.bf16 %v2681, %v2680
      %2686 = vrot.lane.b32.xlu0 %v775, 36
      %v2687 = vpop.permute.xlu0 %2686
      %2688 = vrot.lane.b32.xlu0 %v776, 36
      %v2689 = vpop.permute.xlu0 %2688
      %2690 = vrot.lane.b32.xlu0 %v777, 36
      %v2691 = vpop.permute.xlu0 %2690
      %2692 = vrot.lane.b32.xlu0 %v778, 36
      %v2693 = vpop.permute.xlu0 %2692
      %v2699 = vsel %vm841, %v2682, 0
      %v2702 = vsel %vm841, %v2683, 0
      %v2705 = vsel %vm841, %v2684, 0
      %v2708 = vsel %vm841, %v2685, 0
      %2710 = vmatpush.bf16.msra.mxu0 0
      %2711 = vmatpush.bf16.msra.mxu0 0
      %2712 = vmatpush.bf16.msra.mxu0 0
      %2713 = vmatpush.bf16.msra.mxu0 0
      %2714 = vmatpush.bf16.msra.mxu0 %v2693
      %2715 = vmatpush.bf16.msra.mxu0 %v2691
      %2716 = vmatpush.bf16.msra.mxu0 %v2689
      %2717 = vmatpush.bf16.msra.mxu0 %v2687
      %2718 = vmatmul.bf16.gmra.mxu0 %v2699
      %v2719 = vpop.f32.mrf.mxu0
      %v2720 = vadd.f32 0.0, %v2719
      %v2721 = vpop.f32.mrf.mxu0
      %v2722 = vadd.f32 0.0, %v2721
      %2723 = vmatmul.bf16.gmra.mxu0 %v2702
      %v2724 = vpop.f32.mrf.mxu0
      %v2725 = vadd.f32 0.0, %v2724
      %v2726 = vpop.f32.mrf.mxu0
      %v2727 = vadd.f32 0.0, %v2726
      %2728 = vmatmul.bf16.gmra.mxu0 %v2705
      %v2729 = vpop.f32.mrf.mxu0
      %v2730 = vadd.f32 0.0, %v2729
      %v2731 = vpop.f32.mrf.mxu0
      %v2732 = vadd.f32 0.0, %v2731
      %2733 = vmatmul.bf16.gmra.mxu0 %v2708
      %v2734 = vpop.f32.mrf.mxu0
      %v2735 = vadd.f32 0.0, %v2734
      %v2736 = vpop.f32.mrf.mxu0
      %v2737 = vadd.f32 0.0, %v2736
      %2738 = vdwg.mxu0
      %2747 = vrot.lane.b32.xlu0 %v2720, 28
      %v2748 = vpop.permute.xlu0 %2747
      %2749 = vrot.lane.b32.xlu0 %v2722, 28
      %v2750 = vpop.permute.xlu0 %2749
      %2751 = vrot.lane.b32.xlu0 %v2725, 28
      %v2752 = vpop.permute.xlu0 %2751
      %2753 = vrot.lane.b32.xlu0 %v2727, 28
      %v2754 = vpop.permute.xlu0 %2753
      %2755 = vrot.lane.b32.xlu0 %v2730, 28
      %v2756 = vpop.permute.xlu0 %2755
      %2757 = vrot.lane.b32.xlu0 %v2732, 28
      %v2758 = vpop.permute.xlu0 %2757
      %2759 = vrot.lane.b32.xlu0 %v2735, 28
      %v2760 = vpop.permute.xlu0 %2759
      %2761 = vrot.lane.b32.xlu0 %v2737, 28
      %v2762 = vpop.permute.xlu0 %2761
      %vm2771 = vcmask 261344
      %2772 = vst.msk [vmem:[#allocation2] sm:$0xff] %vm2771, %v2748
      %2773 = vst.msk [vmem:[#allocation2 + $0x8] sm:$0xff] %vm2771, %v2750
      %2774 = vst.msk [vmem:[#allocation2 + $0x10] sm:$0xff] %vm2771, %v2752
      %2775 = vst.msk [vmem:[#allocation2 + $0x18] sm:$0xff] %vm2771, %v2754
      %2776 = vst.msk [vmem:[#allocation2 + $0x20] sm:$0xff] %vm2771, %v2756
      %2777 = vst.msk [vmem:[#allocation2 + $0x28] sm:$0xff] %vm2771, %v2758
      %2778 = vst.msk [vmem:[#allocation2 + $0x30] sm:$0xff] %vm2771, %v2760
      %2779 = vst.msk [vmem:[#allocation2 + $0x38] sm:$0xff] %vm2771, %v2762
      %v2780 = vld [vmem:[#allocation2] sm:$0xff]
      %v2781 = vld [vmem:[#allocation2 + $0x8] sm:$0xff]
      %v2782 = vld [vmem:[#allocation2 + $0x10] sm:$0xff]
      %v2783 = vld [vmem:[#allocation2 + $0x18] sm:$0xff]
      %v2784 = vld [vmem:[#allocation2 + $0x20] sm:$0xff]
      %v2785 = vld [vmem:[#allocation2 + $0x28] sm:$0xff]
      %v2786 = vld [vmem:[#allocation2 + $0x30] sm:$0xff]
      %v2787 = vld [vmem:[#allocation2 + $0x38] sm:$0xff]
      %v2788 = vpack.c.bf16 %v2781, %v2780
      %v2789 = vpack.c.bf16 %v2783, %v2782
      %v2790 = vpack.c.bf16 %v2785, %v2784
      %v2791 = vpack.c.bf16 %v2787, %v2786
      %v2792 = vld [vmem:[%s3] sm:$0xf]
      %v2793 = vld [vmem:[%s3 + $0x4] sm:$0xf]
      %v2794 = vld [vmem:[%s3 + $0x8] sm:$0xf]
      %v2795 = vld [vmem:[%s3 + $0xc] sm:$0xf]
      %v2796 = vld [vmem:[%s4] sm:$0x1]
      %v2798 = vperm.slane %v2796, 0
      %v2804 = vunpack.c.l.b16 %v2792
      %v2805 = vunpack.c.l.b16 %v2793
      %v2806 = vunpack.c.l.b16 %v2794
      %v2807 = vunpack.c.l.b16 %v2795
      %v2808 = vpack.c.b16 %v2805, %v2804
      %v2809 = vpack.c.b16 %v2807, %v2806
      %v2813 = vsel %vm480, %v2788, 0
      %v2816 = vsel %vm480, %v2789, 0
      %v2819 = vsel %vm480, %v2790, 0
      %v2822 = vsel %vm480, %v2791, 0
      %2824 = vmatpush.bf16.msra.mxu0 0
      %2825 = vmatpush.bf16.msra.mxu0 0
      %2826 = vmatpush.bf16.msra.mxu0 0
      %2827 = vmatpush.bf16.msra.mxu0 0
      %2828 = vmatpush.bf16.msra.mxu0 0
      %2829 = vmatpush.bf16.msra.mxu0 0
      %2830 = vmatpush.bf16.msra.mxu0 %v2809
      %2831 = vmatpush.bf16.msra.mxu0 %v2808
      %2832 = vmatmul.bf16.gmra.mxu0 %v2813
      %v2833 = vpop.f32.mrf.mxu0
      %v2834 = vadd.f32 %v2798, %v2833
      %v2835 = vpop.f32.mrf.mxu0
      %v2836 = vadd.f32 %v2798, %v2835
      %2837 = vmatmul.bf16.gmra.mxu0 %v2816
      %v2838 = vpop.f32.mrf.mxu0
      %v2839 = vadd.f32 %v2798, %v2838
      %v2840 = vpop.f32.mrf.mxu0
      %v2841 = vadd.f32 %v2798, %v2840
      %2842 = vmatmul.bf16.gmra.mxu0 %v2819
      %v2843 = vpop.f32.mrf.mxu0
      %v2844 = vadd.f32 %v2798, %v2843
      %v2845 = vpop.f32.mrf.mxu0
      %v2846 = vadd.f32 %v2798, %v2845
      %2847 = vmatmul.bf16.gmra.mxu0 %v2822
      %v2848 = vpop.f32.mrf.mxu0
      %v2849 = vadd.f32 %v2798, %v2848
      %v2850 = vpop.f32.mrf.mxu0
      %v2851 = vadd.f32 %v2798, %v2850
      %2852 = vdwg.mxu0
      %v2853 = vadd.f32 %v462, %v2834
      %v2854 = vadd.f32 %v463, %v2836
      %v2855 = vadd.f32 %v464, %v2839
      %v2856 = vadd.f32 %v465, %v2841
      %v2857 = vadd.f32 %v466, %v2844
      %v2858 = vadd.f32 %v467, %v2846
      %v2859 = vadd.f32 %v468, %v2849
      %v2860 = vadd.f32 %v469, %v2851
      %v2861 = vld [vmem:[%s7] sm:$0x1]
      %v2862 = vld [vmem:[%s8] sm:$0x1]
      %v2863 = vsel %vm480, %v2853, 0.0
      %2864 = vadd.xlane.f32.xlu0 %v2863
      %v2865 = vpop.xlane.xlu0 %2864
      %v2866 = vsel %vm480, %v2854, 0.0
      %2867 = vadd.xlane.f32.xlu0 %v2866
      %v2868 = vpop.xlane.xlu0 %2867
      %v2869 = vsel %vm480, %v2855, 0.0
      %2870 = vadd.xlane.f32.xlu0 %v2869
      %v2871 = vpop.xlane.xlu0 %2870
      %v2872 = vsel %vm480, %v2856, 0.0
      %2873 = vadd.xlane.f32.xlu0 %v2872
      %v2874 = vpop.xlane.xlu0 %2873
      %v2875 = vsel %vm480, %v2857, 0.0
      %2876 = vadd.xlane.f32.xlu0 %v2875
      %v2877 = vpop.xlane.xlu0 %2876
      %v2878 = vsel %vm480, %v2858, 0.0
      %2879 = vadd.xlane.f32.xlu0 %v2878
      %v2880 = vpop.xlane.xlu0 %2879
      %v2881 = vsel %vm480, %v2859, 0.0
      %2882 = vadd.xlane.f32.xlu0 %v2881
      %v2883 = vpop.xlane.xlu0 %2882
      %v2884 = vsel %vm480, %v2860, 0.0
      %2885 = vadd.xlane.f32.xlu0 %v2884
      %v2886 = vpop.xlane.xlu0 %2885
      %v2887 = vmul.f32 %v2865, %v511
      %v2888 = vmul.f32 %v2868, %v511
      %v2889 = vmul.f32 %v2871, %v511
      %v2890 = vmul.f32 %v2874, %v511
      %v2891 = vmul.f32 %v2877, %v511
      %v2892 = vmul.f32 %v2880, %v511
      %v2893 = vmul.f32 %v2883, %v511
      %v2894 = vmul.f32 %v2886, %v511
      %v2895 = vsub.f32 %v2853, %v2887
      %v2896 = vsub.f32 %v2854, %v2888
      %v2897 = vsub.f32 %v2855, %v2889
      %v2898 = vsub.f32 %v2856, %v2890
      %v2899 = vsub.f32 %v2857, %v2891
      %v2900 = vsub.f32 %v2858, %v2892
      %v2901 = vsub.f32 %v2859, %v2893
      %v2902 = vsub.f32 %v2860, %v2894
      %v2903 = vmul.f32 %v2895, %v2895
      %v2904 = vmul.f32 %v2896, %v2896
      %v2905 = vmul.f32 %v2897, %v2897
      %v2906 = vmul.f32 %v2898, %v2898
      %v2907 = vmul.f32 %v2899, %v2899
      %v2908 = vmul.f32 %v2900, %v2900
      %v2909 = vmul.f32 %v2901, %v2901
      %v2910 = vmul.f32 %v2902, %v2902
      %v2911 = vsel %vm480, %v2903, 0.0
      %2912 = vadd.xlane.f32.xlu0 %v2911
      %v2913 = vpop.xlane.xlu0 %2912
      %v2914 = vsel %vm480, %v2904, 0.0
      %2915 = vadd.xlane.f32.xlu0 %v2914
      %v2916 = vpop.xlane.xlu0 %2915
      %v2917 = vsel %vm480, %v2905, 0.0
      %2918 = vadd.xlane.f32.xlu0 %v2917
      %v2919 = vpop.xlane.xlu0 %2918
      %v2920 = vsel %vm480, %v2906, 0.0
      %2921 = vadd.xlane.f32.xlu0 %v2920
      %v2922 = vpop.xlane.xlu0 %2921
      %v2923 = vsel %vm480, %v2907, 0.0
      %2924 = vadd.xlane.f32.xlu0 %v2923
      %v2925 = vpop.xlane.xlu0 %2924
      %v2926 = vsel %vm480, %v2908, 0.0
      %2927 = vadd.xlane.f32.xlu0 %v2926
      %v2928 = vpop.xlane.xlu0 %2927
      %v2929 = vsel %vm480, %v2909, 0.0
      %2930 = vadd.xlane.f32.xlu0 %v2929
      %v2931 = vpop.xlane.xlu0 %2930
      %v2932 = vsel %vm480, %v2910, 0.0
      %2933 = vadd.xlane.f32.xlu0 %v2932
      %v2934 = vpop.xlane.xlu0 %2933
      %v2935 = vmul.f32 %v2913, %v511
      %v2936 = vmul.f32 %v2916, %v511
      %v2937 = vmul.f32 %v2919, %v511
      %v2938 = vmul.f32 %v2922, %v511
      %v2939 = vmul.f32 %v2925, %v511
      %v2940 = vmul.f32 %v2928, %v511
      %v2941 = vmul.f32 %v2931, %v511
      %v2942 = vmul.f32 %v2934, %v511
      %v2943 = vadd.f32 %v2935, 1e-05
      %v2944 = vadd.f32 %v2936, 1e-05
      %v2945 = vadd.f32 %v2937, 1e-05
      %v2946 = vadd.f32 %v2938, 1e-05
      %v2947 = vadd.f32 %v2939, 1e-05
      %v2948 = vadd.f32 %v2940, 1e-05
      %v2949 = vadd.f32 %v2941, 1e-05
      %v2950 = vadd.f32 %v2942, 1e-05
      %v2951 = vrsqrt.pop %v2943
      %v2952 = vmul.f32 %v2951, %v2943
      %v2953 = vmul.f32 %v2952, %v2951
      %v2954 = vmul.f32 0.5, %v2953
      %v2955 = vsub.f32 1.5, %v2954
      %v2956 = vmul.f32 %v2951, %v2955
      %vm2957 = vweird.f32 %v2943
      %vm2958 = vweird.f32 %v2951
      %vm2959 = vmor %vm2957, %vm2958
      %v2960 = vsel %vm2959, %v2951, %v2956
      %v2961 = vrsqrt.pop %v2944
      %v2962 = vmul.f32 %v2961, %v2944
      %v2963 = vmul.f32 %v2962, %v2961
      %v2964 = vmul.f32 0.5, %v2963
      %v2965 = vsub.f32 1.5, %v2964
      %v2966 = vmul.f32 %v2961, %v2965
      %vm2967 = vweird.f32 %v2944
      %vm2968 = vweird.f32 %v2961
      %vm2969 = vmor %vm2967, %vm2968
      %v2970 = vsel %vm2969, %v2961, %v2966
      %v2971 = vrsqrt.pop %v2945
      %v2972 = vmul.f32 %v2971, %v2945
      %v2973 = vmul.f32 %v2972, %v2971
      %v2974 = vmul.f32 0.5, %v2973
      %v2975 = vsub.f32 1.5, %v2974
      %v2976 = vmul.f32 %v2971, %v2975
      %vm2977 = vweird.f32 %v2945
      %vm2978 = vweird.f32 %v2971
      %vm2979 = vmor %vm2977, %vm2978
      %v2980 = vsel %vm2979, %v2971, %v2976
      %v2981 = vrsqrt.pop %v2946
      %v2982 = vmul.f32 %v2981, %v2946
      %v2983 = vmul.f32 %v2982, %v2981
      %v2984 = vmul.f32 0.5, %v2983
      %v2985 = vsub.f32 1.5, %v2984
      %v2986 = vmul.f32 %v2981, %v2985
      %vm2987 = vweird.f32 %v2946
      %vm2988 = vweird.f32 %v2981
      %vm2989 = vmor %vm2987, %vm2988
      %v2990 = vsel %vm2989, %v2981, %v2986
      %v2991 = vrsqrt.pop %v2947
      %v2992 = vmul.f32 %v2991, %v2947
      %v2993 = vmul.f32 %v2992, %v2991
      %v2994 = vmul.f32 0.5, %v2993
      %v2995 = vsub.f32 1.5, %v2994
      %v2996 = vmul.f32 %v2991, %v2995
      %vm2997 = vweird.f32 %v2947
      %vm2998 = vweird.f32 %v2991
      %vm2999 = vmor %vm2997, %vm2998
      %v3000 = vsel %vm2999, %v2991, %v2996
      %v3001 = vrsqrt.pop %v2948
      %v3002 = vmul.f32 %v3001, %v2948
      %v3003 = vmul.f32 %v3002, %v3001
      %v3004 = vmul.f32 0.5, %v3003
      %v3005 = vsub.f32 1.5, %v3004
      %v3006 = vmul.f32 %v3001, %v3005
      %vm3007 = vweird.f32 %v2948
      %vm3008 = vweird.f32 %v3001
      %vm3009 = vmor %vm3007, %vm3008
      %v3010 = vsel %vm3009, %v3001, %v3006
      %v3011 = vrsqrt.pop %v2949
      %v3012 = vmul.f32 %v3011, %v2949
      %v3013 = vmul.f32 %v3012, %v3011
      %v3014 = vmul.f32 0.5, %v3013
      %v3015 = vsub.f32 1.5, %v3014
      %v3016 = vmul.f32 %v3011, %v3015
      %vm3017 = vweird.f32 %v2949
      %vm3018 = vweird.f32 %v3011
      %vm3019 = vmor %vm3017, %vm3018
      %v3020 = vsel %vm3019, %v3011, %v3016
      %v3021 = vrsqrt.pop %v2950
      %v3022 = vmul.f32 %v3021, %v2950
      %v3023 = vmul.f32 %v3022, %v3021
      %v3024 = vmul.f32 0.5, %v3023
      %v3025 = vsub.f32 1.5, %v3024
      %v3026 = vmul.f32 %v3021, %v3025
      %vm3027 = vweird.f32 %v2950
      %vm3028 = vweird.f32 %v3021
      %vm3029 = vmor %vm3027, %vm3028
      %v3030 = vsel %vm3029, %v3021, %v3026
      %v3031 = vmul.f32 %v2895, %v2960
      %v3032 = vmul.f32 %v2896, %v2970
      %v3033 = vmul.f32 %v2897, %v2980
      %v3034 = vmul.f32 %v2898, %v2990
      %v3035 = vmul.f32 %v2899, %v3000
      %v3036 = vmul.f32 %v2900, %v3010
      %v3037 = vmul.f32 %v2901, %v3020
      %v3038 = vmul.f32 %v2902, %v3030
      %v3040 = vperm.slane %v2861, 0
      %v3042 = vmul.f32 %v3031, %v3040
      %v3043 = vmul.f32 %v3032, %v3040
      %v3044 = vmul.f32 %v3033, %v3040
      %v3045 = vmul.f32 %v3034, %v3040
      %v3046 = vmul.f32 %v3035, %v3040
      %v3047 = vmul.f32 %v3036, %v3040
      %v3048 = vmul.f32 %v3037, %v3040
      %v3049 = vmul.f32 %v3038, %v3040
      %v3051 = vperm.slane %v2862, 0
      %v3053 = vadd.f32 %v3042, %v3051
      %v3054 = vadd.f32 %v3043, %v3051
      %v3055 = vadd.f32 %v3044, %v3051
      %v3056 = vadd.f32 %v3045, %v3051
      %v3057 = vadd.f32 %v3046, %v3051
      %v3058 = vadd.f32 %v3047, %v3051
      %v3059 = vadd.f32 %v3048, %v3051
      %v3060 = vadd.f32 %v3049, %v3051
      %v3061 = vpack.c.bf16 %v3054, %v3053
      %v3062 = vpack.c.bf16 %v3056, %v3055
      %v3063 = vpack.c.bf16 %v3058, %v3057
      %v3064 = vpack.c.bf16 %v3060, %v3059
      %v3065 = vld [vmem:[%s9] sm:$0xf]
      %v3066 = vld [vmem:[%s9 + $0x4] sm:$0xf]
      %v3067 = vld [vmem:[%s9 + $0x8] sm:$0xf]
      %v3068 = vld [vmem:[%s9 + $0xc] sm:$0xf]
      %v3069 = vld [vmem:[%s10] sm:$0x1]
      %v3071 = vperm.slane %v3069, 0
      %v3077 = vunpack.c.l.b16 %v3065
      %v3078 = vunpack.c.l.b16 %v3066
      %v3079 = vunpack.c.l.b16 %v3067
      %v3080 = vunpack.c.l.b16 %v3068
      %v3081 = vpack.c.b16 %v3078, %v3077
      %v3082 = vpack.c.b16 %v3080, %v3079
      %v3086 = vsel %vm480, %v3061, 0
      %v3089 = vsel %vm480, %v3062, 0
      %v3092 = vsel %vm480, %v3063, 0
      %v3095 = vsel %vm480, %v3064, 0
      %3097 = vmatpush.bf16.msra.mxu0 0
      %3098 = vmatpush.bf16.msra.mxu0 0
      %3099 = vmatpush.bf16.msra.mxu0 0
      %3100 = vmatpush.bf16.msra.mxu0 0
      %3101 = vmatpush.bf16.msra.mxu0 0
      %3102 = vmatpush.bf16.msra.mxu0 0
      %3103 = vmatpush.bf16.msra.mxu0 %v3082
      %3104 = vmatpush.bf16.msra.mxu0 %v3081
      %3105 = vmatmul.bf16.gmra.mxu0 %v3086
      %v3106 = vpop.f32.mrf.mxu0
      %v3107 = vadd.f32 %v3071, %v3106
      %v3108 = vpop.f32.mrf.mxu0
      %v3109 = vadd.f32 %v3071, %v3108
      %3110 = vmatmul.bf16.gmra.mxu0 %v3089
      %v3111 = vpop.f32.mrf.mxu0
      %v3112 = vadd.f32 %v3071, %v3111
      %v3113 = vpop.f32.mrf.mxu0
      %v3114 = vadd.f32 %v3071, %v3113
      %3115 = vmatmul.bf16.gmra.mxu0 %v3092
      %v3116 = vpop.f32.mrf.mxu0
      %v3117 = vadd.f32 %v3071, %v3116
      %v3118 = vpop.f32.mrf.mxu0
      %v3119 = vadd.f32 %v3071, %v3118
      %3120 = vmatmul.bf16.gmra.mxu0 %v3095
      %v3121 = vpop.f32.mrf.mxu0
      %v3122 = vadd.f32 %v3071, %v3121
      %v3123 = vpop.f32.mrf.mxu0
      %v3124 = vadd.f32 %v3071, %v3123
      %3125 = vdwg.mxu0
      %v3126 = vmul.f32 %v3107, 0.5
      %v3127 = vmul.f32 %v3109, 0.5
      %v3128 = vmul.f32 %v3112, 0.5
      %v3129 = vmul.f32 %v3114, 0.5
      %v3130 = vmul.f32 %v3117, 0.5
      %v3131 = vmul.f32 %v3119, 0.5
      %v3132 = vmul.f32 %v3122, 0.5
      %v3133 = vmul.f32 %v3124, 0.5
      %v3134 = vmul.f32 %v3107, 0.044715
      %v3135 = vmul.f32 %v3109, 0.044715
      %v3136 = vmul.f32 %v3112, 0.044715
      %v3137 = vmul.f32 %v3114, 0.044715
      %v3138 = vmul.f32 %v3117, 0.044715
      %v3139 = vmul.f32 %v3119, 0.044715
      %v3140 = vmul.f32 %v3122, 0.044715
      %v3141 = vmul.f32 %v3124, 0.044715
      %v3142 = vmul.f32 %v3134, %v3107
      %v3143 = vmul.f32 %v3135, %v3109
      %v3144 = vmul.f32 %v3136, %v3112
      %v3145 = vmul.f32 %v3137, %v3114
      %v3146 = vmul.f32 %v3138, %v3117
      %v3147 = vmul.f32 %v3139, %v3119
      %v3148 = vmul.f32 %v3140, %v3122
      %v3149 = vmul.f32 %v3141, %v3124
      %v3150 = vmul.f32 %v3142, %v3107
      %v3151 = vmul.f32 %v3143, %v3109
      %v3152 = vmul.f32 %v3144, %v3112
      %v3153 = vmul.f32 %v3145, %v3114
      %v3154 = vmul.f32 %v3146, %v3117
      %v3155 = vmul.f32 %v3147, %v3119
      %v3156 = vmul.f32 %v3148, %v3122
      %v3157 = vmul.f32 %v3149, %v3124
      %v3158 = vadd.f32 %v3107, %v3150
      %v3159 = vadd.f32 %v3109, %v3151
      %v3160 = vadd.f32 %v3112, %v3152
      %v3161 = vadd.f32 %v3114, %v3153
      %v3162 = vadd.f32 %v3117, %v3154
      %v3163 = vadd.f32 %v3119, %v3155
      %v3164 = vadd.f32 %v3122, %v3156
      %v3165 = vadd.f32 %v3124, %v3157
      %v3166 = vmul.f32 %v3158, 0.7978846
      %v3167 = vmul.f32 %v3159, 0.7978846
      %v3168 = vmul.f32 %v3160, 0.7978846
      %v3169 = vmul.f32 %v3161, 0.7978846
      %v3170 = vmul.f32 %v3162, 0.7978846
      %v3171 = vmul.f32 %v3163, 0.7978846
      %v3172 = vmul.f32 %v3164, 0.7978846
      %v3173 = vmul.f32 %v3165, 0.7978846
      %v3174 = vtanh.pop %v3166
      %v3175 = vtanh.pop %v3167
      %v3176 = vtanh.pop %v3168
      %v3177 = vtanh.pop %v3169
      %v3178 = vtanh.pop %v3170
      %v3179 = vtanh.pop %v3171
      %v3180 = vtanh.pop %v3172
      %v3181 = vtanh.pop %v3173
      %v3182 = vadd.f32 %v3174, 1.0
      %v3183 = vadd.f32 %v3175, 1.0
      %v3184 = vadd.f32 %v3176, 1.0
      %v3185 = vadd.f32 %v3177, 1.0
      %v3186 = vadd.f32 %v3178, 1.0
      %v3187 = vadd.f32 %v3179, 1.0
      %v3188 = vadd.f32 %v3180, 1.0
      %v3189 = vadd.f32 %v3181, 1.0
      %v3190 = vmul.f32 %v3126, %v3182
      %v3191 = vmul.f32 %v3127, %v3183
      %v3192 = vmul.f32 %v3128, %v3184
      %v3193 = vmul.f32 %v3129, %v3185
      %v3194 = vmul.f32 %v3130, %v3186
      %v3195 = vmul.f32 %v3131, %v3187
      %v3196 = vmul.f32 %v3132, %v3188
      %v3197 = vmul.f32 %v3133, %v3189
      %v3198 = vpack.c.bf16 %v3191, %v3190
      %v3199 = vpack.c.bf16 %v3193, %v3192
      %v3200 = vpack.c.bf16 %v3195, %v3194
      %v3201 = vpack.c.bf16 %v3197, %v3196
      %v3202 = vld [vmem:[%s11] sm:$0xf]
      %v3203 = vld [vmem:[%s11 + $0x4] sm:$0xf]
      %v3204 = vld [vmem:[%s11 + $0x8] sm:$0xf]
      %v3205 = vld [vmem:[%s11 + $0xc] sm:$0xf]
      %v3206 = vld [vmem:[%s11 + $0x10] sm:$0xf]
      %v3207 = vld [vmem:[%s11 + $0x14] sm:$0xf]
      %v3208 = vld [vmem:[%s11 + $0x18] sm:$0xf]
      %v3209 = vld [vmem:[%s11 + $0x1c] sm:$0xf]
      %v3210 = vld [vmem:[%s11 + $0x20] sm:$0xf]
      %v3211 = vld [vmem:[%s11 + $0x24] sm:$0xf]
      %v3212 = vld [vmem:[%s11 + $0x28] sm:$0xf]
      %v3213 = vld [vmem:[%s11 + $0x2c] sm:$0xf]
      %v3214 = vld [vmem:[%s11 + $0x30] sm:$0xf]
      %v3215 = vld [vmem:[%s11 + $0x34] sm:$0xf]
      %v3216 = vld [vmem:[%s11 + $0x38] sm:$0xf]
      %v3217 = vld [vmem:[%s11 + $0x3c] sm:$0xf]
      %v3218 = vld [vmem:[%s12] sm:$0x1]
      %v3220 = vperm.slane %v3218, 0
      %v3238 = vunpack.c.l.b16 %v3202
      %v3239 = vunpack.c.l.b16 %v3203
      %v3240 = vunpack.c.l.b16 %v3204
      %v3241 = vunpack.c.l.b16 %v3205
      %v3242 = vunpack.c.l.b16 %v3206
      %v3243 = vunpack.c.l.b16 %v3207
      %v3244 = vunpack.c.l.b16 %v3208
      %v3245 = vunpack.c.l.b16 %v3209
      %v3246 = vunpack.c.l.b16 %v3210
      %v3247 = vunpack.c.l.b16 %v3211
      %v3248 = vunpack.c.l.b16 %v3212
      %v3249 = vunpack.c.l.b16 %v3213
      %v3250 = vunpack.c.l.b16 %v3214
      %v3251 = vunpack.c.l.b16 %v3215
      %v3252 = vunpack.c.l.b16 %v3216
      %v3253 = vunpack.c.l.b16 %v3217
      %v3254 = vpack.c.b16 %v3239, %v3238
      %v3255 = vpack.c.b16 %v3241, %v3240
      %v3256 = vpack.c.b16 %v3243, %v3242
      %v3257 = vpack.c.b16 %v3245, %v3244
      %v3258 = vpack.c.b16 %v3247, %v3246
      %v3259 = vpack.c.b16 %v3249, %v3248
      %v3260 = vpack.c.b16 %v3251, %v3250
      %v3261 = vpack.c.b16 %v3253, %v3252
      %3270 = vmatpush.bf16.msra.mxu0 %v3261
      %3271 = vmatpush.bf16.msra.mxu0 %v3260
      %3272 = vmatpush.bf16.msra.mxu0 %v3259
      %3273 = vmatpush.bf16.msra.mxu0 %v3258
      %3274 = vmatpush.bf16.msra.mxu0 %v3257
      %3275 = vmatpush.bf16.msra.mxu0 %v3256
      %3276 = vmatpush.bf16.msra.mxu0 %v3255
      %3277 = vmatpush.bf16.msra.mxu0 %v3254
      %3278 = vmatmul.bf16.gmra.mxu0 %v3198
      %v3279 = vpop.f32.mrf.mxu0
      %v3280 = vadd.f32 %v3220, %v3279
      %v3281 = vpop.f32.mrf.mxu0
      %v3282 = vadd.f32 %v3220, %v3281
      %3283 = vmatmul.bf16.gmra.mxu0 %v3199
      %v3284 = vpop.f32.mrf.mxu0
      %v3285 = vadd.f32 %v3220, %v3284
      %v3286 = vpop.f32.mrf.mxu0
      %v3287 = vadd.f32 %v3220, %v3286
      %3288 = vmatmul.bf16.gmra.mxu0 %v3200
      %v3289 = vpop.f32.mrf.mxu0
      %v3290 = vadd.f32 %v3220, %v3289
      %v3291 = vpop.f32.mrf.mxu0
      %v3292 = vadd.f32 %v3220, %v3291
      %3293 = vmatmul.bf16.gmra.mxu0 %v3201
      %v3294 = vpop.f32.mrf.mxu0
      %v3295 = vadd.f32 %v3220, %v3294
      %v3296 = vpop.f32.mrf.mxu0
      %v3297 = vadd.f32 %v3220, %v3296
      %3298 = vdwg.mxu0
      %v3299 = vadd.f32 %v2853, %v3280
      %v3300 = vadd.f32 %v2854, %v3282
      %v3301 = vadd.f32 %v2855, %v3285
      %v3302 = vadd.f32 %v2856, %v3287
      %v3303 = vadd.f32 %v2857, %v3290
      %v3304 = vadd.f32 %v2858, %v3292
      %v3305 = vadd.f32 %v2859, %v3295
      %v3306 = vadd.f32 %v2860, %v3297
      %3307 = vxpose.xlu0.b32.start [1/16] %v3299, 128
      %3308 = vxpose.xlu0.b32.cont [2/16] %v3300, 128
      %3309 = vxpose.xlu0.b32.cont [3/16] %v3301, 128
      %3310 = vxpose.xlu0.b32.cont [4/16] %v3302, 128
      %3311 = vxpose.xlu0.b32.cont [5/16] %v3303, 128
      %3312 = vxpose.xlu0.b32.cont [6/16] %v3304, 128
      %3313 = vxpose.xlu0.b32.cont [7/16] %v3305, 128
      %3314 = vxpose.xlu0.b32.cont [8/16] %v3306, 128
      %3315 = vxpose.xlu0.b32.cont [9/16] 0.0, 128
      %3316 = vxpose.xlu0.b32.cont [10/16] 0.0, 128
      %3317 = vxpose.xlu0.b32.cont [11/16] 0.0, 128
      %3318 = vxpose.xlu0.b32.cont [12/16] 0.0, 128
      %3319 = vxpose.xlu0.b32.cont [13/16] 0.0, 128
      %3320 = vxpose.xlu0.b32.cont [14/16] 0.0, 128
      %3321 = vxpose.xlu0.b32.cont [15/16] 0.0, 128
      %3322 = vxpose.xlu0.b32.end [16/16] 0.0, 128
      %v3323 = vpop.trf.xlu0
      %v3324 = vpop.trf.xlu0
      %v3325 = vpop.trf.xlu0
      %v3326 = vpop.trf.xlu0
      %v3327 = vpop.trf.xlu0
      %v3328 = vpop.trf.xlu0
      %v3329 = vpop.trf.xlu0
      %v3330 = vpop.trf.xlu0
      %v3331 = vpop.trf.xlu0
      %v3332 = vpop.trf.xlu0
      %v3333 = vpop.trf.xlu0
      %v3334 = vpop.trf.xlu0
      %v3335 = vpop.trf.xlu0
      %v3336 = vpop.trf.xlu0
      %v3337 = vpop.trf.xlu0
      %v3338 = vpop.trf.xlu0
      %3339 = vst.msk [vmem:[%s440] sm:$0xff] %vm841, %v3323
      %3340 = vst.msk [vmem:[%s440 + $0x8] sm:$0xff] %vm841, %v3324
      %3341 = vst.msk [vmem:[%s440 + $0x10] sm:$0xff] %vm841, %v3325
      %3342 = vst.msk [vmem:[%s440 + $0x18] sm:$0xff] %vm841, %v3326
      %p3343 = scmp.lt.s32.totalorder %s24, 1
      %s3344 = scalar_select %p3343, %s24, 1
      %s3345 = smul.addr %s3344, 4
      %s3346 = smul.addr %s3345, 8
      %s3347 = scalar_lea.vmem %s13, %s3346
      // Predicated region
      $region73: #{transformer_block.1} parent=71 // pred_check
        %p3348 = pneg %p320
      $region74: #{transformer_block.1} parent=71 // pred_check_branch
        %3350 = sbr.rel (%p3348) target = $region76
      $region75: #{transformer_block.1} parent=71 // pred_region
        _
      $region76: #{transformer_block.1} parent=71 // pred_fallthru
        _
    $region72: #{transformer_block.1} parent=5 // pred_fallthru
      _
    %p3351 = scmp.le.s32.totalorder 2, %s19
    // Predicated region
    $region77: #{transformer_block.1} parent=5 // pred_check
      %p3352 = pneg %p3351
    $region78: #{transformer_block.1} parent=5 // pred_check_branch
      %3354 = sbr.rel (%p3352) target = $region80
    $region79: #{transformer_block.1} parent=5 // pred_region
      %s3355 = ssub.s32 %s19, 2
      // Predicated region
      $region81: #{transformer_block.1} parent=79 // pred_check
        %p3356 = pneg %p326
      $region82: #{transformer_block.1} parent=79 // pred_check_branch
        %3358 = sbr.rel (%p3356) target = $region84
      $region83: #{transformer_block.1} parent=79 // pred_region
        %p3359 = scmp.lt.s32.totalorder %s25, 1
        %s3360 = scalar_select %p3359, %s25, 1
        %s3361 = smul.addr %s3360, 4
        %s3362 = smul.addr %s3361, 8
        %s3363 = scalar_lea.vmem %s13, %s3362
      $region84: #{transformer_block.1} parent=79 // pred_fallthru
        _
    $region80: #{transformer_block.1} parent=5 // pred_fallthru
      _
  $region6: #{transformer_block.1} parent=0 // loop_footer
    %s23 = sadd.s32 1, %s19
  $region7: #{transformer_block.1} parent=0 // loop_footer_branch
    %18 = sbr.rel target = $region3
  $region8: #{transformer_block.1} parent=0 // loop_exit
    _

</llo_original>
